<compile_context>
chip_gen: v7x
topology: tpu7x:2x2x1
jax: 0.10.0
libtpu: 0.0.40
codegen_flags: <defaults>
</compile_context>

<pallas_src>
import functools

import jax
import jax.numpy as jnp
from jax.experimental import pallas as pl
from jax.experimental.pallas import tpu as pltpu

_BN_EPS = 1e-5
_LANE_IN = 128                 # input-channel (K-dim) padding granularity
_LANE_OUT = 256                # output-channel (N-dim) padding granularity (v6e/v7x MXU)
_DEFAULT_ROW_CHUNK_M = 512     # target rows (bb * Hchunk * Wout) per in-kernel matmul

# v7x has 64 MiB of VMEM per TensorCore (v5e/v6e: 128 MiB).  Keep a sub-64MiB budget so
# Mosaic-internal scratch always fits; raise on v5e/v6e if you want larger tiles.
_VMEM_LIMIT_BYTES = 48 * 1024 * 1024


# ---------------------------------------------------------------------------
# small helpers
# ---------------------------------------------------------------------------

def _round_up(n, m):
    return ((n + m - 1) // m) * m


def _bn_fold(gamma, beta, mean, var):
    scale = gamma / jnp.sqrt(var + _BN_EPS)
    shift = beta - mean * scale
    return scale, shift


def _pick_row_chunk(hout, wout, target_m):
    """Largest divisor th of hout with th*wout <= target_m, preferring th*wout % 8 == 0."""
    fits = [d for d in range(1, hout + 1) if hout % d == 0 and d * wout <= target_m]
    if not fits:
        return 1
    aligned = [d for d in fits if (d * wout) % 8 == 0]
    return max(aligned) if aligned else max(fits)


def _plan_tiles(batch, hout, wout, target_m, n_ct):
    """Pick (batch_block, row_chunk, n_chunks) so the per-dot M is ~target_m.

    Small-spatial layers block several images per grid step (bb > 1, full image per
    chunk); large-spatial layers chunk rows within one image (bb == 1).  The batch
    block is shrunk if needed to keep >= 2 grid steps (v7x has 2 TensorCores)."""
    hw = hout * wout
    if hw >= target_m:
        th = _pick_row_chunk(hout, wout, target_m)
        return 1, th, hout // th
    divs = [d for d in range(1, batch + 1) if batch % d == 0 and d * hw <= target_m]
    bb = max(divs) if divs else 1
    while bb > 1 and n_ct * (batch // bb) < 2:
        smaller = [d for d in divs if d < bb]
        if not smaller:
            break
        bb = max(smaller)
    return bb, hout, 1


def _phase_split_prepadded(ap, stride):
    """ap: (B, H+2, W+2, C) zero-halo-padded activation.  Split into stride**2 phases
    laid out (B*s*s, Hq, Wq, C) so the conv kernel only takes dense (stride-1) slices.
    No-op for stride == 1."""
    s = stride
    if s == 1:
        return ap
    b, hp, wp, c = ap.shape
    hq, wq = -(-hp // s), -(-wp // s)
    ap = jnp.pad(ap, ((0, 0), (0, hq * s - hp), (0, wq * s - wp), (0, 0)))
    ap = ap.reshape(b, hq, s, wq, s, c)
    ap = jnp.transpose(ap, (0, 2, 4, 1, 3, 5))          # (B, s, s, Hq, Wq, C)
    return ap.reshape(b * s * s, hq, wq, c)


def _index_maps(batch_major):
    """Index maps for (batch-block, Cout-tile) operands under either grid order."""
    if batch_major:          # grid = (n_b, n_ct): Cout-tile axis innermost
        return (lambda b, j: (b, 0, 0, 0),    # batch-indexed 4D input
                lambda b, j: (0, j),          # Cout-tiled weight matrix
                lambda b, j: (0, j),          # Cout-tiled (1, ct) vector
                lambda b, j: (b, 0, 0, j))    # batch + Cout-tiled 4D output
    return (lambda j, b: (b, 0, 0, 0),        # grid = (n_ct, n_b): batch innermost
            lambda j, b: (0, j),
            lambda j, b: (0, j),
            lambda j, b: (b, 0, 0, j))


# ---------------------------------------------------------------------------
# Pallas kernels
# ---------------------------------------------------------------------------

def _build_patches(xph_ref, patch_ref, chunk, *, stride, bb, th, wout, cin_p):
    """im2col for one row chunk of bb images into the (bb*th*wout, 9*cin_p) scratch.

    xph_ref: (bb*stride**2, Hq, Wq, cin_p) stride-phase-split, zero-halo-padded input.
    All indices are static Python ints (chunk loop is unrolled), so every tap copy is
    a dense, aligned vld/vst stream."""
    s = stride
    m0 = th * wout
    for bi in range(bb):
        for kh in range(3):
            for kw in range(3):
                ph = (kh % s) * s + (kw % s)             # stride phase holding this tap
                r0 = kh // s + chunk * th
                c0 = kw // s
                tap = xph_ref[bi * s * s + ph, r0:r0 + th, c0:c0 + wout, :]
                t = kh * 3 + kw
                patch_ref[bi * m0:(bi + 1) * m0, t * cin_p:(t + 1) * cin_p] = (
                    tap.reshape(m0, cin_p))


def _conv3x3_bn_relu_kernel(xph_ref, w_ref, scale_ref, shift_ref, out_ref, *patch_refs,
                            bb, th, n_chunks, wout, cin_p):
    """out = relu(scale * conv3x3_s1(x) + shift)   (conv bias folded into shift).

    The output block carries a 1-px zero halo so kernel B can consume it directly
    (no XLA pad/phase-split round trip through HBM for the intermediate)."""
    scale = scale_ref[...]                               # (1, ct) f32
    shift = shift_ref[...]
    hpad, wpad, ct = out_ref.shape[1], out_ref.shape[2], out_ref.shape[3]

    # zero the halo (rows 0 / H+1, cols 0 / W+1) of this block's Cout tile
    zr = jnp.zeros((bb, 1, wpad, ct), out_ref.dtype)
    zc = jnp.zeros((bb, hpad, 1, ct), out_ref.dtype)
    out_ref[:, 0:1, :, :] = zr
    out_ref[:, hpad - 1:hpad, :, :] = zr
    out_ref[:, :, 0:1, :] = zc
    out_ref[:, :, wpad - 1:wpad, :] = zc

    # statically unrolled row-chunk loop; patch scratch double-buffered across chunks
    for c in range(n_chunks):
        pref = patch_refs[c % len(patch_refs)]
        _build_patches(xph_ref, pref, c, stride=1, bb=bb, th=th, wout=wout, cin_p=cin_p)
        acc = jnp.dot(pref[...], w_ref[...], preferred_element_type=jnp.float32)
        y = jnp.maximum(acc * scale + shift, 0.0)        # fused BN2 + ReLU (f32)
        out_ref[:, 1 + c * th:1 + (c + 1) * th, 1:1 + wout, :] = (
            y.reshape(bb, th, wout, ct).astype(out_ref.dtype))


def _conv3x3_residual_body(hph_ref, w_ref, bias_ref, xs_ref, ws_ref, out_ref, patch_refs,
                           *, stride, bb, th, n_chunks, wout, cin_p):
    """out = conv3x3_stride(h) + bias + shortcut, shortcut = xs @ ws (1x1 conv) or xs."""
    bias = bias_ref[...]                                 # (1, ct) f32
    ct = out_ref.shape[3]
    m0 = th * wout

    for c in range(n_chunks):                            # static unroll
        pref = patch_refs[c % len(patch_refs)]
        _build_patches(hph_ref, pref, c, stride=stride, bb=bb, th=th, wout=wout,
                       cin_p=cin_p)
        acc = jnp.dot(pref[...], w_ref[...], preferred_element_type=jnp.float32)

        xs = xs_ref[:, c * th:(c + 1) * th, :, :].reshape(bb * m0, -1)
        if ws_ref is not None:                           # fused 1x1-conv shortcut
            sc = jnp.dot(xs, ws_ref[...], preferred_element_type=jnp.float32)
        else:                                            # identity shortcut (f32)
            sc = xs.astype(jnp.float32)

        y = acc + bias + sc
        out_ref[:, c * th:(c + 1) * th, :, :] = (
            y.reshape(bb, th, wout, ct).astype(out_ref.dtype))


def _conv3x3_residual_conv_kernel(hph_ref, w_ref, bias_ref, xs_ref, ws_ref, out_ref,
                                  *patch_refs, **kw):
    _conv3x3_residual_body(hph_ref, w_ref, bias_ref, xs_ref, ws_ref, out_ref,
                           patch_refs, **kw)


def _conv3x3_residual_id_kernel(hph_ref, w_ref, bias_ref, xs_ref, out_ref,
                                *patch_refs, **kw):
    _conv3x3_residual_body(hph_ref, w_ref, bias_ref, xs_ref, None, out_ref,
                           patch_refs, **kw)


# ---------------------------------------------------------------------------
# pallas_call wrappers
# ---------------------------------------------------------------------------

def fused_conv1_bn2_relu(a1, w1, b1, scale2, shift2, *, compute_dtype=jnp.bfloat16,
                         row_chunk_target=_DEFAULT_ROW_CHUNK_M):
    """a1: (B,H,W,Cin) f32 = relu(bn1(x)).  w1: (3,3,Cin,Cm) HWIO.
    Returns relu(bn2(conv3x3_s1(a1) + b1)) in the zero-halo padded layout
    (B, H+2, W+2, Cm_pad), compute_dtype, ready for direct consumption by kernel B."""
    B, H, W, cin = a1.shape
    cm = w1.shape[-1]
    cin_p = _round_up(cin, _LANE_IN)
    cm_p = _round_up(cm, _LANE_OUT)

    # channel pad + bf16 cast + spatial halo pad; XLA fuses this with the BN1+ReLU
    # elementwise producer into a single pass over x.
    xp = jnp.pad(a1.astype(compute_dtype), ((0, 0), (1, 1), (1, 1), (0, cin_p - cin)))

    # weights: channel pad, im2col layout (9*cin_p, cm_p)
    w = jnp.pad(w1, ((0, 0), (0, 0), (0, cin_p - cin), (0, cm_p - cm)))
    w2d = w.reshape(9 * cin_p, cm_p).astype(compute_dtype)

    # fold conv bias into BN2 shift: scale2*(y+b1)+shift2 = scale2*y + (scale2*b1+shift2)
    sc = jnp.pad(scale2.astype(jnp.float32), (0, cm_p - cm)).reshape(1, cm_p)
    sh = jnp.pad((scale2 * b1 + shift2).astype(jnp.float32),
                 (0, cm_p - cm)).reshape(1, cm_p)

    hout, wout = H, W
    ct = _LANE_OUT
    n_ct = cm_p // ct
    bb, th, n_chunks = _plan_tiles(B, hout, wout, row_chunk_target, n_ct)
    n_b = B // bb
    n_bufs = 2 if n_chunks > 1 else 1

    # grid order: minimize HBM re-fetch of the larger operand
    in_bytes = xp.size * xp.dtype.itemsize
    w_bytes = w2d.size * w2d.dtype.itemsize
    batch_major = in_bytes * (n_ct - 1) > w_bytes * (n_b - 1)
    im_x, im_w, im_vec, im_out = _index_maps(batch_major)
    grid = (n_b, n_ct) if batch_major else (n_ct, n_b)

    kernel = functools.partial(_conv3x3_bn_relu_kernel, bb=bb, th=th,
                               n_chunks=n_chunks, wout=wout, cin_p=cin_p)
    return pl.pallas_call(
        kernel,
        out_shape=jax.ShapeDtypeStruct((B, H + 2, W + 2, cm_p), compute_dtype),
        grid=grid,
        in_specs=[
            pl.BlockSpec((bb, H + 2, W + 2, cin_p), im_x),
            pl.BlockSpec((9 * cin_p, ct), im_w),
            pl.BlockSpec((1, ct), im_vec),
            pl.BlockSpec((1, ct), im_vec),
        ],
        out_specs=pl.BlockSpec((bb, H + 2, W + 2, ct), im_out),
        scratch_shapes=[pltpu.VMEM((bb * th * wout, 9 * cin_p), compute_dtype)
                        for _ in range(n_bufs)],
        compiler_params=pltpu.CompilerParams(
            dimension_semantics=("parallel", "parallel"),
            vmem_limit_bytes=_VMEM_LIMIT_BYTES),
    )(xp, w2d, sc, sh)


def fused_conv2_residual(a2p, w2, b2, x, ws, bs, *, stride, identity_shortcut,
                         out_dtype, compute_dtype=jnp.bfloat16,
                         row_chunk_target=_DEFAULT_ROW_CHUNK_M):
    """a2p: (B, H+2, W+2, Cm_pad) zero-halo padded relu(bn2(...)) (kernel A output).
    x: (B,H,W,Cin) raw NHWC input (f32).
    Returns conv3x3_stride(a2) + b2 + shortcut(x) as (B, Hout, Wout, Cm_pad)."""
    B, hpad, wpad, cm_p = a2p.shape
    H, W = hpad - 2, wpad - 2
    cm = w2.shape[-1]
    cin = x.shape[-1]
    cin_p = _round_up(cin, _LANE_IN)
    s = stride
    assert cm_p == _round_up(cm, _LANE_OUT)

    hout = (H - 1) // s + 1
    wout = (W - 1) // s + 1

    hph = _phase_split_prepadded(a2p, s)        # (B*s*s, Hq, Wq, cm_p); no-op for s == 1
    _, hq, wq, _ = hph.shape

    w = jnp.pad(w2, ((0, 0), (0, 0), (0, cm_p - cm), (0, cm_p - cm)))
    w2d = w.reshape(9 * cm_p, cm_p).astype(compute_dtype)

    ct = _LANE_OUT
    n_ct = cm_p // ct
    bb, th, n_chunks = _plan_tiles(B, hout, wout, row_chunk_target, n_ct)
    n_b = B // bb
    n_bufs = 2 if n_chunks > 1 else 1

    common_kw = dict(stride=s, bb=bb, th=th, n_chunks=n_chunks, wout=wout, cin_p=cm_p)
    in_bytes = hph.size * hph.dtype.itemsize
    w_bytes = w2d.size * w2d.dtype.itemsize

    if identity_shortcut:
        # stride == 1 and cin == cm: add x directly (residual kept in f32)
        xs = jnp.pad(x, ((0, 0), (0, 0), (0, 0), (0, cm_p - cin))).astype(jnp.float32)
        bias = jnp.pad(b2.astype(jnp.float32), (0, cm_p - cm)).reshape(1, cm_p)
        kernel = functools.partial(_conv3x3_residual_id_kernel, **common_kw)
    else:
        # fused 1x1-conv shortcut on the (wrapper-)strided raw input
        xs = jnp.pad(x, ((0, 0), (0, 0), (0, 0), (0, cin_p - cin)))
        xs = xs[:, ::s, ::s, :].astype(compute_dtype)
        wsp = jnp.pad(ws, ((0, cin_p - cin), (0, cm_p - cm))).astype(compute_dtype)
        bias = jnp.pad((b2 + bs).astype(jnp.float32), (0, cm_p - cm)).reshape(1, cm_p)
        kernel = functools.partial(_conv3x3_residual_conv_kernel, **common_kw)
        in_bytes += xs.size * xs.dtype.itemsize
        w_bytes += wsp.size * wsp.dtype.itemsize

    batch_major = in_bytes * (n_ct - 1) > w_bytes * (n_b - 1)
    im_x, im_w, im_vec, im_out = _index_maps(batch_major)
    grid = (n_b, n_ct) if batch_major else (n_ct, n_b)

    if identity_shortcut:
        extra_specs = [pl.BlockSpec((bb, hout, wout, ct), im_out)]
        extra_args = [xs]
    else:
        extra_specs = [pl.BlockSpec((bb, hout, wout, cin_p), im_x),
                       pl.BlockSpec((cin_p, ct), im_w)]
        extra_args = [xs, wsp]

    in_specs = [
        pl.BlockSpec((bb * s * s, hq, wq, cm_p), im_x),
        pl.BlockSpec((9 * cm_p, ct), im_w),
        pl.BlockSpec((1, ct), im_vec),
    ] + extra_specs

    return pl.pallas_call(
        kernel,
        out_shape=jax.ShapeDtypeStruct((B, hout, wout, cm_p), out_dtype),
        grid=grid,
        in_specs=in_specs,
        out_specs=pl.BlockSpec((bb, hout, wout, ct), im_out),
        scratch_shapes=[pltpu.VMEM((bb * th * wout, 9 * cm_p), compute_dtype)
                        for _ in range(n_bufs)],
        compiler_params=pltpu.CompilerParams(
            dimension_semantics=("parallel", "parallel"),
            vmem_limit_bytes=_VMEM_LIMIT_BYTES),
    )(hph, w2d, bias, *extra_args)


# ---------------------------------------------------------------------------
# wide_basic forward
# ---------------------------------------------------------------------------

def init_wide_basic_params(key, in_planes, planes):
    ks = jax.random.split(key, 10)
    p = {
        "bn1_gamma": 1.0 + 0.1 * jax.random.normal(ks[0], (in_planes,), jnp.float32),
        "bn1_beta": 0.1 * jax.random.normal(ks[1], (in_planes,), jnp.float32),
        "bn1_mean": 0.1 * jax.random.normal(ks[2], (in_planes,), jnp.float32),
        "bn1_var": 1.0 + 0.1 * jnp.abs(jax.random.normal(ks[3], (in_planes,), jnp.float32)),
        "w1": 0.1 * jax.random.normal(ks[4], (3, 3, in_planes, planes), jnp.float32),
        "b1": 0.05 * jax.random.normal(ks[5], (planes,), jnp.float32),
        "bn2_gamma": 1.0 + 0.1 * jax.random.normal(ks[6], (planes,), jnp.float32),
        "bn2_beta": 0.1 * jax.random.normal(ks[7], (planes,), jnp.float32),
        "bn2_mean": 0.1 * jax.random.normal(ks[8], (planes,), jnp.float32),
        "bn2_var": 1.0 + 0.1 * jnp.abs(jax.random.normal(ks[9], (planes,), jnp.float32)),
    }
    k2 = jax.random.split(jax.random.fold_in(key, 123), 4)
    p["w2"] = 0.1 * jax.random.normal(k2[0], (3, 3, planes, planes), jnp.float32)
    p["b2"] = 0.05 * jax.random.normal(k2[1], (planes,), jnp.float32)
    p["ws"] = 0.1 * jax.random.normal(k2[2], (in_planes, planes), jnp.float32)
    p["bs"] = 0.05 * jax.random.normal(k2[3], (planes,), jnp.float32)
    return p


def wide_basic_forward(params, x_nchw, *, in_planes, planes, stride, dropout_rate=0.0,
                       compute_dtype=jnp.bfloat16,
                       row_chunk_target=_DEFAULT_ROW_CHUNK_M):
    """PyTorch-NCHW in / NCHW out; Pallas kernels run NHWC with lane-padded channels."""
    del dropout_rate  # TODO(synk): dropout is identity (inference / eval mode).
    x = jnp.transpose(x_nchw, (0, 2, 3, 1)).astype(jnp.float32)   # NCHW -> NHWC

    scale1, shift1 = _bn_fold(params["bn1_gamma"], params["bn1_beta"],
                              params["bn1_mean"], params["bn1_var"])
    scale2, shift2 = _bn_fold(params["bn2_gamma"], params["bn2_beta"],
                              params["bn2_mean"], params["bn2_var"])

    # BN1 + ReLU on the raw input; fuses with the pad/cast inside the conv1 wrapper
    # into one XLA elementwise pass over x.
    a1 = jnp.maximum(x * scale1 + shift1, 0.0)

    # kernel A: conv1 (stride 1) + b1 + BN2 + ReLU, emitted in padded halo layout
    a2p = fused_conv1_bn2_relu(a1, params["w1"], params["b1"], scale2, shift2,
                               compute_dtype=compute_dtype,
                               row_chunk_target=row_chunk_target)

    # kernel B: conv2 (stride) + b2 + fused shortcut (1x1 conv or identity)
    identity = (stride == 1 and in_planes == planes)
    out = fused_conv2_residual(a2p, params["w2"], params["b2"], x,
                               None if identity else params["ws"],
                               None if identity else params["bs"],
                               stride=stride, identity_shortcut=identity,
                               out_dtype=jnp.float32, compute_dtype=compute_dtype,
                               row_chunk_target=row_chunk_target)

    out = out[..., :planes]                                # drop lane padding
    return jnp.transpose(out, (0, 3, 1, 2))                # NHWC -> NCHW


# ---------------------------------------------------------------------------
# Pure-JAX reference (correctness check only)
# ---------------------------------------------------------------------------

def wide_basic_reference(params, x_nchw, *, in_planes, planes, stride):
    def bn(x, g, b, m, v):
        s = (g / jnp.sqrt(v + _BN_EPS))[None, :, None, None]
        return (x - m[None, :, None, None]) * s + b[None, :, None, None]

    def conv(x, w_hwio, b, strides, pad):
        w_oihw = jnp.transpose(w_hwio, (3, 2, 0, 1))
        y = jax.lax.conv_general_dilated(
            x, w_oihw, strides, ((pad, pad), (pad, pad)),
            dimension_numbers=("NCHW", "OIHW", "NCHW"))
        return y + b[None, :, None, None]

    h = jax.nn.relu(bn(x_nchw, params["bn1_gamma"], params["bn1_beta"],
                       params["bn1_mean"], params["bn1_var"]))
    h = conv(h, params["w1"], params["b1"], (1, 1), 1)
    h = jax.nn.relu(bn(h, params["bn2_gamma"], params["bn2_beta"],
                       params["bn2_mean"], params["bn2_var"]))
    h = conv(h, params["w2"], params["b2"], (stride, stride), 1)

    if stride != 1 or in_planes != planes:
        ws_hwio = params["ws"].reshape(1, 1, in_planes, planes)
        sc = conv(x_nchw, ws_hwio, params["bs"], (stride, stride), 0)
    else:
        sc = x_nchw
    return h + sc


# ---------------------------------------------------------------------------
# main
# ---------------------------------------------------------------------------

if __name__ == "__main__":
    key = jax.random.PRNGKey(0)

    configs = [
        # (B, in_planes, planes, stride, H, W, row_chunk_target)
        (2, 4, 8, 1, 16, 16, 128),   # conv shortcut; multi-chunk + double-buffered patch
        (4, 4, 8, 2, 16, 16, 512),   # stride-2; phase split + batch-blocked (bb=2) path
        (2, 8, 8, 1, 16, 16, 512),   # identity shortcut path
    ]

    for i, (B, in_planes, planes, stride, H, W, rc_target) in enumerate(configs):
        kcfg = jax.random.fold_in(key, i)
        kx, kp = jax.random.split(kcfg)
        x = jax.random.normal(kx, (B, in_planes, H, W), jnp.float32)   # NCHW
        params = init_wide_basic_params(kp, in_planes, planes)

        ref = wide_basic_reference(params, x, in_planes=in_planes, planes=planes,
                                   stride=stride)

        # f32 MXU-operand path: tight tolerance (validates indexing / fusion).
        out32 = wide_basic_forward(params, x, in_planes=in_planes, planes=planes,
                                   stride=stride, dropout_rate=0.3,
                                   compute_dtype=jnp.float32,
                                   row_chunk_target=rc_target)
        out32 = jax.block_until_ready(out32)
        assert out32.shape == ref.shape, (out32.shape, ref.shape)
        err32 = float(jnp.max(jnp.abs(out32 - ref)))
        assert jnp.allclose(out32, ref, rtol=1e-3, atol=1e-3), (i, err32)

        # default bf16 MXU-operand path (f32 accumulation): looser tolerance.
        out16 = wide_basic_forward(params, x, in_planes=in_planes, planes=planes,
                                   stride=stride, dropout_rate=0.3,
                                   row_chunk_target=rc_target)
        out16 = jax.block_until_ready(out16)
        assert out16.shape == ref.shape, (out16.shape, ref.shape)
        err16 = float(jnp.max(jnp.abs(out16 - ref)))
        assert jnp.allclose(out16, ref, rtol=5e-2, atol=1.5e-1), (i, err16)

    print("KERNEL_OK")
</pallas_src>

<mosaic_0001>
module attributes {stable_mosaic.version = 11 : i64} {
  func.func @_conv3x3_bn_relu_kernel(%arg0: i32, %arg1: i32, %arg2: memref<1x18x18x128xf32, #tpu.memory_space<vmem>>, %arg3: memref<1152x256xf32, #tpu.memory_space<vmem>>, %arg4: memref<1x256xf32, #tpu.memory_space<vmem>>, %arg5: memref<1x256xf32, #tpu.memory_space<vmem>>, %arg6: memref<1x18x18x256xf32, #tpu.memory_space<vmem>>, %arg7: memref<128x1152xf32, #tpu.memory_space<vmem>>, %arg8: memref<128x1152xf32, #tpu.memory_space<vmem>>) attributes {dimension_semantics = [#tpu.dimension_semantics<parallel>, #tpu.dimension_semantics<parallel>], iteration_bounds = array<i64: 1, 2>, scalar_prefetch = 0 : i64, scratch_operands = 2 : i64, tpu.core_type = #tpu.core_type<tc>, window_params = [{transform_indices = @transform_0, window_bounds = array<i64: 1, 18, 18, 128>}, {transform_indices = @transform_1, window_bounds = array<i64: 1152, 256>}, {transform_indices = @transform_2, window_bounds = array<i64: 1, 256>}, {transform_indices = @transform_3, window_bounds = array<i64: 1, 256>}, {transform_indices = @transform_4, window_bounds = array<i64: 1, 18, 18, 256>}]} {
    %c0 = arith.constant 0 : index
    %c0_0 = arith.constant 0 : index
    %0 = vector.load %arg4[%c0, %c0_0] : memref<1x256xf32, #tpu.memory_space<vmem>>, vector<1x256xf32>
    %c0_1 = arith.constant 0 : index
    %c0_2 = arith.constant 0 : index
    %1 = vector.load %arg5[%c0_1, %c0_2] : memref<1x256xf32, #tpu.memory_space<vmem>>, vector<1x256xf32>
    %cst = arith.constant 0.000000e+00 : f32
    %2 = vector.broadcast %cst : f32 to vector<1x1x18x256xf32>
    %cst_3 = arith.constant 0.000000e+00 : f32
    %3 = vector.broadcast %cst_3 : f32 to vector<1x18x1x256xf32>
    %c0_4 = arith.constant 0 : index
    %c0_5 = arith.constant 0 : index
    %c0_6 = arith.constant 0 : index
    %c0_7 = arith.constant 0 : index
    %4 = vector.load %arg6[%c0_4, %c0_5, %c0_6, %c0_7] : memref<1x18x18x256xf32, #tpu.memory_space<vmem>>, vector<1x1x18x256xf32>
    tpu.vector_store %arg6[%c0_4, %c0_5, %c0_6, %c0_7], %2 {strides = array<i32>} : memref<1x18x18x256xf32, #tpu.memory_space<vmem>>, vector<1x1x18x256xf32>,
    %c0_8 = arith.constant 0 : index
    %c17 = arith.constant 17 : index
    %c0_9 = arith.constant 0 : index
    %c0_10 = arith.constant 0 : index
    %5 = vector.load %arg6[%c0_8, %c17, %c0_9, %c0_10] : memref<1x18x18x256xf32, #tpu.memory_space<vmem>>, vector<1x1x18x256xf32>
    tpu.vector_store %arg6[%c0_8, %c17, %c0_9, %c0_10], %2 {strides = array<i32>} : memref<1x18x18x256xf32, #tpu.memory_space<vmem>>, vector<1x1x18x256xf32>,
    %c0_11 = arith.constant 0 : index
    %c0_12 = arith.constant 0 : index
    %c0_13 = arith.constant 0 : index
    %c0_14 = arith.constant 0 : index
    %6 = vector.load %arg6[%c0_11, %c0_12, %c0_13, %c0_14] : memref<1x18x18x256xf32, #tpu.memory_space<vmem>>, vector<1x18x1x256xf32>
    tpu.vector_store %arg6[%c0_11, %c0_12, %c0_13, %c0_14], %3 {strides = array<i32>} : memref<1x18x18x256xf32, #tpu.memory_space<vmem>>, vector<1x18x1x256xf32>,
    %c0_15 = arith.constant 0 : index
    %c0_16 = arith.constant 0 : index
    %c17_17 = arith.constant 17 : index
    %c0_18 = arith.constant 0 : index
    %7 = vector.load %arg6[%c0_15, %c0_16, %c17_17, %c0_18] : memref<1x18x18x256xf32, #tpu.memory_space<vmem>>, vector<1x18x1x256xf32>
    tpu.vector_store %arg6[%c0_15, %c0_16, %c17_17, %c0_18], %3 {strides = array<i32>} : memref<1x18x18x256xf32, #tpu.memory_space<vmem>>, vector<1x18x1x256xf32>,
    %c0_19 = arith.constant 0 : index
    %c0_20 = arith.constant 0 : index
    %c0_21 = arith.constant 0 : index
    %c0_22 = arith.constant 0 : index
    %8 = vector.load %arg2[%c0_19, %c0_20, %c0_21, %c0_22] : memref<1x18x18x128xf32, #tpu.memory_space<vmem>>, vector<1x8x16x128xf32>
    %9 = vector.shape_cast %8 : vector<1x8x16x128xf32> to vector<8x16x128xf32>
    %10 = vector.shape_cast %9 : vector<8x16x128xf32> to vector<128x128xf32>
    %c0_23 = arith.constant 0 : index
    %c0_24 = arith.constant 0 : index
    %11 = vector.load %arg7[%c0_23, %c0_24] : memref<128x1152xf32, #tpu.memory_space<vmem>>, vector<128x128xf32>
    tpu.vector_store %arg7[%c0_23, %c0_24], %10 {strides = array<i32>} : memref<128x1152xf32, #tpu.memory_space<vmem>>, vector<128x128xf32>,
    %c0_25 = arith.constant 0 : index
    %c0_26 = arith.constant 0 : index
    %c1 = arith.constant 1 : index
    %c0_27 = arith.constant 0 : index
    %12 = vector.load %arg2[%c0_25, %c0_26, %c1, %c0_27] : memref<1x18x18x128xf32, #tpu.memory_space<vmem>>, vector<1x8x16x128xf32>
    %13 = vector.shape_cast %12 : vector<1x8x16x128xf32> to vector<8x16x128xf32>
    %14 = vector.shape_cast %13 : vector<8x16x128xf32> to vector<128x128xf32>
    %c0_28 = arith.constant 0 : index
    %c128 = arith.constant 128 : index
    %15 = vector.load %arg7[%c0_28, %c128] : memref<128x1152xf32, #tpu.memory_space<vmem>>, vector<128x128xf32>
    tpu.vector_store %arg7[%c0_28, %c128], %14 {strides = array<i32>} : memref<128x1152xf32, #tpu.memory_space<vmem>>, vector<128x128xf32>,
    %c0_29 = arith.constant 0 : index
    %c0_30 = arith.constant 0 : index
    %c2 = arith.constant 2 : index
    %c0_31 = arith.constant 0 : index
    %16 = vector.load %arg2[%c0_29, %c0_30, %c2, %c0_31] : memref<1x18x18x128xf32, #tpu.memory_space<vmem>>, vector<1x8x16x128xf32>
    %17 = vector.shape_cast %16 : vector<1x8x16x128xf32> to vector<8x16x128xf32>
    %18 = vector.shape_cast %17 : vector<8x16x128xf32> to vector<128x128xf32>
    %c0_32 = arith.constant 0 : index
    %c256 = arith.constant 256 : index
    %19 = vector.load %arg7[%c0_32, %c256] : memref<128x1152xf32, #tpu.memory_space<vmem>>, vector<128x128xf32>
    tpu.vector_store %arg7[%c0_32, %c256], %18 {strides = array<i32>} : memref<128x1152xf32, #tpu.memory_space<vmem>>, vector<128x128xf32>,
    %c0_33 = arith.constant 0 : index
    %c1_34 = arith.constant 1 : index
    %c0_35 = arith.constant 0 : index
    %c0_36 = arith.constant 0 : index
    %20 = vector.load %arg2[%c0_33, %c1_34, %c0_35, %c0_36] : memref<1x18x18x128xf32, #tpu.memory_space<vmem>>, vector<1x8x16x128xf32>
    %21 = vector.shape_cast %20 : vector<1x8x16x128xf32> to vector<8x16x128xf32>
    %22 = vector.shape_cast %21 : vector<8x16x128xf32> to vector<128x128xf32>
    %c0_37 = arith.constant 0 : index
    %c384 = arith.constant 384 : index
    %23 = vector.load %arg7[%c0_37, %c384] : memref<128x1152xf32, #tpu.memory_space<vmem>>, vector<128x128xf32>
    tpu.vector_store %arg7[%c0_37, %c384], %22 {strides = array<i32>} : memref<128x1152xf32, #tpu.memory_space<vmem>>, vector<128x128xf32>,
    %c0_38 = arith.constant 0 : index
    %c1_39 = arith.constant 1 : index
    %c1_40 = arith.constant 1 : index
    %c0_41 = arith.constant 0 : index
    %24 = vector.load %arg2[%c0_38, %c1_39, %c1_40, %c0_41] : memref<1x18x18x128xf32, #tpu.memory_space<vmem>>, vector<1x8x16x128xf32>
    %25 = vector.shape_cast %24 : vector<1x8x16x128xf32> to vector<8x16x128xf32>
    %26 = vector.shape_cast %25 : vector<8x16x128xf32> to vector<128x128xf32>
    %c0_42 = arith.constant 0 : index
    %c512 = arith.constant 512 : index
    %27 = vector.load %arg7[%c0_42, %c512] : memref<128x1152xf32, #tpu.memory_space<vmem>>, vector<128x128xf32>
    tpu.vector_store %arg7[%c0_42, %c512], %26 {strides = array<i32>} : memref<128x1152xf32, #tpu.memory_space<vmem>>, vector<128x128xf32>,
    %c0_43 = arith.constant 0 : index
    %c1_44 = arith.constant 1 : index
    %c2_45 = arith.constant 2 : index
    %c0_46 = arith.constant 0 : index
    %28 = vector.load %arg2[%c0_43, %c1_44, %c2_45, %c0_46] : memref<1x18x18x128xf32, #tpu.memory_space<vmem>>, vector<1x8x16x128xf32>
    %29 = vector.shape_cast %28 : vector<1x8x16x128xf32> to vector<8x16x128xf32>
    %30 = vector.shape_cast %29 : vector<8x16x128xf32> to vector<128x128xf32>
    %c0_47 = arith.constant 0 : index
    %c640 = arith.constant 640 : index
    %31 = vector.load %arg7[%c0_47, %c640] : memref<128x1152xf32, #tpu.memory_space<vmem>>, vector<128x128xf32>
    tpu.vector_store %arg7[%c0_47, %c640], %30 {strides = array<i32>} : memref<128x1152xf32, #tpu.memory_space<vmem>>, vector<128x128xf32>,
    %c0_48 = arith.constant 0 : index
    %c2_49 = arith.constant 2 : index
    %c0_50 = arith.constant 0 : index
    %c0_51 = arith.constant 0 : index
    %32 = vector.load %arg2[%c0_48, %c2_49, %c0_50, %c0_51] : memref<1x18x18x128xf32, #tpu.memory_space<vmem>>, vector<1x8x16x128xf32>
    %33 = vector.shape_cast %32 : vector<1x8x16x128xf32> to vector<8x16x128xf32>
    %34 = vector.shape_cast %33 : vector<8x16x128xf32> to vector<128x128xf32>
    %c0_52 = arith.constant 0 : index
    %c768 = arith.constant 768 : index
    %35 = vector.load %arg7[%c0_52, %c768] : memref<128x1152xf32, #tpu.memory_space<vmem>>, vector<128x128xf32>
    tpu.vector_store %arg7[%c0_52, %c768], %34 {strides = array<i32>} : memref<128x1152xf32, #tpu.memory_space<vmem>>, vector<128x128xf32>,
    %c0_53 = arith.constant 0 : index
    %c2_54 = arith.constant 2 : index
    %c1_55 = arith.constant 1 : index
    %c0_56 = arith.constant 0 : index
    %36 = vector.load %arg2[%c0_53, %c2_54, %c1_55, %c0_56] : memref<1x18x18x128xf32, #tpu.memory_space<vmem>>, vector<1x8x16x128xf32>
    %37 = vector.shape_cast %36 : vector<1x8x16x128xf32> to vector<8x16x128xf32>
    %38 = vector.shape_cast %37 : vector<8x16x128xf32> to vector<128x128xf32>
    %c0_57 = arith.constant 0 : index
    %c896 = arith.constant 896 : index
    %39 = vector.load %arg7[%c0_57, %c896] : memref<128x1152xf32, #tpu.memory_space<vmem>>, vector<128x128xf32>
    tpu.vector_store %arg7[%c0_57, %c896], %38 {strides = array<i32>} : memref<128x1152xf32, #tpu.memory_space<vmem>>, vector<128x128xf32>,
    %c0_58 = arith.constant 0 : index
    %c2_59 = arith.constant 2 : index
    %c2_60 = arith.constant 2 : index
    %c0_61 = arith.constant 0 : index
    %40 = vector.load %arg2[%c0_58, %c2_59, %c2_60, %c0_61] : memref<1x18x18x128xf32, #tpu.memory_space<vmem>>, vector<1x8x16x128xf32>
    %41 = vector.shape_cast %40 : vector<1x8x16x128xf32> to vector<8x16x128xf32>
    %42 = vector.shape_cast %41 : vector<8x16x128xf32> to vector<128x128xf32>
    %c0_62 = arith.constant 0 : index
    %c1024 = arith.constant 1024 : index
    %43 = vector.load %arg7[%c0_62, %c1024] : memref<128x1152xf32, #tpu.memory_space<vmem>>, vector<128x128xf32>
    tpu.vector_store %arg7[%c0_62, %c1024], %42 {strides = array<i32>} : memref<128x1152xf32, #tpu.memory_space<vmem>>, vector<128x128xf32>,
    %c0_63 = arith.constant 0 : index
    %c0_64 = arith.constant 0 : index
    %44 = vector.load %arg7[%c0_63, %c0_64] : memref<128x1152xf32, #tpu.memory_space<vmem>>, vector<128x1152xf32>
    %c0_65 = arith.constant 0 : index
    %c0_66 = arith.constant 0 : index
    %45 = vector.load %arg3[%c0_65, %c0_66] : memref<1152x256xf32, #tpu.memory_space<vmem>>, vector<1152x256xf32>
    %cst_67 = arith.constant dense<0.000000e+00> : vector<128x256xf32>
    %46 = tpu.matmul %44, %45, %cst_67 {dimension_numbers = #tpu.dot_dimension_numbers<[1], [0], [0], [1], [0, 0, 1, 1], [], []>} : vector<128x1152xf32>, vector<1152x256xf32>, vector<128x256xf32> -> vector<128x256xf32>
    %47 = vector.broadcast %0 : vector<1x256xf32> to vector<128x256xf32>
    %48 = arith.mulf %46, %47 : vector<128x256xf32>
    %49 = vector.broadcast %1 : vector<1x256xf32> to vector<128x256xf32>
    %50 = arith.addf %48, %49 : vector<128x256xf32>
    %cst_68 = arith.constant 0.000000e+00 : f32
    %51 = vector.broadcast %cst_68 : f32 to vector<128x256xf32>
    %52 = arith.maximumf %50, %51 : vector<128x256xf32>
    %53 = vector.shape_cast %52 : vector<128x256xf32> to vector<1x8x16x256xf32>
    %c0_69 = arith.constant 0 : index
    %c1_70 = arith.constant 1 : index
    %c1_71 = arith.constant 1 : index
    %c0_72 = arith.constant 0 : index
    %54 = vector.load %arg6[%c0_69, %c1_70, %c1_71, %c0_72] : memref<1x18x18x256xf32, #tpu.memory_space<vmem>>, vector<1x8x16x256xf32>
    tpu.vector_store %arg6[%c0_69, %c1_70, %c1_71, %c0_72], %53 {strides = array<i32>} : memref<1x18x18x256xf32, #tpu.memory_space<vmem>>, vector<1x8x16x256xf32>,
    %c0_73 = arith.constant 0 : index
    %c8 = arith.constant 8 : index
    %c0_74 = arith.constant 0 : index
    %c0_75 = arith.constant 0 : index
    %55 = vector.load %arg2[%c0_73, %c8, %c0_74, %c0_75] : memref<1x18x18x128xf32, #tpu.memory_space<vmem>>, vector<1x8x16x128xf32>
    %56 = vector.shape_cast %55 : vector<1x8x16x128xf32> to vector<8x16x128xf32>
    %57 = vector.shape_cast %56 : vector<8x16x128xf32> to vector<128x128xf32>
    %c0_76 = arith.constant 0 : index
    %c0_77 = arith.constant 0 : index
    %58 = vector.load %arg8[%c0_76, %c0_77] : memref<128x1152xf32, #tpu.memory_space<vmem>>, vector<128x128xf32>
    tpu.vector_store %arg8[%c0_76, %c0_77], %57 {strides = array<i32>} : memref<128x1152xf32, #tpu.memory_space<vmem>>, vector<128x128xf32>,
    %c0_78 = arith.constant 0 : index
    %c8_79 = arith.constant 8 : index
    %c1_80 = arith.constant 1 : index
    %c0_81 = arith.constant 0 : index
    %59 = vector.load %arg2[%c0_78, %c8_79, %c1_80, %c0_81] : memref<1x18x18x128xf32, #tpu.memory_space<vmem>>, vector<1x8x16x128xf32>
    %60 = vector.shape_cast %59 : vector<1x8x16x128xf32> to vector<8x16x128xf32>
    %61 = vector.shape_cast %60 : vector<8x16x128xf32> to vector<128x128xf32>
    %c0_82 = arith.constant 0 : index
    %c128_83 = arith.constant 128 : index
    %62 = vector.load %arg8[%c0_82, %c128_83] : memref<128x1152xf32, #tpu.memory_space<vmem>>, vector<128x128xf32>
    tpu.vector_store %arg8[%c0_82, %c128_83], %61 {strides = array<i32>} : memref<128x1152xf32, #tpu.memory_space<vmem>>, vector<128x128xf32>,
    %c0_84 = arith.constant 0 : index
    %c8_85 = arith.constant 8 : index
    %c2_86 = arith.constant 2 : index
    %c0_87 = arith.constant 0 : index
    %63 = vector.load %arg2[%c0_84, %c8_85, %c2_86, %c0_87] : memref<1x18x18x128xf32, #tpu.memory_space<vmem>>, vector<1x8x16x128xf32>
    %64 = vector.shape_cast %63 : vector<1x8x16x128xf32> to vector<8x16x128xf32>
    %65 = vector.shape_cast %64 : vector<8x16x128xf32> to vector<128x128xf32>
    %c0_88 = arith.constant 0 : index
    %c256_89 = arith.constant 256 : index
    %66 = vector.load %arg8[%c0_88, %c256_89] : memref<128x1152xf32, #tpu.memory_space<vmem>>, vector<128x128xf32>
    tpu.vector_store %arg8[%c0_88, %c256_89], %65 {strides = array<i32>} : memref<128x1152xf32, #tpu.memory_space<vmem>>, vector<128x128xf32>,
    %c0_90 = arith.constant 0 : index
    %c9 = arith.constant 9 : index
    %c0_91 = arith.constant 0 : index
    %c0_92 = arith.constant 0 : index
    %67 = vector.load %arg2[%c0_90, %c9, %c0_91, %c0_92] : memref<1x18x18x128xf32, #tpu.memory_space<vmem>>, vector<1x8x16x128xf32>
    %68 = vector.shape_cast %67 : vector<1x8x16x128xf32> to vector<8x16x128xf32>
    %69 = vector.shape_cast %68 : vector<8x16x128xf32> to vector<128x128xf32>
    %c0_93 = arith.constant 0 : index
    %c384_94 = arith.constant 384 : index
    %70 = vector.load %arg8[%c0_93, %c384_94] : memref<128x1152xf32, #tpu.memory_space<vmem>>, vector<128x128xf32>
    tpu.vector_store %arg8[%c0_93, %c384_94], %69 {strides = array<i32>} : memref<128x1152xf32, #tpu.memory_space<vmem>>, vector<128x128xf32>,
    %c0_95 = arith.constant 0 : index
    %c9_96 = arith.constant 9 : index
    %c1_97 = arith.constant 1 : index
    %c0_98 = arith.constant 0 : index
    %71 = vector.load %arg2[%c0_95, %c9_96, %c1_97, %c0_98] : memref<1x18x18x128xf32, #tpu.memory_space<vmem>>, vector<1x8x16x128xf32>
    %72 = vector.shape_cast %71 : vector<1x8x16x128xf32> to vector<8x16x128xf32>
    %73 = vector.shape_cast %72 : vector<8x16x128xf32> to vector<128x128xf32>
    %c0_99 = arith.constant 0 : index
    %c512_100 = arith.constant 512 : index
    %74 = vector.load %arg8[%c0_99, %c512_100] : memref<128x1152xf32, #tpu.memory_space<vmem>>, vector<128x128xf32>
    tpu.vector_store %arg8[%c0_99, %c512_100], %73 {strides = array<i32>} : memref<128x1152xf32, #tpu.memory_space<vmem>>, vector<128x128xf32>,
    %c0_101 = arith.constant 0 : index
    %c9_102 = arith.constant 9 : index
    %c2_103 = arith.constant 2 : index
    %c0_104 = arith.constant 0 : index
    %75 = vector.load %arg2[%c0_101, %c9_102, %c2_103, %c0_104] : memref<1x18x18x128xf32, #tpu.memory_space<vmem>>, vector<1x8x16x128xf32>
    %76 = vector.shape_cast %75 : vector<1x8x16x128xf32> to vector<8x16x128xf32>
    %77 = vector.shape_cast %76 : vector<8x16x128xf32> to vector<128x128xf32>
    %c0_105 = arith.constant 0 : index
    %c640_106 = arith.constant 640 : index
    %78 = vector.load %arg8[%c0_105, %c640_106] : memref<128x1152xf32, #tpu.memory_space<vmem>>, vector<128x128xf32>
    tpu.vector_store %arg8[%c0_105, %c640_106], %77 {strides = array<i32>} : memref<128x1152xf32, #tpu.memory_space<vmem>>, vector<128x128xf32>,
    %c0_107 = arith.constant 0 : index
    %c10 = arith.constant 10 : index
    %c0_108 = arith.constant 0 : index
    %c0_109 = arith.constant 0 : index
    %79 = vector.load %arg2[%c0_107, %c10, %c0_108, %c0_109] : memref<1x18x18x128xf32, #tpu.memory_space<vmem>>, vector<1x8x16x128xf32>
    %80 = vector.shape_cast %79 : vector<1x8x16x128xf32> to vector<8x16x128xf32>
    %81 = vector.shape_cast %80 : vector<8x16x128xf32> to vector<128x128xf32>
    %c0_110 = arith.constant 0 : index
    %c768_111 = arith.constant 768 : index
    %82 = vector.load %arg8[%c0_110, %c768_111] : memref<128x1152xf32, #tpu.memory_space<vmem>>, vector<128x128xf32>
    tpu.vector_store %arg8[%c0_110, %c768_111], %81 {strides = array<i32>} : memref<128x1152xf32, #tpu.memory_space<vmem>>, vector<128x128xf32>,
    %c0_112 = arith.constant 0 : index
    %c10_113 = arith.constant 10 : index
    %c1_114 = arith.constant 1 : index
    %c0_115 = arith.constant 0 : index
    %83 = vector.load %arg2[%c0_112, %c10_113, %c1_114, %c0_115] : memref<1x18x18x128xf32, #tpu.memory_space<vmem>>, vector<1x8x16x128xf32>
    %84 = vector.shape_cast %83 : vector<1x8x16x128xf32> to vector<8x16x128xf32>
    %85 = vector.shape_cast %84 : vector<8x16x128xf32> to vector<128x128xf32>
    %c0_116 = arith.constant 0 : index
    %c896_117 = arith.constant 896 : index
    %86 = vector.load %arg8[%c0_116, %c896_117] : memref<128x1152xf32, #tpu.memory_space<vmem>>, vector<128x128xf32>
    tpu.vector_store %arg8[%c0_116, %c896_117], %85 {strides = array<i32>} : memref<128x1152xf32, #tpu.memory_space<vmem>>, vector<128x128xf32>,
    %c0_118 = arith.constant 0 : index
    %c10_119 = arith.constant 10 : index
    %c2_120 = arith.constant 2 : index
    %c0_121 = arith.constant 0 : index
    %87 = vector.load %arg2[%c0_118, %c10_119, %c2_120, %c0_121] : memref<1x18x18x128xf32, #tpu.memory_space<vmem>>, vector<1x8x16x128xf32>
    %88 = vector.shape_cast %87 : vector<1x8x16x128xf32> to vector<8x16x128xf32>
    %89 = vector.shape_cast %88 : vector<8x16x128xf32> to vector<128x128xf32>
    %c0_122 = arith.constant 0 : index
    %c1024_123 = arith.constant 1024 : index
    %90 = vector.load %arg8[%c0_122, %c1024_123] : memref<128x1152xf32, #tpu.memory_space<vmem>>, vector<128x128xf32>
    tpu.vector_store %arg8[%c0_122, %c1024_123], %89 {strides = array<i32>} : memref<128x1152xf32, #tpu.memory_space<vmem>>, vector<128x128xf32>,
    %c0_124 = arith.constant 0 : index
    %c0_125 = arith.constant 0 : index
    %91 = vector.load %arg8[%c0_124, %c0_125] : memref<128x1152xf32, #tpu.memory_space<vmem>>, vector<128x1152xf32>
    %c0_126 = arith.constant 0 : index
    %c0_127 = arith.constant 0 : index
    %92 = vector.load %arg3[%c0_126, %c0_127] : memref<1152x256xf32, #tpu.memory_space<vmem>>, vector<1152x256xf32>
    %cst_128 = arith.constant dense<0.000000e+00> : vector<128x256xf32>
    %93 = tpu.matmul %91, %92, %cst_128 {dimension_numbers = #tpu.dot_dimension_numbers<[1], [0], [0], [1], [0, 0, 1, 1], [], []>} : vector<128x1152xf32>, vector<1152x256xf32>, vector<128x256xf32> -> vector<128x256xf32>
    %94 = vector.broadcast %0 : vector<1x256xf32> to vector<128x256xf32>
    %95 = arith.mulf %93, %94 : vector<128x256xf32>
    %96 = vector.broadcast %1 : vector<1x256xf32> to vector<128x256xf32>
    %97 = arith.addf %95, %96 : vector<128x256xf32>
    %cst_129 = arith.constant 0.000000e+00 : f32
    %98 = vector.broadcast %cst_129 : f32 to vector<128x256xf32>
    %99 = arith.maximumf %97, %98 : vector<128x256xf32>
    %100 = vector.shape_cast %99 : vector<128x256xf32> to vector<1x8x16x256xf32>
    %c0_130 = arith.constant 0 : index
    %c9_131 = arith.constant 9 : index
    %c1_132 = arith.constant 1 : index
    %c0_133 = arith.constant 0 : index
    %101 = vector.load %arg6[%c0_130, %c9_131, %c1_132, %c0_133] : memref<1x18x18x256xf32, #tpu.memory_space<vmem>>, vector<1x8x16x256xf32>
    tpu.vector_store %arg6[%c0_130, %c9_131, %c1_132, %c0_133], %100 {strides = array<i32>} : memref<1x18x18x256xf32, #tpu.memory_space<vmem>>, vector<1x8x16x256xf32>,
    return
  }
  func.func @transform_0(%arg0: i32, %arg1: i32) -> (i32, i32, i32, i32) {
    %c0_i32 = arith.constant 0 : i32
    %c0_i32_0 = arith.constant 0 : i32
    %c0_i32_1 = arith.constant 0 : i32
    %c0_i32_2 = arith.constant 0 : i32
    return %arg1, %c0_i32, %c0_i32_0, %c0_i32_1 : i32, i32, i32, i32
  }
  func.func @transform_1(%arg0: i32, %arg1: i32) -> (i32, i32) {
    %c0_i32 = arith.constant 0 : i32
    %c0_i32_0 = arith.constant 0 : i32
    return %c0_i32, %arg0 : i32, i32
  }
  func.func @transform_2(%arg0: i32, %arg1: i32) -> (i32, i32) {
    %c0_i32 = arith.constant 0 : i32
    %c0_i32_0 = arith.constant 0 : i32
    return %c0_i32, %arg0 : i32, i32
  }
  func.func @transform_3(%arg0: i32, %arg1: i32) -> (i32, i32) {
    %c0_i32 = arith.constant 0 : i32
    %c0_i32_0 = arith.constant 0 : i32
    return %c0_i32, %arg0 : i32, i32
  }
  func.func @transform_4(%arg0: i32, %arg1: i32) -> (i32, i32, i32, i32) {
    %c0_i32 = arith.constant 0 : i32
    %c0_i32_0 = arith.constant 0 : i32
    %c0_i32_1 = arith.constant 0 : i32
    return %arg1, %c0_i32, %c0_i32_0, %arg0 : i32, i32, i32, i32
  }
}

</mosaic_0001>

<llo_original>
// kernel: tpu_custom_call.1
$region0: #{tpu_custom_call.1}
  #allocation0 [shape = 'u32[]', space=smem, size = 0x4, offset = 0x4, fixed_abs, tag = 'smem constant byte address 0x4 - core index']
  #allocation1 [shape = 'u32[144,128]{1,0:T(1,128)}', space=vmem, size = 0x12000, scoped, tag = 'internal scratch']
  #allocation2 [shape = 'f32[128,1152]{1,0:T(8,128)}', space=vmem, size = 0x90000, scoped, tag = 'scratch operand']
  #allocation3 [shape = 'f32[128,1152]{1,0:T(8,128)}', space=vmem, size = 0x90000, scoped, tag = 'scratch operand']
  %s0 = inlined_call_operand.vmem [shape: f32[2,18,18,128], index: 0, kind: input, shape index: {}]
  %s1 = inlined_call_operand.hbm [shape: f32[1152,256], index: 1, kind: input, shape index: {}]
  %s2 = inlined_call_operand.hbm [shape: f32[1,256], index: 2, kind: input, shape index: {}]
  %s3 = inlined_call_operand.hbm [shape: f32[1,256], index: 3, kind: input, shape index: {}]
  %s4 = inlined_call_operand.vmem [shape: f32[2,18,18,256], index: 4, kind: output, shape index: {}]
  %s5 = sld [smem:[#allocation0]]
  $region61: #{tpu_custom_call.1} parent=0
    _
  %s7 = ssub.s32 1, %s5
  %s8 = scalar_select 0, %s7, %s5
  $region1: #{tpu_custom_call.1} parent=0
    #allocation4 [shape = 'u8[1179648]{0}', space=vmem, size = 0x120000, scoped, tag = 'input window, operand 1, single buffered']
    #allocation5 [shape = 's32[2]{0}', space=sflag, size = 0x8, scoped, tag = 'scoped memory for tpu_custom_call.1']
    #allocation6 [shape = 'u8[1024]{0}', space=vmem, size = 0x400, scoped, tag = 'input window, operand 2, single buffered']
    #allocation7 [shape = 's32[1]{0}', space=sflag, size = 0x4, scoped, tag = 'scoped memory for tpu_custom_call.1']
    #allocation8 [shape = 'u8[1024]{0}', space=vmem, size = 0x400, scoped, tag = 'input window, operand 3, single buffered']
    %9 = vsyncpa [#allocation5], 0
    %10 = vsyncpa [#allocation7], 0
    loop: start=0, step=1, limit=4
    $region2: #{tpu_custom_call.1} parent=1 // loop_pre_header
      _
    $region3: #{tpu_custom_call.1} parent=1 // loop_header
      %s12 = sphi 0, %s16
      %p13 = scmp.ge.s32.totalorder %s12, 4
      %s19 = sphi 0, %s31
      %s20 = sphi 0, %s27
      %s21 = sphi 0, %s19
      %s22 = sphi 0, %s20
      %s23 = sphi 0, %s21
      %s24 = sphi 0, %s22
      %s34 = sphi 0, %s36
      %s37 = sphi 0, %s34
      %s38 = sphi 0, %s37
      %s54 = sphi 0, %s38
      %s60 = sphi 0, %s62
      %s63 = sphi 0, %s60
      %s64 = sphi 0, %s63
      %s80 = sphi 0, %s64
      %s86 = sphi 0, %s88
      %s89 = sphi 0, %s86
      %s90 = sphi 0, %s89
      %s106 = sphi 0, %s90
      %s112 = sphi 0, %s114
      %s115 = sphi 0, %s112
      %s116 = sphi 0, %s115
      %s132 = sphi 0, %s116
      %s140 = sphi 0, %s142
      %s143 = sphi 0, %s140
      %s144 = sphi 0, %s143
      %s160 = sphi 0, %s144
    $region4: #{tpu_custom_call.1} parent=1 // loop_header_branch
      %15 = sbr.rel (%p13) target = $region8
    $region5: #{tpu_custom_call.1} parent=1 // loop_body
      %s17 = ssub.s32 %s12, 1
      %s18 = ssub.s32 %s12, 2
      %s25 = sadd.s32 1, %s20
      %p26 = scmp.ge.s32.totalorder %s25, 2
      %s27 = scalar_select %p26, 0, %s25
      %s28 = sadd.s32 1, %s19
      %s29 = scalar_select %p26, %s28, %s19
      %p30 = scmp.ge.s32.totalorder %s29, 1
      %s31 = scalar_select %p30, 0, %s29
      %s32 = ssub.s32 %s20, %s27
      %p33 = scmp.eq.s32.totalorder %s32, 0
      %s35 = sadd.s32 %s34, 1
      %s36 = scalar_select %p33, %s34, %s35
      %p39 = pneg %p33
      %p40 = scmp.eq.s32.totalorder %s12, 1
      %p41 = por %p39, %p40
      %p42 = scmp.ne.s32.totalorder %s34, %s37
      %p43 = scmp.eq.s32.totalorder %s12, 0
      %p44 = por %p42, %p43
      %p45 = scmp.ne.s32.totalorder %s34, %s37
      %p46 = scmp.eq.s32.totalorder %s17, 1
      %p47 = por %p45, %p46
      %p48 = scmp.ne.s32.totalorder %s37, %s38
      %p49 = scmp.eq.s32.totalorder %s17, 0
      %p50 = por %p48, %p49
      %p51 = scmp.ne.s32.totalorder %s37, %s38
      %p52 = scmp.eq.s32.totalorder %s18, 1
      %p53 = por %p51, %p52
      %p55 = scmp.ne.s32.totalorder %s38, %s54
      %p56 = scmp.eq.s32.totalorder %s18, 0
      %p57 = por %p55, %p56
      %s58 = ssub.s32 %s19, %s31
      %p59 = scmp.eq.s32.totalorder %s58, 0
      %s61 = sadd.s32 %s60, 1
      %s62 = scalar_select %p59, %s60, %s61
      %p65 = pneg %p59
      %p66 = scmp.eq.s32.totalorder %s12, 1
      %p67 = por %p65, %p66
      %p68 = scmp.ne.s32.totalorder %s60, %s63
      %p69 = scmp.eq.s32.totalorder %s12, 0
      %p70 = por %p68, %p69
      %p71 = scmp.ne.s32.totalorder %s60, %s63
      %p72 = scmp.eq.s32.totalorder %s17, 1
      %p73 = por %p71, %p72
      %p74 = scmp.ne.s32.totalorder %s63, %s64
      %p75 = scmp.eq.s32.totalorder %s17, 0
      %p76 = por %p74, %p75
      %p77 = scmp.ne.s32.totalorder %s63, %s64
      %p78 = scmp.eq.s32.totalorder %s18, 1
      %p79 = por %p77, %p78
      %p81 = scmp.ne.s32.totalorder %s64, %s80
      %p82 = scmp.eq.s32.totalorder %s18, 0
      %p83 = por %p81, %p82
      %s84 = ssub.s32 %s19, %s31
      %p85 = scmp.eq.s32.totalorder %s84, 0
      %s87 = sadd.s32 %s86, 1
      %s88 = scalar_select %p85, %s86, %s87
      %p91 = pneg %p85
      %p92 = scmp.eq.s32.totalorder %s12, 1
      %p93 = por %p91, %p92
      %p94 = scmp.ne.s32.totalorder %s86, %s89
      %p95 = scmp.eq.s32.totalorder %s12, 0
      %p96 = por %p94, %p95
      %p97 = scmp.ne.s32.totalorder %s86, %s89
      %p98 = scmp.eq.s32.totalorder %s17, 1
      %p99 = por %p97, %p98
      %p100 = scmp.ne.s32.totalorder %s89, %s90
      %p101 = scmp.eq.s32.totalorder %s17, 0
      %p102 = por %p100, %p101
      %p103 = scmp.ne.s32.totalorder %s89, %s90
      %p104 = scmp.eq.s32.totalorder %s18, 1
      %p105 = por %p103, %p104
      %p107 = scmp.ne.s32.totalorder %s90, %s106
      %p108 = scmp.eq.s32.totalorder %s18, 0
      %p109 = por %p107, %p108
      %s110 = ssub.s32 %s19, %s31
      %p111 = scmp.eq.s32.totalorder %s110, 0
      %s113 = sadd.s32 %s112, 1
      %s114 = scalar_select %p111, %s112, %s113
      %p117 = pneg %p111
      %p118 = scmp.eq.s32.totalorder %s12, 1
      %p119 = por %p117, %p118
      %p120 = scmp.ne.s32.totalorder %s112, %s115
      %p121 = scmp.eq.s32.totalorder %s12, 0
      %p122 = por %p120, %p121
      %p123 = scmp.ne.s32.totalorder %s112, %s115
      %p124 = scmp.eq.s32.totalorder %s17, 1
      %p125 = por %p123, %p124
      %p126 = scmp.ne.s32.totalorder %s115, %s116
      %p127 = scmp.eq.s32.totalorder %s17, 0
      %p128 = por %p126, %p127
      %p129 = scmp.ne.s32.totalorder %s115, %s116
      %p130 = scmp.eq.s32.totalorder %s18, 1
      %p131 = por %p129, %p130
      %p133 = scmp.ne.s32.totalorder %s116, %s132
      %p134 = scmp.eq.s32.totalorder %s18, 0
      %p135 = por %p133, %p134
      %s136 = ssub.s32 %s20, %s27
      %s137 = ssub.s32 %s19, %s31
      %s138 = sor.u32 %s136, %s137
      %p139 = scmp.eq.s32.totalorder %s138, 0
      %s141 = sadd.s32 %s140, 1
      %s142 = scalar_select %p139, %s140, %s141
      %p145 = pneg %p139
      %p146 = scmp.eq.s32.totalorder %s12, 1
      %p147 = por %p145, %p146
      %p148 = scmp.ne.s32.totalorder %s140, %s143
      %p149 = scmp.eq.s32.totalorder %s12, 0
      %p150 = por %p148, %p149
      %p151 = scmp.ne.s32.totalorder %s140, %s143
      %p152 = scmp.eq.s32.totalorder %s17, 1
      %p153 = por %p151, %p152
      %p154 = scmp.ne.s32.totalorder %s143, %s144
      %p155 = scmp.eq.s32.totalorder %s17, 0
      %p156 = por %p154, %p155
      %p157 = scmp.ne.s32.totalorder %s143, %s144
      %p158 = scmp.eq.s32.totalorder %s18, 1
      %p159 = por %p157, %p158
      %p161 = scmp.ne.s32.totalorder %s144, %s160
      %p162 = scmp.eq.s32.totalorder %s18, 0
      %p163 = por %p161, %p162
      %p164 = scmp.le.s32.totalorder 1, %s12
      %p165 = scmp.lt.s32.totalorder %s12, 3
      %p166 = pnand %p164, %p165
      %p167 = pneg %p166
      // Predicated region
      $region9: #{tpu_custom_call.1} parent=5 // pred_check
        _
      $region10: #{tpu_custom_call.1} parent=5 // pred_check_branch
        %169 = sbr.rel (%p166) target = $region12
      $region11: #{tpu_custom_call.1} parent=5 // pred_region
        %s170 = ssub.s32 %s12, 1
        // Predicated region
        $region13: #{tpu_custom_call.1} parent=11 // pred_check
          %p171 = pneg %p76
        $region14: #{tpu_custom_call.1} parent=11 // pred_check_branch
          %173 = sbr.rel (%p171) target = $region16
        $region15: #{tpu_custom_call.1} parent=11 // pred_region
          %s174 = smul.u32 2, %s21
          %s176 = ssub.s32 36864, 36864
          %177 = vsyncadd [#allocation5], %s176
          %s178 = smul.addr %s174, 128
          %s179 = scalar_lea.hbm %s1, %s178
          %s180 = sshll.u32 [#allocation4], 4
          %s181 = int_to_ptr.vmem [resolvable:$true] %s180
          %186 = dma.hbm_to_vmem [thread:$0]  %s179, 36864, %s181, [#allocation5], 256, 256, 16
        $region16: #{tpu_custom_call.1} parent=11 // pred_fallthru
          _
        // Predicated region
        $region17: #{tpu_custom_call.1} parent=11 // pred_check
          %p187 = pneg %p102
        $region18: #{tpu_custom_call.1} parent=11 // pred_check_branch
          %189 = sbr.rel (%p187) target = $region20
        $region19: #{tpu_custom_call.1} parent=11 // pred_region
          %s190 = smul.u32 2, %s21
          %s192 = ssub.s32 32, 32
          %193 = vsyncadd [#allocation7], %s192
          %s194 = smul.addr %s190, 16
          %s195 = scalar_lea.hbm %s2, %s194
          %s197 = sshll.u32 [#allocation6], 4
          %s198 = int_to_ptr.vmem [resolvable:$true] %s197
          %200 = dma.hbm_to_vmem [thread:$0]  %s195, 32, %s198, [#allocation7]
        $region20: #{tpu_custom_call.1} parent=11 // pred_fallthru
          _
        // Predicated region
        $region21: #{tpu_custom_call.1} parent=11 // pred_check
          %p201 = pneg %p128
        $region22: #{tpu_custom_call.1} parent=11 // pred_check_branch
          %203 = sbr.rel (%p201) target = $region24
        $region23: #{tpu_custom_call.1} parent=11 // pred_region
          %s204 = smul.u32 2, %s21
          %s206 = ssub.s32 32, 32
          %207 = vsyncadd [#allocation7], %s206
          %s208 = smul.addr %s204, 16
          %s209 = scalar_lea.hbm %s3, %s208
          %s211 = sshll.u32 [#allocation8], 4
          %s212 = int_to_ptr.vmem [resolvable:$true] %s211
          %214 = dma.hbm_to_vmem [thread:$0]  %s209, 32, %s212, [#allocation7]
        $region24: #{tpu_custom_call.1} parent=11 // pred_fallthru
          _
      $region12: #{tpu_custom_call.1} parent=5 // pred_fallthru
        _
      %p215 = scmp.lt.s32.totalorder %s12, 2
      // Predicated region
      $region25: #{tpu_custom_call.1} parent=5 // pred_check
        %p216 = pneg %p215
      $region26: #{tpu_custom_call.1} parent=5 // pred_check_branch
        %218 = sbr.rel (%p216) target = $region28
      $region27: #{tpu_custom_call.1} parent=5 // pred_region
        // Predicated region
        $region29: #{tpu_custom_call.1} parent=27 // pred_check
          %p219 = pneg %p44
        $region30: #{tpu_custom_call.1} parent=27 // pred_check_branch
          %221 = sbr.rel (%p219) target = $region32
        $region31: #{tpu_custom_call.1} parent=27 // pred_region
          %p222 = scmp.lt.s32.totalorder %s20, 1
          %s223 = scalar_select %p222, %s20, 1
          %s224 = smul.addr %s223, 54
          %s225 = smul.addr %s224, 8
          %s226 = scalar_lea.vmem %s0, %s225
        $region32: #{tpu_custom_call.1} parent=27 // pred_fallthru
          _
      $region28: #{tpu_custom_call.1} parent=5 // pred_fallthru
        _
      %p227 = scmp.le.s32.totalorder 1, %s12
      %p228 = scmp.lt.s32.totalorder %s12, 3
      %p229 = pnand %p227, %p228
      %p230 = pneg %p229
      // Predicated region
      $region33: #{tpu_custom_call.1} parent=5 // pred_check
        _
      $region34: #{tpu_custom_call.1} parent=5 // pred_check_branch
        %232 = sbr.rel (%p229) target = $region36
      $region35: #{tpu_custom_call.1} parent=5 // pred_region
        %s233 = ssub.s32 %s12, 1
        // Predicated region
        $region37: #{tpu_custom_call.1} parent=35 // pred_check
          %p234 = pneg %p76
        $region38: #{tpu_custom_call.1} parent=35 // pred_check_branch
          %236 = sbr.rel (%p234) target = $region40
        $region39: #{tpu_custom_call.1} parent=35 // pred_region
          %237 = dma.done [#allocation5], 36864
        $region40: #{tpu_custom_call.1} parent=35 // pred_fallthru
          _
        // Predicated region
        $region41: #{tpu_custom_call.1} parent=35 // pred_check
          %p238 = pneg %p102
        $region42: #{tpu_custom_call.1} parent=35 // pred_check_branch
          %240 = sbr.rel (%p238) target = $region44
        $region43: #{tpu_custom_call.1} parent=35 // pred_region
          %241 = dma.done [#allocation7], 32
        $region44: #{tpu_custom_call.1} parent=35 // pred_fallthru
          _
        // Predicated region
        $region45: #{tpu_custom_call.1} parent=35 // pred_check
          %p242 = pneg %p128
        $region46: #{tpu_custom_call.1} parent=35 // pred_check_branch
          %244 = sbr.rel (%p242) target = $region48
        $region47: #{tpu_custom_call.1} parent=35 // pred_region
          %245 = dma.done [#allocation7], 32
        $region48: #{tpu_custom_call.1} parent=35 // pred_fallthru
          _
        %p246 = scmp.lt.s32.totalorder %s22, 1
        %s247 = scalar_select %p246, %s22, 1
        %s248 = smul.addr %s247, 54
        %s249 = smul.addr %s248, 8
        %s250 = scalar_lea.vmem %s0, %s249
        %p251 = pneg %p50
        %p252 = pneg %p47
        %p253 = pneg %p76
        %p254 = pneg %p73
        %p255 = pneg %p102
        %p256 = pneg %p99
        %p257 = pneg %p128
        %p258 = pneg %p125
        %p259 = pneg %p156
        %p260 = pneg %p153
        %s261 = smul.u32 2, %s21
        %p262 = scmp.lt.s32.totalorder %s22, 1
        %s263 = scalar_select %p262, %s22, 1
        %p264 = scmp.lt.s32.totalorder %s261, 1
        %s265 = scalar_select %p264, %s261, 1
        %s266 = smul.addr %s263, 108
        %s267 = sadd.s32 %s265, %s266
        %s268 = smul.addr %s267, 8
        %s269 = scalar_lea.vmem %s4, %s268
        %p270 = scmp.lt.s32.totalorder %s22, 1
        %s271 = scalar_select %p270, %s22, 1
        %s272 = smul.addr %s271, 54
        %s273 = smul.addr %s272, 8
        %s274 = scalar_lea.vmem %s0, %s273
        %s275 = smul.u32 2, %s21
        %s276 = smul.u32 2, %s21
        %s277 = smul.u32 2, %s21
        %s278 = smul.u32 2, %s21
        %p279 = scmp.lt.s32.totalorder %s22, 1
        %s280 = scalar_select %p279, %s22, 1
        %p281 = scmp.lt.s32.totalorder %s278, 1
        %s282 = scalar_select %p281, %s278, 1
        %s283 = smul.addr %s280, 108
        %s284 = sadd.s32 %s282, %s283
        %s285 = smul.addr %s284, 8
        %s286 = scalar_lea.vmem %s4, %s285
        %s287 = smul.u32 2, %s21
        %v288 = vld [vmem:[#allocation6] sm:$0x3]
        %v289 = vld [vmem:[#allocation8] sm:$0x3]
        %290 = vst [vmem:[%s286] sm:$0xff] 0.0
        %291 = vst [vmem:[%s286 + $0x8] sm:$0xff] 0.0
        %292 = vst [vmem:[%s286 + $0x10] sm:$0xff] 0.0
        %293 = vst [vmem:[%s286 + $0x18] sm:$0xff] 0.0
        %294 = vst [vmem:[%s286 + $0x20] sm:$0x3] 0.0
        %295 = vst [vmem:[%s286 + $0x28] sm:$0x3] 0.0
        %s296 = scalar_lea.vmem %s286, 816
        %297 = vst [vmem:[%s296] sm:$0xff] 0.0
        %298 = vst [vmem:[%s296 + $0x8] sm:$0xff] 0.0
        %299 = vst [vmem:[%s296 + $0x10] sm:$0xff] 0.0
        %300 = vst [vmem:[%s296 + $0x18] sm:$0xff] 0.0
        %301 = vst [vmem:[%s296 + $0x20] sm:$0x3] 0.0
        %302 = vst [vmem:[%s296 + $0x28] sm:$0x3] 0.0
        %v303 = vlaneseq
        %vm304 = vcmp.ge.s32.totalorder %v303, 0
        %vm305 = vcmp.lt.s32.totalorder %v303, 256
        %vm306 = vmand %vm304, %vm305
        %307 = vst.msk [vmem:[%s286] ss:$8 sm:$0x3] %vm306, 0.0
        %308 = vst.msk [vmem:[%s286] ss:$8 sm:$0x0] %vm306, 0.0
        %s309 = scalar_lea.vmem %s286, 48
        %310 = vst.msk [vmem:[%s309] ss:$8 sm:$0x3] %vm306, 0.0
        %311 = vst.msk [vmem:[%s309] ss:$8 sm:$0x0] %vm306, 0.0
        %s312 = scalar_lea.vmem %s286, 96
        %313 = vst.msk [vmem:[%s312] ss:$8 sm:$0x3] %vm306, 0.0
        %314 = vst.msk [vmem:[%s312] ss:$8 sm:$0x0] %vm306, 0.0
        %s315 = scalar_lea.vmem %s286, 144
        %316 = vst.msk [vmem:[%s315] ss:$8 sm:$0x3] %vm306, 0.0
        %317 = vst.msk [vmem:[%s315] ss:$8 sm:$0x0] %vm306, 0.0
        %s318 = scalar_lea.vmem %s286, 192
        %319 = vst.msk [vmem:[%s318] ss:$8 sm:$0x3] %vm306, 0.0
        %320 = vst.msk [vmem:[%s318] ss:$8 sm:$0x0] %vm306, 0.0
        %s321 = scalar_lea.vmem %s286, 240
        %322 = vst.msk [vmem:[%s321] ss:$8 sm:$0x3] %vm306, 0.0
        %323 = vst.msk [vmem:[%s321] ss:$8 sm:$0x0] %vm306, 0.0
        %s324 = scalar_lea.vmem %s286, 288
        %325 = vst.msk [vmem:[%s324] ss:$8 sm:$0x3] %vm306, 0.0
        %326 = vst.msk [vmem:[%s324] ss:$8 sm:$0x0] %vm306, 0.0
        %s327 = scalar_lea.vmem %s286, 336
        %328 = vst.msk [vmem:[%s327] ss:$8 sm:$0x3] %vm306, 0.0
        %329 = vst.msk [vmem:[%s327] ss:$8 sm:$0x0] %vm306, 0.0
        %s330 = scalar_lea.vmem %s286, 384
        %331 = vst.msk [vmem:[%s330] ss:$8 sm:$0x3] %vm306, 0.0
        %332 = vst.msk [vmem:[%s330] ss:$8 sm:$0x0] %vm306, 0.0
        %s333 = scalar_lea.vmem %s286, 432
        %334 = vst.msk [vmem:[%s333] ss:$8 sm:$0x3] %vm306, 0.0
        %335 = vst.msk [vmem:[%s333] ss:$8 sm:$0x0] %vm306, 0.0
        %s336 = scalar_lea.vmem %s286, 480
        %337 = vst.msk [vmem:[%s336] ss:$8 sm:$0x3] %vm306, 0.0
        %338 = vst.msk [vmem:[%s336] ss:$8 sm:$0x0] %vm306, 0.0
        %s339 = scalar_lea.vmem %s286, 528
        %340 = vst.msk [vmem:[%s339] ss:$8 sm:$0x3] %vm306, 0.0
        %341 = vst.msk [vmem:[%s339] ss:$8 sm:$0x0] %vm306, 0.0
        %s342 = scalar_lea.vmem %s286, 576
        %343 = vst.msk [vmem:[%s342] ss:$8 sm:$0x3] %vm306, 0.0
        %344 = vst.msk [vmem:[%s342] ss:$8 sm:$0x0] %vm306, 0.0
        %s345 = scalar_lea.vmem %s286, 624
        %346 = vst.msk [vmem:[%s345] ss:$8 sm:$0x3] %vm306, 0.0
        %347 = vst.msk [vmem:[%s345] ss:$8 sm:$0x0] %vm306, 0.0
        %s348 = scalar_lea.vmem %s286, 672
        %349 = vst.msk [vmem:[%s348] ss:$8 sm:$0x3] %vm306, 0.0
        %350 = vst.msk [vmem:[%s348] ss:$8 sm:$0x0] %vm306, 0.0
        %s351 = scalar_lea.vmem %s286, 720
        %352 = vst.msk [vmem:[%s351] ss:$8 sm:$0x3] %vm306, 0.0
        %353 = vst.msk [vmem:[%s351] ss:$8 sm:$0x0] %vm306, 0.0
        %s354 = scalar_lea.vmem %s286, 768
        %355 = vst.msk [vmem:[%s354] ss:$8 sm:$0x3] %vm306, 0.0
        %356 = vst.msk [vmem:[%s354] ss:$8 sm:$0x0] %vm306, 0.0
        %s357 = scalar_lea.vmem %s286, 816
        %358 = vst.msk [vmem:[%s357] ss:$8 sm:$0x3] %vm306, 0.0
        %359 = vst.msk [vmem:[%s357] ss:$8 sm:$0x0] %vm306, 0.0
        %s360 = scalar_lea.vmem %s286, 33
        %361 = vst.msk [vmem:[%s360] ss:$8 sm:$0x3] %vm306, 0.0
        %362 = vst.msk [vmem:[%s360] ss:$8 sm:$0x0] %vm306, 0.0
        %s363 = scalar_lea.vmem %s286, 81
        %364 = vst.msk [vmem:[%s363] ss:$8 sm:$0x3] %vm306, 0.0
        %365 = vst.msk [vmem:[%s363] ss:$8 sm:$0x0] %vm306, 0.0
        %s366 = scalar_lea.vmem %s286, 129
        %367 = vst.msk [vmem:[%s366] ss:$8 sm:$0x3] %vm306, 0.0
        %368 = vst.msk [vmem:[%s366] ss:$8 sm:$0x0] %vm306, 0.0
        %s369 = scalar_lea.vmem %s286, 177
        %370 = vst.msk [vmem:[%s369] ss:$8 sm:$0x3] %vm306, 0.0
        %371 = vst.msk [vmem:[%s369] ss:$8 sm:$0x0] %vm306, 0.0
        %s372 = scalar_lea.vmem %s286, 225
        %373 = vst.msk [vmem:[%s372] ss:$8 sm:$0x3] %vm306, 0.0
        %374 = vst.msk [vmem:[%s372] ss:$8 sm:$0x0] %vm306, 0.0
        %s375 = scalar_lea.vmem %s286, 273
        %376 = vst.msk [vmem:[%s375] ss:$8 sm:$0x3] %vm306, 0.0
        %377 = vst.msk [vmem:[%s375] ss:$8 sm:$0x0] %vm306, 0.0
        %s378 = scalar_lea.vmem %s286, 321
        %379 = vst.msk [vmem:[%s378] ss:$8 sm:$0x3] %vm306, 0.0
        %380 = vst.msk [vmem:[%s378] ss:$8 sm:$0x0] %vm306, 0.0
        %s381 = scalar_lea.vmem %s286, 369
        %382 = vst.msk [vmem:[%s381] ss:$8 sm:$0x3] %vm306, 0.0
        %383 = vst.msk [vmem:[%s381] ss:$8 sm:$0x0] %vm306, 0.0
        %s384 = scalar_lea.vmem %s286, 417
        %385 = vst.msk [vmem:[%s384] ss:$8 sm:$0x3] %vm306, 0.0
        %386 = vst.msk [vmem:[%s384] ss:$8 sm:$0x0] %vm306, 0.0
        %s387 = scalar_lea.vmem %s286, 465
        %388 = vst.msk [vmem:[%s387] ss:$8 sm:$0x3] %vm306, 0.0
        %389 = vst.msk [vmem:[%s387] ss:$8 sm:$0x0] %vm306, 0.0
        %s390 = scalar_lea.vmem %s286, 513
        %391 = vst.msk [vmem:[%s390] ss:$8 sm:$0x3] %vm306, 0.0
        %392 = vst.msk [vmem:[%s390] ss:$8 sm:$0x0] %vm306, 0.0
        %s393 = scalar_lea.vmem %s286, 561
        %394 = vst.msk [vmem:[%s393] ss:$8 sm:$0x3] %vm306, 0.0
        %395 = vst.msk [vmem:[%s393] ss:$8 sm:$0x0] %vm306, 0.0
        %s396 = scalar_lea.vmem %s286, 609
        %397 = vst.msk [vmem:[%s396] ss:$8 sm:$0x3] %vm306, 0.0
        %398 = vst.msk [vmem:[%s396] ss:$8 sm:$0x0] %vm306, 0.0
        %s399 = scalar_lea.vmem %s286, 657
        %400 = vst.msk [vmem:[%s399] ss:$8 sm:$0x3] %vm306, 0.0
        %401 = vst.msk [vmem:[%s399] ss:$8 sm:$0x0] %vm306, 0.0
        %s402 = scalar_lea.vmem %s286, 705
        %403 = vst.msk [vmem:[%s402] ss:$8 sm:$0x3] %vm306, 0.0
        %404 = vst.msk [vmem:[%s402] ss:$8 sm:$0x0] %vm306, 0.0
        %s405 = scalar_lea.vmem %s286, 753
        %406 = vst.msk [vmem:[%s405] ss:$8 sm:$0x3] %vm306, 0.0
        %407 = vst.msk [vmem:[%s405] ss:$8 sm:$0x0] %vm306, 0.0
        %s408 = scalar_lea.vmem %s286, 801
        %409 = vst.msk [vmem:[%s408] ss:$8 sm:$0x3] %vm306, 0.0
        %410 = vst.msk [vmem:[%s408] ss:$8 sm:$0x0] %vm306, 0.0
        %s411 = scalar_lea.vmem %s286, 849
        %412 = vst.msk [vmem:[%s411] ss:$8 sm:$0x3] %vm306, 0.0
        %413 = vst.msk [vmem:[%s411] ss:$8 sm:$0x0] %vm306, 0.0
        %v414 = vld [vmem:[%s274] sm:$0xff]
        %v415 = vld [vmem:[%s274 + $0x8] sm:$0xff]
        %v416 = vld [vmem:[%s274 + $0x18] sm:$0xff]
        %v417 = vld [vmem:[%s274 + $0x20] sm:$0xff]
        %v418 = vld [vmem:[%s274 + $0x30] sm:$0xff]
        %v419 = vld [vmem:[%s274 + $0x38] sm:$0xff]
        %v420 = vld [vmem:[%s274 + $0x48] sm:$0xff]
        %v421 = vld [vmem:[%s274 + $0x50] sm:$0xff]
        %v422 = vld [vmem:[%s274 + $0x60] sm:$0xff]
        %v423 = vld [vmem:[%s274 + $0x68] sm:$0xff]
        %v424 = vld [vmem:[%s274 + $0x78] sm:$0xff]
        %v425 = vld [vmem:[%s274 + $0x80] sm:$0xff]
        %v426 = vld [vmem:[%s274 + $0x90] sm:$0xff]
        %v427 = vld [vmem:[%s274 + $0x98] sm:$0xff]
        %v428 = vld [vmem:[%s274 + $0xa8] sm:$0xff]
        %v429 = vld [vmem:[%s274 + $0xb0] sm:$0xff]
        %430 = vst [vmem:[#allocation2] sm:$0xff] %v414
        %431 = vst [vmem:[#allocation2 + $0x48] sm:$0xff] %v415
        %432 = vst [vmem:[#allocation2 + $0x90] sm:$0xff] %v416
        %433 = vst [vmem:[#allocation2 + $0xd8] sm:$0xff] %v417
        %434 = vst [vmem:[#allocation2 + $0x120] sm:$0xff] %v418
        %435 = vst [vmem:[#allocation2 + $0x168] sm:$0xff] %v419
        %436 = vst [vmem:[#allocation2 + $0x1b0] sm:$0xff] %v420
        %437 = vst [vmem:[#allocation2 + $0x1f8] sm:$0xff] %v421
        %438 = vst [vmem:[#allocation2 + $0x240] sm:$0xff] %v422
        %439 = vst [vmem:[#allocation2 + $0x288] sm:$0xff] %v423
        %440 = vst [vmem:[#allocation2 + $0x2d0] sm:$0xff] %v424
        %441 = vst [vmem:[#allocation2 + $0x318] sm:$0xff] %v425
        %442 = vst [vmem:[#allocation2 + $0x360] sm:$0xff] %v426
        %443 = vst [vmem:[#allocation2 + $0x3a8] sm:$0xff] %v427
        %444 = vst [vmem:[#allocation2 + $0x3f0] sm:$0xff] %v428
        %445 = vst [vmem:[#allocation2 + $0x438] sm:$0xff] %v429
        %v446 = vld [vmem:[%s274 + $0x1] sm:$0xff]
        %v447 = vld [vmem:[%s274 + $0x9] sm:$0xff]
        %v448 = vld [vmem:[%s274 + $0x19] sm:$0xff]
        %v449 = vld [vmem:[%s274 + $0x21] sm:$0xff]
        %v450 = vld [vmem:[%s274 + $0x31] sm:$0xff]
        %v451 = vld [vmem:[%s274 + $0x39] sm:$0xff]
        %v452 = vld [vmem:[%s274 + $0x49] sm:$0xff]
        %v453 = vld [vmem:[%s274 + $0x51] sm:$0xff]
        %v454 = vld [vmem:[%s274 + $0x61] sm:$0xff]
        %v455 = vld [vmem:[%s274 + $0x69] sm:$0xff]
        %v456 = vld [vmem:[%s274 + $0x79] sm:$0xff]
        %v457 = vld [vmem:[%s274 + $0x81] sm:$0xff]
        %v458 = vld [vmem:[%s274 + $0x91] sm:$0xff]
        %v459 = vld [vmem:[%s274 + $0x99] sm:$0xff]
        %v460 = vld [vmem:[%s274 + $0xa9] sm:$0xff]
        %v461 = vld [vmem:[%s274 + $0xb1] sm:$0xff]
        %462 = vst [vmem:[#allocation2 + $0x8] sm:$0xff] %v446
        %463 = vst [vmem:[#allocation2 + $0x50] sm:$0xff] %v447
        %464 = vst [vmem:[#allocation2 + $0x98] sm:$0xff] %v448
        %465 = vst [vmem:[#allocation2 + $0xe0] sm:$0xff] %v449
        %466 = vst [vmem:[#allocation2 + $0x128] sm:$0xff] %v450
        %467 = vst [vmem:[#allocation2 + $0x170] sm:$0xff] %v451
        %468 = vst [vmem:[#allocation2 + $0x1b8] sm:$0xff] %v452
        %469 = vst [vmem:[#allocation2 + $0x200] sm:$0xff] %v453
        %470 = vst [vmem:[#allocation2 + $0x248] sm:$0xff] %v454
        %471 = vst [vmem:[#allocation2 + $0x290] sm:$0xff] %v455
        %472 = vst [vmem:[#allocation2 + $0x2d8] sm:$0xff] %v456
        %473 = vst [vmem:[#allocation2 + $0x320] sm:$0xff] %v457
        %474 = vst [vmem:[#allocation2 + $0x368] sm:$0xff] %v458
        %475 = vst [vmem:[#allocation2 + $0x3b0] sm:$0xff] %v459
        %476 = vst [vmem:[#allocation2 + $0x3f8] sm:$0xff] %v460
        %477 = vst [vmem:[#allocation2 + $0x440] sm:$0xff] %v461
        %v478 = vld [vmem:[%s274 + $0x2] sm:$0xff]
        %v479 = vld [vmem:[%s274 + $0xa] sm:$0xff]
        %v480 = vld [vmem:[%s274 + $0x1a] sm:$0xff]
        %v481 = vld [vmem:[%s274 + $0x22] sm:$0xff]
        %v482 = vld [vmem:[%s274 + $0x32] sm:$0xff]
        %v483 = vld [vmem:[%s274 + $0x3a] sm:$0xff]
        %v484 = vld [vmem:[%s274 + $0x4a] sm:$0xff]
        %v485 = vld [vmem:[%s274 + $0x52] sm:$0xff]
        %v486 = vld [vmem:[%s274 + $0x62] sm:$0xff]
        %v487 = vld [vmem:[%s274 + $0x6a] sm:$0xff]
        %v488 = vld [vmem:[%s274 + $0x7a] sm:$0xff]
        %v489 = vld [vmem:[%s274 + $0x82] sm:$0xff]
        %v490 = vld [vmem:[%s274 + $0x92] sm:$0xff]
        %v491 = vld [vmem:[%s274 + $0x9a] sm:$0xff]
        %v492 = vld [vmem:[%s274 + $0xaa] sm:$0xff]
        %v493 = vld [vmem:[%s274 + $0xb2] sm:$0xff]
        %494 = vst [vmem:[#allocation2 + $0x10] sm:$0xff] %v478
        %495 = vst [vmem:[#allocation2 + $0x58] sm:$0xff] %v479
        %496 = vst [vmem:[#allocation2 + $0xa0] sm:$0xff] %v480
        %497 = vst [vmem:[#allocation2 + $0xe8] sm:$0xff] %v481
        %498 = vst [vmem:[#allocation2 + $0x130] sm:$0xff] %v482
        %499 = vst [vmem:[#allocation2 + $0x178] sm:$0xff] %v483
        %500 = vst [vmem:[#allocation2 + $0x1c0] sm:$0xff] %v484
        %501 = vst [vmem:[#allocation2 + $0x208] sm:$0xff] %v485
        %502 = vst [vmem:[#allocation2 + $0x250] sm:$0xff] %v486
        %503 = vst [vmem:[#allocation2 + $0x298] sm:$0xff] %v487
        %504 = vst [vmem:[#allocation2 + $0x2e0] sm:$0xff] %v488
        %505 = vst [vmem:[#allocation2 + $0x328] sm:$0xff] %v489
        %506 = vst [vmem:[#allocation2 + $0x370] sm:$0xff] %v490
        %507 = vst [vmem:[#allocation2 + $0x3b8] sm:$0xff] %v491
        %508 = vst [vmem:[#allocation2 + $0x400] sm:$0xff] %v492
        %509 = vst [vmem:[#allocation2 + $0x448] sm:$0xff] %v493
        %s510 = scalar_lea.vmem %s274, 24
        %v511 = vld [vmem:[%s510] sm:$0xff]
        %v512 = vld [vmem:[%s510 + $0x8] sm:$0xff]
        %v513 = vld [vmem:[%s510 + $0x18] sm:$0xff]
        %v514 = vld [vmem:[%s510 + $0x20] sm:$0xff]
        %v515 = vld [vmem:[%s510 + $0x30] sm:$0xff]
        %v516 = vld [vmem:[%s510 + $0x38] sm:$0xff]
        %v517 = vld [vmem:[%s510 + $0x48] sm:$0xff]
        %v518 = vld [vmem:[%s510 + $0x50] sm:$0xff]
        %v519 = vld [vmem:[%s510 + $0x60] sm:$0xff]
        %v520 = vld [vmem:[%s510 + $0x68] sm:$0xff]
        %v521 = vld [vmem:[%s510 + $0x78] sm:$0xff]
        %v522 = vld [vmem:[%s510 + $0x80] sm:$0xff]
        %v523 = vld [vmem:[%s510 + $0x90] sm:$0xff]
        %v524 = vld [vmem:[%s510 + $0x98] sm:$0xff]
        %v525 = vld [vmem:[%s510 + $0xa8] sm:$0xff]
        %v526 = vld [vmem:[%s510 + $0xb0] sm:$0xff]
        %527 = vst [vmem:[#allocation2 + $0x18] sm:$0xff] %v511
        %528 = vst [vmem:[#allocation2 + $0x60] sm:$0xff] %v512
        %529 = vst [vmem:[#allocation2 + $0xa8] sm:$0xff] %v513
        %530 = vst [vmem:[#allocation2 + $0xf0] sm:$0xff] %v514
        %531 = vst [vmem:[#allocation2 + $0x138] sm:$0xff] %v515
        %532 = vst [vmem:[#allocation2 + $0x180] sm:$0xff] %v516
        %533 = vst [vmem:[#allocation2 + $0x1c8] sm:$0xff] %v517
        %534 = vst [vmem:[#allocation2 + $0x210] sm:$0xff] %v518
        %535 = vst [vmem:[#allocation2 + $0x258] sm:$0xff] %v519
        %536 = vst [vmem:[#allocation2 + $0x2a0] sm:$0xff] %v520
        %537 = vst [vmem:[#allocation2 + $0x2e8] sm:$0xff] %v521
        %538 = vst [vmem:[#allocation2 + $0x330] sm:$0xff] %v522
        %539 = vst [vmem:[#allocation2 + $0x378] sm:$0xff] %v523
        %540 = vst [vmem:[#allocation2 + $0x3c0] sm:$0xff] %v524
        %541 = vst [vmem:[#allocation2 + $0x408] sm:$0xff] %v525
        %542 = vst [vmem:[#allocation2 + $0x450] sm:$0xff] %v526
        %v543 = vld [vmem:[%s510 + $0x1] sm:$0xff]
        %v544 = vld [vmem:[%s510 + $0x9] sm:$0xff]
        %v545 = vld [vmem:[%s510 + $0x19] sm:$0xff]
        %v546 = vld [vmem:[%s510 + $0x21] sm:$0xff]
        %v547 = vld [vmem:[%s510 + $0x31] sm:$0xff]
        %v548 = vld [vmem:[%s510 + $0x39] sm:$0xff]
        %v549 = vld [vmem:[%s510 + $0x49] sm:$0xff]
        %v550 = vld [vmem:[%s510 + $0x51] sm:$0xff]
        %v551 = vld [vmem:[%s510 + $0x61] sm:$0xff]
        %v552 = vld [vmem:[%s510 + $0x69] sm:$0xff]
        %v553 = vld [vmem:[%s510 + $0x79] sm:$0xff]
        %v554 = vld [vmem:[%s510 + $0x81] sm:$0xff]
        %v555 = vld [vmem:[%s510 + $0x91] sm:$0xff]
        %v556 = vld [vmem:[%s510 + $0x99] sm:$0xff]
        %v557 = vld [vmem:[%s510 + $0xa9] sm:$0xff]
        %v558 = vld [vmem:[%s510 + $0xb1] sm:$0xff]
        %559 = vst [vmem:[#allocation2 + $0x20] sm:$0xff] %v543
        %560 = vst [vmem:[#allocation2 + $0x68] sm:$0xff] %v544
        %561 = vst [vmem:[#allocation2 + $0xb0] sm:$0xff] %v545
        %562 = vst [vmem:[#allocation2 + $0xf8] sm:$0xff] %v546
        %563 = vst [vmem:[#allocation2 + $0x140] sm:$0xff] %v547
        %564 = vst [vmem:[#allocation2 + $0x188] sm:$0xff] %v548
        %565 = vst [vmem:[#allocation2 + $0x1d0] sm:$0xff] %v549
        %566 = vst [vmem:[#allocation2 + $0x218] sm:$0xff] %v550
        %567 = vst [vmem:[#allocation2 + $0x260] sm:$0xff] %v551
        %568 = vst [vmem:[#allocation2 + $0x2a8] sm:$0xff] %v552
        %569 = vst [vmem:[#allocation2 + $0x2f0] sm:$0xff] %v553
        %570 = vst [vmem:[#allocation2 + $0x338] sm:$0xff] %v554
        %571 = vst [vmem:[#allocation2 + $0x380] sm:$0xff] %v555
        %572 = vst [vmem:[#allocation2 + $0x3c8] sm:$0xff] %v556
        %573 = vst [vmem:[#allocation2 + $0x410] sm:$0xff] %v557
        %574 = vst [vmem:[#allocation2 + $0x458] sm:$0xff] %v558
        %v575 = vld [vmem:[%s510 + $0x2] sm:$0xff]
        %v576 = vld [vmem:[%s510 + $0xa] sm:$0xff]
        %v577 = vld [vmem:[%s510 + $0x1a] sm:$0xff]
        %v578 = vld [vmem:[%s510 + $0x22] sm:$0xff]
        %v579 = vld [vmem:[%s510 + $0x32] sm:$0xff]
        %v580 = vld [vmem:[%s510 + $0x3a] sm:$0xff]
        %v581 = vld [vmem:[%s510 + $0x4a] sm:$0xff]
        %v582 = vld [vmem:[%s510 + $0x52] sm:$0xff]
        %v583 = vld [vmem:[%s510 + $0x62] sm:$0xff]
        %v584 = vld [vmem:[%s510 + $0x6a] sm:$0xff]
        %v585 = vld [vmem:[%s510 + $0x7a] sm:$0xff]
        %v586 = vld [vmem:[%s510 + $0x82] sm:$0xff]
        %v587 = vld [vmem:[%s510 + $0x92] sm:$0xff]
        %v588 = vld [vmem:[%s510 + $0x9a] sm:$0xff]
        %v589 = vld [vmem:[%s510 + $0xaa] sm:$0xff]
        %v590 = vld [vmem:[%s510 + $0xb2] sm:$0xff]
        %591 = vst [vmem:[#allocation2 + $0x28] sm:$0xff] %v575
        %592 = vst [vmem:[#allocation2 + $0x70] sm:$0xff] %v576
        %593 = vst [vmem:[#allocation2 + $0xb8] sm:$0xff] %v577
        %594 = vst [vmem:[#allocation2 + $0x100] sm:$0xff] %v578
        %595 = vst [vmem:[#allocation2 + $0x148] sm:$0xff] %v579
        %596 = vst [vmem:[#allocation2 + $0x190] sm:$0xff] %v580
        %597 = vst [vmem:[#allocation2 + $0x1d8] sm:$0xff] %v581
        %598 = vst [vmem:[#allocation2 + $0x220] sm:$0xff] %v582
        %599 = vst [vmem:[#allocation2 + $0x268] sm:$0xff] %v583
        %600 = vst [vmem:[#allocation2 + $0x2b0] sm:$0xff] %v584
        %601 = vst [vmem:[#allocation2 + $0x2f8] sm:$0xff] %v585
        %602 = vst [vmem:[#allocation2 + $0x340] sm:$0xff] %v586
        %603 = vst [vmem:[#allocation2 + $0x388] sm:$0xff] %v587
        %604 = vst [vmem:[#allocation2 + $0x3d0] sm:$0xff] %v588
        %605 = vst [vmem:[#allocation2 + $0x418] sm:$0xff] %v589
        %606 = vst [vmem:[#allocation2 + $0x460] sm:$0xff] %v590
        %s607 = scalar_lea.vmem %s274, 48
        %v608 = vld [vmem:[%s607] sm:$0xff]
        %v609 = vld [vmem:[%s607 + $0x8] sm:$0xff]
        %v610 = vld [vmem:[%s607 + $0x18] sm:$0xff]
        %v611 = vld [vmem:[%s607 + $0x20] sm:$0xff]
        %v612 = vld [vmem:[%s607 + $0x30] sm:$0xff]
        %v613 = vld [vmem:[%s607 + $0x38] sm:$0xff]
        %v614 = vld [vmem:[%s607 + $0x48] sm:$0xff]
        %v615 = vld [vmem:[%s607 + $0x50] sm:$0xff]
        %v616 = vld [vmem:[%s607 + $0x60] sm:$0xff]
        %v617 = vld [vmem:[%s607 + $0x68] sm:$0xff]
        %v618 = vld [vmem:[%s607 + $0x78] sm:$0xff]
        %v619 = vld [vmem:[%s607 + $0x80] sm:$0xff]
        %v620 = vld [vmem:[%s607 + $0x90] sm:$0xff]
        %v621 = vld [vmem:[%s607 + $0x98] sm:$0xff]
        %v622 = vld [vmem:[%s607 + $0xa8] sm:$0xff]
        %v623 = vld [vmem:[%s607 + $0xb0] sm:$0xff]
        %624 = vst [vmem:[#allocation2 + $0x30] sm:$0xff] %v608
        %625 = vst [vmem:[#allocation2 + $0x78] sm:$0xff] %v609
        %626 = vst [vmem:[#allocation2 + $0xc0] sm:$0xff] %v610
        %627 = vst [vmem:[#allocation2 + $0x108] sm:$0xff] %v611
        %628 = vst [vmem:[#allocation2 + $0x150] sm:$0xff] %v612
        %629 = vst [vmem:[#allocation2 + $0x198] sm:$0xff] %v613
        %630 = vst [vmem:[#allocation2 + $0x1e0] sm:$0xff] %v614
        %631 = vst [vmem:[#allocation2 + $0x228] sm:$0xff] %v615
        %632 = vst [vmem:[#allocation2 + $0x270] sm:$0xff] %v616
        %633 = vst [vmem:[#allocation2 + $0x2b8] sm:$0xff] %v617
        %634 = vst [vmem:[#allocation2 + $0x300] sm:$0xff] %v618
        %635 = vst [vmem:[#allocation2 + $0x348] sm:$0xff] %v619
        %636 = vst [vmem:[#allocation2 + $0x390] sm:$0xff] %v620
        %637 = vst [vmem:[#allocation2 + $0x3d8] sm:$0xff] %v621
        %638 = vst [vmem:[#allocation2 + $0x420] sm:$0xff] %v622
        %639 = vst [vmem:[#allocation2 + $0x468] sm:$0xff] %v623
        %v640 = vld [vmem:[%s607 + $0x1] sm:$0xff]
        %v641 = vld [vmem:[%s607 + $0x9] sm:$0xff]
        %v642 = vld [vmem:[%s607 + $0x19] sm:$0xff]
        %v643 = vld [vmem:[%s607 + $0x21] sm:$0xff]
        %v644 = vld [vmem:[%s607 + $0x31] sm:$0xff]
        %v645 = vld [vmem:[%s607 + $0x39] sm:$0xff]
        %v646 = vld [vmem:[%s607 + $0x49] sm:$0xff]
        %v647 = vld [vmem:[%s607 + $0x51] sm:$0xff]
        %v648 = vld [vmem:[%s607 + $0x61] sm:$0xff]
        %v649 = vld [vmem:[%s607 + $0x69] sm:$0xff]
        %v650 = vld [vmem:[%s607 + $0x79] sm:$0xff]
        %v651 = vld [vmem:[%s607 + $0x81] sm:$0xff]
        %v652 = vld [vmem:[%s607 + $0x91] sm:$0xff]
        %v653 = vld [vmem:[%s607 + $0x99] sm:$0xff]
        %v654 = vld [vmem:[%s607 + $0xa9] sm:$0xff]
        %v655 = vld [vmem:[%s607 + $0xb1] sm:$0xff]
        %656 = vst [vmem:[#allocation2 + $0x38] sm:$0xff] %v640
        %657 = vst [vmem:[#allocation2 + $0x80] sm:$0xff] %v641
        %658 = vst [vmem:[#allocation2 + $0xc8] sm:$0xff] %v642
        %659 = vst [vmem:[#allocation2 + $0x110] sm:$0xff] %v643
        %660 = vst [vmem:[#allocation2 + $0x158] sm:$0xff] %v644
        %661 = vst [vmem:[#allocation2 + $0x1a0] sm:$0xff] %v645
        %662 = vst [vmem:[#allocation2 + $0x1e8] sm:$0xff] %v646
        %663 = vst [vmem:[#allocation2 + $0x230] sm:$0xff] %v647
        %664 = vst [vmem:[#allocation2 + $0x278] sm:$0xff] %v648
        %665 = vst [vmem:[#allocation2 + $0x2c0] sm:$0xff] %v649
        %666 = vst [vmem:[#allocation2 + $0x308] sm:$0xff] %v650
        %667 = vst [vmem:[#allocation2 + $0x350] sm:$0xff] %v651
        %668 = vst [vmem:[#allocation2 + $0x398] sm:$0xff] %v652
        %669 = vst [vmem:[#allocation2 + $0x3e0] sm:$0xff] %v653
        %670 = vst [vmem:[#allocation2 + $0x428] sm:$0xff] %v654
        %671 = vst [vmem:[#allocation2 + $0x470] sm:$0xff] %v655
        %v672 = vld [vmem:[%s607 + $0x2] sm:$0xff]
        %v673 = vld [vmem:[%s607 + $0xa] sm:$0xff]
        %v674 = vld [vmem:[%s607 + $0x1a] sm:$0xff]
        %v675 = vld [vmem:[%s607 + $0x22] sm:$0xff]
        %v676 = vld [vmem:[%s607 + $0x32] sm:$0xff]
        %v677 = vld [vmem:[%s607 + $0x3a] sm:$0xff]
        %v678 = vld [vmem:[%s607 + $0x4a] sm:$0xff]
        %v679 = vld [vmem:[%s607 + $0x52] sm:$0xff]
        %v680 = vld [vmem:[%s607 + $0x62] sm:$0xff]
        %v681 = vld [vmem:[%s607 + $0x6a] sm:$0xff]
        %v682 = vld [vmem:[%s607 + $0x7a] sm:$0xff]
        %v683 = vld [vmem:[%s607 + $0x82] sm:$0xff]
        %v684 = vld [vmem:[%s607 + $0x92] sm:$0xff]
        %v685 = vld [vmem:[%s607 + $0x9a] sm:$0xff]
        %v686 = vld [vmem:[%s607 + $0xaa] sm:$0xff]
        %v687 = vld [vmem:[%s607 + $0xb2] sm:$0xff]
        %688 = vst [vmem:[#allocation2 + $0x40] sm:$0xff] %v672
        %689 = vst [vmem:[#allocation2 + $0x88] sm:$0xff] %v673
        %690 = vst [vmem:[#allocation2 + $0xd0] sm:$0xff] %v674
        %691 = vst [vmem:[#allocation2 + $0x118] sm:$0xff] %v675
        %692 = vst [vmem:[#allocation2 + $0x160] sm:$0xff] %v676
        %693 = vst [vmem:[#allocation2 + $0x1a8] sm:$0xff] %v677
        %694 = vst [vmem:[#allocation2 + $0x1f0] sm:$0xff] %v678
        %695 = vst [vmem:[#allocation2 + $0x238] sm:$0xff] %v679
        %696 = vst [vmem:[#allocation2 + $0x280] sm:$0xff] %v680
        %697 = vst [vmem:[#allocation2 + $0x2c8] sm:$0xff] %v681
        %698 = vst [vmem:[#allocation2 + $0x310] sm:$0xff] %v682
        %699 = vst [vmem:[#allocation2 + $0x358] sm:$0xff] %v683
        %700 = vst [vmem:[#allocation2 + $0x3a0] sm:$0xff] %v684
        %701 = vst [vmem:[#allocation2 + $0x3e8] sm:$0xff] %v685
        %702 = vst [vmem:[#allocation2 + $0x430] sm:$0xff] %v686
        %703 = vst [vmem:[#allocation2 + $0x478] sm:$0xff] %v687
        %v704 = vld [vmem:[#allocation2] sm:$0xff]
        %v705 = vld [vmem:[#allocation2 + $0x8] sm:$0xff]
        %v706 = vld [vmem:[#allocation2 + $0x10] sm:$0xff]
        %v707 = vld [vmem:[#allocation2 + $0x18] sm:$0xff]
        %v708 = vld [vmem:[#allocation2 + $0x20] sm:$0xff]
        %v709 = vld [vmem:[#allocation2 + $0x28] sm:$0xff]
        %v710 = vld [vmem:[#allocation2 + $0x30] sm:$0xff]
        %v711 = vld [vmem:[#allocation2 + $0x38] sm:$0xff]
        %v712 = vld [vmem:[#allocation2 + $0x40] sm:$0xff]
        %v713 = vld [vmem:[#allocation2 + $0x48] sm:$0xff]
        %v714 = vld [vmem:[#allocation2 + $0x50] sm:$0xff]
        %v715 = vld [vmem:[#allocation2 + $0x58] sm:$0xff]
        %v716 = vld [vmem:[#allocation2 + $0x60] sm:$0xff]
        %v717 = vld [vmem:[#allocation2 + $0x68] sm:$0xff]
        %v718 = vld [vmem:[#allocation2 + $0x70] sm:$0xff]
        %v719 = vld [vmem:[#allocation2 + $0x78] sm:$0xff]
        %v720 = vld [vmem:[#allocation2 + $0x80] sm:$0xff]
        %v721 = vld [vmem:[#allocation2 + $0x88] sm:$0xff]
        %v722 = vld [vmem:[#allocation2 + $0x90] sm:$0xff]
        %v723 = vld [vmem:[#allocation2 + $0x98] sm:$0xff]
        %v724 = vld [vmem:[#allocation2 + $0xa0] sm:$0xff]
        %v725 = vld [vmem:[#allocation2 + $0xa8] sm:$0xff]
        %v726 = vld [vmem:[#allocation2 + $0xb0] sm:$0xff]
        %v727 = vld [vmem:[#allocation2 + $0xb8] sm:$0xff]
        %v728 = vld [vmem:[#allocation2 + $0xc0] sm:$0xff]
        %v729 = vld [vmem:[#allocation2 + $0xc8] sm:$0xff]
        %v730 = vld [vmem:[#allocation2 + $0xd0] sm:$0xff]
        %v731 = vld [vmem:[#allocation2 + $0xd8] sm:$0xff]
        %v732 = vld [vmem:[#allocation2 + $0xe0] sm:$0xff]
        %v733 = vld [vmem:[#allocation2 + $0xe8] sm:$0xff]
        %v734 = vld [vmem:[#allocation2 + $0xf0] sm:$0xff]
        %v735 = vld [vmem:[#allocation2 + $0xf8] sm:$0xff]
        %v736 = vld [vmem:[#allocation2 + $0x100] sm:$0xff]
        %v737 = vld [vmem:[#allocation2 + $0x108] sm:$0xff]
        %v738 = vld [vmem:[#allocation2 + $0x110] sm:$0xff]
        %v739 = vld [vmem:[#allocation2 + $0x118] sm:$0xff]
        %v740 = vld [vmem:[#allocation2 + $0x120] sm:$0xff]
        %v741 = vld [vmem:[#allocation2 + $0x128] sm:$0xff]
        %v742 = vld [vmem:[#allocation2 + $0x130] sm:$0xff]
        %v743 = vld [vmem:[#allocation2 + $0x138] sm:$0xff]
        %v744 = vld [vmem:[#allocation2 + $0x140] sm:$0xff]
        %v745 = vld [vmem:[#allocation2 + $0x148] sm:$0xff]
        %v746 = vld [vmem:[#allocation2 + $0x150] sm:$0xff]
        %v747 = vld [vmem:[#allocation2 + $0x158] sm:$0xff]
        %v748 = vld [vmem:[#allocation2 + $0x160] sm:$0xff]
        %v749 = vld [vmem:[#allocation2 + $0x168] sm:$0xff]
        %v750 = vld [vmem:[#allocation2 + $0x170] sm:$0xff]
        %v751 = vld [vmem:[#allocation2 + $0x178] sm:$0xff]
        %v752 = vld [vmem:[#allocation2 + $0x180] sm:$0xff]
        %v753 = vld [vmem:[#allocation2 + $0x188] sm:$0xff]
        %v754 = vld [vmem:[#allocation2 + $0x190] sm:$0xff]
        %v755 = vld [vmem:[#allocation2 + $0x198] sm:$0xff]
        %v756 = vld [vmem:[#allocation2 + $0x1a0] sm:$0xff]
        %v757 = vld [vmem:[#allocation2 + $0x1a8] sm:$0xff]
        %v758 = vld [vmem:[#allocation2 + $0x1b0] sm:$0xff]
        %v759 = vld [vmem:[#allocation2 + $0x1b8] sm:$0xff]
        %v760 = vld [vmem:[#allocation2 + $0x1c0] sm:$0xff]
        %v761 = vld [vmem:[#allocation2 + $0x1c8] sm:$0xff]
        %v762 = vld [vmem:[#allocation2 + $0x1d0] sm:$0xff]
        %v763 = vld [vmem:[#allocation2 + $0x1d8] sm:$0xff]
        %v764 = vld [vmem:[#allocation2 + $0x1e0] sm:$0xff]
        %v765 = vld [vmem:[#allocation2 + $0x1e8] sm:$0xff]
        %v766 = vld [vmem:[#allocation2 + $0x1f0] sm:$0xff]
        %v767 = vld [vmem:[#allocation2 + $0x1f8] sm:$0xff]
        %v768 = vld [vmem:[#allocation2 + $0x200] sm:$0xff]
        %v769 = vld [vmem:[#allocation2 + $0x208] sm:$0xff]
        %v770 = vld [vmem:[#allocation2 + $0x210] sm:$0xff]
        %v771 = vld [vmem:[#allocation2 + $0x218] sm:$0xff]
        %v772 = vld [vmem:[#allocation2 + $0x220] sm:$0xff]
        %v773 = vld [vmem:[#allocation2 + $0x228] sm:$0xff]
        %v774 = vld [vmem:[#allocation2 + $0x230] sm:$0xff]
        %v775 = vld [vmem:[#allocation2 + $0x238] sm:$0xff]
        %v776 = vld [vmem:[#allocation2 + $0x240] sm:$0xff]
        %v777 = vld [vmem:[#allocation2 + $0x248] sm:$0xff]
        %v778 = vld [vmem:[#allocation2 + $0x250] sm:$0xff]
        %v779 = vld [vmem:[#allocation2 + $0x258] sm:$0xff]
        %v780 = vld [vmem:[#allocation2 + $0x260] sm:$0xff]
        %v781 = vld [vmem:[#allocation2 + $0x268] sm:$0xff]
        %v782 = vld [vmem:[#allocation2 + $0x270] sm:$0xff]
        %v783 = vld [vmem:[#allocation2 + $0x278] sm:$0xff]
        %v784 = vld [vmem:[#allocation2 + $0x280] sm:$0xff]
        %v785 = vld [vmem:[#allocation2 + $0x288] sm:$0xff]
        %v786 = vld [vmem:[#allocation2 + $0x290] sm:$0xff]
        %v787 = vld [vmem:[#allocation2 + $0x298] sm:$0xff]
        %v788 = vld [vmem:[#allocation2 + $0x2a0] sm:$0xff]
        %v789 = vld [vmem:[#allocation2 + $0x2a8] sm:$0xff]
        %v790 = vld [vmem:[#allocation2 + $0x2b0] sm:$0xff]
        %v791 = vld [vmem:[#allocation2 + $0x2b8] sm:$0xff]
        %v792 = vld [vmem:[#allocation2 + $0x2c0] sm:$0xff]
        %v793 = vld [vmem:[#allocation2 + $0x2c8] sm:$0xff]
        %v794 = vld [vmem:[#allocation2 + $0x2d0] sm:$0xff]
        %v795 = vld [vmem:[#allocation2 + $0x2d8] sm:$0xff]
        %v796 = vld [vmem:[#allocation2 + $0x2e0] sm:$0xff]
        %v797 = vld [vmem:[#allocation2 + $0x2e8] sm:$0xff]
        %v798 = vld [vmem:[#allocation2 + $0x2f0] sm:$0xff]
        %v799 = vld [vmem:[#allocation2 + $0x2f8] sm:$0xff]
        %v800 = vld [vmem:[#allocation2 + $0x300] sm:$0xff]
        %v801 = vld [vmem:[#allocation2 + $0x308] sm:$0xff]
        %v802 = vld [vmem:[#allocation2 + $0x310] sm:$0xff]
        %v803 = vld [vmem:[#allocation2 + $0x318] sm:$0xff]
        %v804 = vld [vmem:[#allocation2 + $0x320] sm:$0xff]
        %v805 = vld [vmem:[#allocation2 + $0x328] sm:$0xff]
        %v806 = vld [vmem:[#allocation2 + $0x330] sm:$0xff]
        %v807 = vld [vmem:[#allocation2 + $0x338] sm:$0xff]
        %v808 = vld [vmem:[#allocation2 + $0x340] sm:$0xff]
        %v809 = vld [vmem:[#allocation2 + $0x348] sm:$0xff]
        %v810 = vld [vmem:[#allocation2 + $0x350] sm:$0xff]
        %v811 = vld [vmem:[#allocation2 + $0x358] sm:$0xff]
        %v812 = vld [vmem:[#allocation2 + $0x360] sm:$0xff]
        %v813 = vld [vmem:[#allocation2 + $0x368] sm:$0xff]
        %v814 = vld [vmem:[#allocation2 + $0x370] sm:$0xff]
        %v815 = vld [vmem:[#allocation2 + $0x378] sm:$0xff]
        %v816 = vld [vmem:[#allocation2 + $0x380] sm:$0xff]
        %v817 = vld [vmem:[#allocation2 + $0x388] sm:$0xff]
        %v818 = vld [vmem:[#allocation2 + $0x390] sm:$0xff]
        %v819 = vld [vmem:[#allocation2 + $0x398] sm:$0xff]
        %v820 = vld [vmem:[#allocation2 + $0x3a0] sm:$0xff]
        %v821 = vld [vmem:[#allocation2 + $0x3a8] sm:$0xff]
        %v822 = vld [vmem:[#allocation2 + $0x3b0] sm:$0xff]
        %v823 = vld [vmem:[#allocation2 + $0x3b8] sm:$0xff]
        %v824 = vld [vmem:[#allocation2 + $0x3c0] sm:$0xff]
        %v825 = vld [vmem:[#allocation2 + $0x3c8] sm:$0xff]
        %v826 = vld [vmem:[#allocation2 + $0x3d0] sm:$0xff]
        %v827 = vld [vmem:[#allocation2 + $0x3d8] sm:$0xff]
        %v828 = vld [vmem:[#allocation2 + $0x3e0] sm:$0xff]
        %v829 = vld [vmem:[#allocation2 + $0x3e8] sm:$0xff]
        %v830 = vld [vmem:[#allocation2 + $0x3f0] sm:$0xff]
        %v831 = vld [vmem:[#allocation2 + $0x3f8] sm:$0xff]
        %v832 = vld [vmem:[#allocation2 + $0x400] sm:$0xff]
        %v833 = vld [vmem:[#allocation2 + $0x408] sm:$0xff]
        %v834 = vld [vmem:[#allocation2 + $0x410] sm:$0xff]
        %v835 = vld [vmem:[#allocation2 + $0x418] sm:$0xff]
        %v836 = vld [vmem:[#allocation2 + $0x420] sm:$0xff]
        %v837 = vld [vmem:[#allocation2 + $0x428] sm:$0xff]
        %v838 = vld [vmem:[#allocation2 + $0x430] sm:$0xff]
        %v839 = vld [vmem:[#allocation2 + $0x438] sm:$0xff]
        %v840 = vld [vmem:[#allocation2 + $0x440] sm:$0xff]
        %v841 = vld [vmem:[#allocation2 + $0x448] sm:$0xff]
        %v842 = vld [vmem:[#allocation2 + $0x450] sm:$0xff]
        %v843 = vld [vmem:[#allocation2 + $0x458] sm:$0xff]
        %v844 = vld [vmem:[#allocation2 + $0x460] sm:$0xff]
        %v845 = vld [vmem:[#allocation2 + $0x468] sm:$0xff]
        %v846 = vld [vmem:[#allocation2 + $0x470] sm:$0xff]
        %v847 = vld [vmem:[#allocation2 + $0x478] sm:$0xff]
        %v848 = vld [vmem:[#allocation4] sm:$0xff]
        %v849 = vld [vmem:[#allocation4 + $0x8] sm:$0xff]
        %v850 = vld [vmem:[#allocation4 + $0x10] sm:$0xff]
        %v851 = vld [vmem:[#allocation4 + $0x18] sm:$0xff]
        %v852 = vld [vmem:[#allocation4 + $0x20] sm:$0xff]
        %v853 = vld [vmem:[#allocation4 + $0x28] sm:$0xff]
        %v854 = vld [vmem:[#allocation4 + $0x30] sm:$0xff]
        %v855 = vld [vmem:[#allocation4 + $0x38] sm:$0xff]
        %v856 = vld [vmem:[#allocation4 + $0x40] sm:$0xff]
        %v857 = vld [vmem:[#allocation4 + $0x48] sm:$0xff]
        %v858 = vld [vmem:[#allocation4 + $0x50] sm:$0xff]
        %v859 = vld [vmem:[#allocation4 + $0x58] sm:$0xff]
        %v860 = vld [vmem:[#allocation4 + $0x60] sm:$0xff]
        %v861 = vld [vmem:[#allocation4 + $0x68] sm:$0xff]
        %v862 = vld [vmem:[#allocation4 + $0x70] sm:$0xff]
        %v863 = vld [vmem:[#allocation4 + $0x78] sm:$0xff]
        %v864 = vld [vmem:[#allocation4 + $0x80] sm:$0xff]
        %v865 = vld [vmem:[#allocation4 + $0x88] sm:$0xff]
        %v866 = vld [vmem:[#allocation4 + $0x90] sm:$0xff]
        %v867 = vld [vmem:[#allocation4 + $0x98] sm:$0xff]
        %v868 = vld [vmem:[#allocation4 + $0xa0] sm:$0xff]
        %v869 = vld [vmem:[#allocation4 + $0xa8] sm:$0xff]
        %v870 = vld [vmem:[#allocation4 + $0xb0] sm:$0xff]
        %v871 = vld [vmem:[#allocation4 + $0xb8] sm:$0xff]
        %v872 = vld [vmem:[#allocation4 + $0xc0] sm:$0xff]
        %v873 = vld [vmem:[#allocation4 + $0xc8] sm:$0xff]
        %v874 = vld [vmem:[#allocation4 + $0xd0] sm:$0xff]
        %v875 = vld [vmem:[#allocation4 + $0xd8] sm:$0xff]
        %v876 = vld [vmem:[#allocation4 + $0xe0] sm:$0xff]
        %v877 = vld [vmem:[#allocation4 + $0xe8] sm:$0xff]
        %v878 = vld [vmem:[#allocation4 + $0xf0] sm:$0xff]
        %v879 = vld [vmem:[#allocation4 + $0xf8] sm:$0xff]
        %v880 = vld [vmem:[#allocation4 + $0x100] sm:$0xff]
        %v881 = vld [vmem:[#allocation4 + $0x108] sm:$0xff]
        %v882 = vld [vmem:[#allocation4 + $0x110] sm:$0xff]
        %v883 = vld [vmem:[#allocation4 + $0x118] sm:$0xff]
        %v884 = vld [vmem:[#allocation4 + $0x120] sm:$0xff]
        %v885 = vld [vmem:[#allocation4 + $0x128] sm:$0xff]
        %v886 = vld [vmem:[#allocation4 + $0x130] sm:$0xff]
        %v887 = vld [vmem:[#allocation4 + $0x138] sm:$0xff]
        %v888 = vld [vmem:[#allocation4 + $0x140] sm:$0xff]
        %v889 = vld [vmem:[#allocation4 + $0x148] sm:$0xff]
        %v890 = vld [vmem:[#allocation4 + $0x150] sm:$0xff]
        %v891 = vld [vmem:[#allocation4 + $0x158] sm:$0xff]
        %v892 = vld [vmem:[#allocation4 + $0x160] sm:$0xff]
        %v893 = vld [vmem:[#allocation4 + $0x168] sm:$0xff]
        %v894 = vld [vmem:[#allocation4 + $0x170] sm:$0xff]
        %v895 = vld [vmem:[#allocation4 + $0x178] sm:$0xff]
        %v896 = vld [vmem:[#allocation4 + $0x180] sm:$0xff]
        %v897 = vld [vmem:[#allocation4 + $0x188] sm:$0xff]
        %v898 = vld [vmem:[#allocation4 + $0x190] sm:$0xff]
        %v899 = vld [vmem:[#allocation4 + $0x198] sm:$0xff]
        %v900 = vld [vmem:[#allocation4 + $0x1a0] sm:$0xff]
        %v901 = vld [vmem:[#allocation4 + $0x1a8] sm:$0xff]
        %v902 = vld [vmem:[#allocation4 + $0x1b0] sm:$0xff]
        %v903 = vld [vmem:[#allocation4 + $0x1b8] sm:$0xff]
        %v904 = vld [vmem:[#allocation4 + $0x1c0] sm:$0xff]
        %v905 = vld [vmem:[#allocation4 + $0x1c8] sm:$0xff]
        %v906 = vld [vmem:[#allocation4 + $0x1d0] sm:$0xff]
        %v907 = vld [vmem:[#allocation4 + $0x1d8] sm:$0xff]
        %v908 = vld [vmem:[#allocation4 + $0x1e0] sm:$0xff]
        %v909 = vld [vmem:[#allocation4 + $0x1e8] sm:$0xff]
        %v910 = vld [vmem:[#allocation4 + $0x1f0] sm:$0xff]
        %v911 = vld [vmem:[#allocation4 + $0x1f8] sm:$0xff]
        %v912 = vld [vmem:[#allocation4 + $0x200] sm:$0xff]
        %v913 = vld [vmem:[#allocation4 + $0x208] sm:$0xff]
        %v914 = vld [vmem:[#allocation4 + $0x210] sm:$0xff]
        %v915 = vld [vmem:[#allocation4 + $0x218] sm:$0xff]
        %v916 = vld [vmem:[#allocation4 + $0x220] sm:$0xff]
        %v917 = vld [vmem:[#allocation4 + $0x228] sm:$0xff]
        %v918 = vld [vmem:[#allocation4 + $0x230] sm:$0xff]
        %v919 = vld [vmem:[#allocation4 + $0x238] sm:$0xff]
        %v920 = vld [vmem:[#allocation4 + $0x240] sm:$0xff]
        %v921 = vld [vmem:[#allocation4 + $0x248] sm:$0xff]
        %v922 = vld [vmem:[#allocation4 + $0x250] sm:$0xff]
        %v923 = vld [vmem:[#allocation4 + $0x258] sm:$0xff]
        %v924 = vld [vmem:[#allocation4 + $0x260] sm:$0xff]
        %v925 = vld [vmem:[#allocation4 + $0x268] sm:$0xff]
        %v926 = vld [vmem:[#allocation4 + $0x270] sm:$0xff]
        %v927 = vld [vmem:[#allocation4 + $0x278] sm:$0xff]
        %v928 = vld [vmem:[#allocation4 + $0x280] sm:$0xff]
        %v929 = vld [vmem:[#allocation4 + $0x288] sm:$0xff]
        %v930 = vld [vmem:[#allocation4 + $0x290] sm:$0xff]
        %v931 = vld [vmem:[#allocation4 + $0x298] sm:$0xff]
        %v932 = vld [vmem:[#allocation4 + $0x2a0] sm:$0xff]
        %v933 = vld [vmem:[#allocation4 + $0x2a8] sm:$0xff]
        %v934 = vld [vmem:[#allocation4 + $0x2b0] sm:$0xff]
        %v935 = vld [vmem:[#allocation4 + $0x2b8] sm:$0xff]
        %v936 = vld [vmem:[#allocation4 + $0x2c0] sm:$0xff]
        %v937 = vld [vmem:[#allocation4 + $0x2c8] sm:$0xff]
        %v938 = vld [vmem:[#allocation4 + $0x2d0] sm:$0xff]
        %v939 = vld [vmem:[#allocation4 + $0x2d8] sm:$0xff]
        %v940 = vld [vmem:[#allocation4 + $0x2e0] sm:$0xff]
        %v941 = vld [vmem:[#allocation4 + $0x2e8] sm:$0xff]
        %v942 = vld [vmem:[#allocation4 + $0x2f0] sm:$0xff]
        %v943 = vld [vmem:[#allocation4 + $0x2f8] sm:$0xff]
        %v944 = vld [vmem:[#allocation4 + $0x300] sm:$0xff]
        %v945 = vld [vmem:[#allocation4 + $0x308] sm:$0xff]
        %v946 = vld [vmem:[#allocation4 + $0x310] sm:$0xff]
        %v947 = vld [vmem:[#allocation4 + $0x318] sm:$0xff]
        %v948 = vld [vmem:[#allocation4 + $0x320] sm:$0xff]
        %v949 = vld [vmem:[#allocation4 + $0x328] sm:$0xff]
        %v950 = vld [vmem:[#allocation4 + $0x330] sm:$0xff]
        %v951 = vld [vmem:[#allocation4 + $0x338] sm:$0xff]
        %v952 = vld [vmem:[#allocation4 + $0x340] sm:$0xff]
        %v953 = vld [vmem:[#allocation4 + $0x348] sm:$0xff]
        %v954 = vld [vmem:[#allocation4 + $0x350] sm:$0xff]
        %v955 = vld [vmem:[#allocation4 + $0x358] sm:$0xff]
        %v956 = vld [vmem:[#allocation4 + $0x360] sm:$0xff]
        %v957 = vld [vmem:[#allocation4 + $0x368] sm:$0xff]
        %v958 = vld [vmem:[#allocation4 + $0x370] sm:$0xff]
        %v959 = vld [vmem:[#allocation4 + $0x378] sm:$0xff]
        %v960 = vld [vmem:[#allocation4 + $0x380] sm:$0xff]
        %v961 = vld [vmem:[#allocation4 + $0x388] sm:$0xff]
        %v962 = vld [vmem:[#allocation4 + $0x390] sm:$0xff]
        %v963 = vld [vmem:[#allocation4 + $0x398] sm:$0xff]
        %v964 = vld [vmem:[#allocation4 + $0x3a0] sm:$0xff]
        %v965 = vld [vmem:[#allocation4 + $0x3a8] sm:$0xff]
        %v966 = vld [vmem:[#allocation4 + $0x3b0] sm:$0xff]
        %v967 = vld [vmem:[#allocation4 + $0x3b8] sm:$0xff]
        %v968 = vld [vmem:[#allocation4 + $0x3c0] sm:$0xff]
        %v969 = vld [vmem:[#allocation4 + $0x3c8] sm:$0xff]
        %v970 = vld [vmem:[#allocation4 + $0x3d0] sm:$0xff]
        %v971 = vld [vmem:[#allocation4 + $0x3d8] sm:$0xff]
        %v972 = vld [vmem:[#allocation4 + $0x3e0] sm:$0xff]
        %v973 = vld [vmem:[#allocation4 + $0x3e8] sm:$0xff]
        %v974 = vld [vmem:[#allocation4 + $0x3f0] sm:$0xff]
        %v975 = vld [vmem:[#allocation4 + $0x3f8] sm:$0xff]
        %v976 = vld [vmem:[#allocation4 + $0x400] sm:$0xff]
        %v977 = vld [vmem:[#allocation4 + $0x408] sm:$0xff]
        %v978 = vld [vmem:[#allocation4 + $0x410] sm:$0xff]
        %v979 = vld [vmem:[#allocation4 + $0x418] sm:$0xff]
        %v980 = vld [vmem:[#allocation4 + $0x420] sm:$0xff]
        %v981 = vld [vmem:[#allocation4 + $0x428] sm:$0xff]
        %v982 = vld [vmem:[#allocation4 + $0x430] sm:$0xff]
        %v983 = vld [vmem:[#allocation4 + $0x438] sm:$0xff]
        %v984 = vld [vmem:[#allocation4 + $0x440] sm:$0xff]
        %v985 = vld [vmem:[#allocation4 + $0x448] sm:$0xff]
        %v986 = vld [vmem:[#allocation4 + $0x450] sm:$0xff]
        %v987 = vld [vmem:[#allocation4 + $0x458] sm:$0xff]
        %v988 = vld [vmem:[#allocation4 + $0x460] sm:$0xff]
        %v989 = vld [vmem:[#allocation4 + $0x468] sm:$0xff]
        %v990 = vld [vmem:[#allocation4 + $0x470] sm:$0xff]
        %v991 = vld [vmem:[#allocation4 + $0x478] sm:$0xff]
        %v992 = vld [vmem:[#allocation4 + $0x480] sm:$0xff]
        %v993 = vld [vmem:[#allocation4 + $0x488] sm:$0xff]
        %v994 = vld [vmem:[#allocation4 + $0x490] sm:$0xff]
        %v995 = vld [vmem:[#allocation4 + $0x498] sm:$0xff]
        %v996 = vld [vmem:[#allocation4 + $0x4a0] sm:$0xff]
        %v997 = vld [vmem:[#allocation4 + $0x4a8] sm:$0xff]
        %v998 = vld [vmem:[#allocation4 + $0x4b0] sm:$0xff]
        %v999 = vld [vmem:[#allocation4 + $0x4b8] sm:$0xff]
        %v1000 = vld [vmem:[#allocation4 + $0x4c0] sm:$0xff]
        %v1001 = vld [vmem:[#allocation4 + $0x4c8] sm:$0xff]
        %v1002 = vld [vmem:[#allocation4 + $0x4d0] sm:$0xff]
        %v1003 = vld [vmem:[#allocation4 + $0x4d8] sm:$0xff]
        %v1004 = vld [vmem:[#allocation4 + $0x4e0] sm:$0xff]
        %v1005 = vld [vmem:[#allocation4 + $0x4e8] sm:$0xff]
        %v1006 = vld [vmem:[#allocation4 + $0x4f0] sm:$0xff]
        %v1007 = vld [vmem:[#allocation4 + $0x4f8] sm:$0xff]
        %v1008 = vld [vmem:[#allocation4 + $0x500] sm:$0xff]
        %v1009 = vld [vmem:[#allocation4 + $0x508] sm:$0xff]
        %v1010 = vld [vmem:[#allocation4 + $0x510] sm:$0xff]
        %v1011 = vld [vmem:[#allocation4 + $0x518] sm:$0xff]
        %v1012 = vld [vmem:[#allocation4 + $0x520] sm:$0xff]
        %v1013 = vld [vmem:[#allocation4 + $0x528] sm:$0xff]
        %v1014 = vld [vmem:[#allocation4 + $0x530] sm:$0xff]
        %v1015 = vld [vmem:[#allocation4 + $0x538] sm:$0xff]
        %v1016 = vld [vmem:[#allocation4 + $0x540] sm:$0xff]
        %v1017 = vld [vmem:[#allocation4 + $0x548] sm:$0xff]
        %v1018 = vld [vmem:[#allocation4 + $0x550] sm:$0xff]
        %v1019 = vld [vmem:[#allocation4 + $0x558] sm:$0xff]
        %v1020 = vld [vmem:[#allocation4 + $0x560] sm:$0xff]
        %v1021 = vld [vmem:[#allocation4 + $0x568] sm:$0xff]
        %v1022 = vld [vmem:[#allocation4 + $0x570] sm:$0xff]
        %v1023 = vld [vmem:[#allocation4 + $0x578] sm:$0xff]
        %v1024 = vld [vmem:[#allocation4 + $0x580] sm:$0xff]
        %v1025 = vld [vmem:[#allocation4 + $0x588] sm:$0xff]
        %v1026 = vld [vmem:[#allocation4 + $0x590] sm:$0xff]
        %v1027 = vld [vmem:[#allocation4 + $0x598] sm:$0xff]
        %v1028 = vld [vmem:[#allocation4 + $0x5a0] sm:$0xff]
        %v1029 = vld [vmem:[#allocation4 + $0x5a8] sm:$0xff]
        %v1030 = vld [vmem:[#allocation4 + $0x5b0] sm:$0xff]
        %v1031 = vld [vmem:[#allocation4 + $0x5b8] sm:$0xff]
        %v1032 = vld [vmem:[#allocation4 + $0x5c0] sm:$0xff]
        %v1033 = vld [vmem:[#allocation4 + $0x5c8] sm:$0xff]
        %v1034 = vld [vmem:[#allocation4 + $0x5d0] sm:$0xff]
        %v1035 = vld [vmem:[#allocation4 + $0x5d8] sm:$0xff]
        %v1036 = vld [vmem:[#allocation4 + $0x5e0] sm:$0xff]
        %v1037 = vld [vmem:[#allocation4 + $0x5e8] sm:$0xff]
        %v1038 = vld [vmem:[#allocation4 + $0x5f0] sm:$0xff]
        %v1039 = vld [vmem:[#allocation4 + $0x5f8] sm:$0xff]
        %v1040 = vld [vmem:[#allocation4 + $0x600] sm:$0xff]
        %v1041 = vld [vmem:[#allocation4 + $0x608] sm:$0xff]
        %v1042 = vld [vmem:[#allocation4 + $0x610] sm:$0xff]
        %v1043 = vld [vmem:[#allocation4 + $0x618] sm:$0xff]
        %v1044 = vld [vmem:[#allocation4 + $0x620] sm:$0xff]
        %v1045 = vld [vmem:[#allocation4 + $0x628] sm:$0xff]
        %v1046 = vld [vmem:[#allocation4 + $0x630] sm:$0xff]
        %v1047 = vld [vmem:[#allocation4 + $0x638] sm:$0xff]
        %v1048 = vld [vmem:[#allocation4 + $0x640] sm:$0xff]
        %v1049 = vld [vmem:[#allocation4 + $0x648] sm:$0xff]
        %v1050 = vld [vmem:[#allocation4 + $0x650] sm:$0xff]
        %v1051 = vld [vmem:[#allocation4 + $0x658] sm:$0xff]
        %v1052 = vld [vmem:[#allocation4 + $0x660] sm:$0xff]
        %v1053 = vld [vmem:[#allocation4 + $0x668] sm:$0xff]
        %v1054 = vld [vmem:[#allocation4 + $0x670] sm:$0xff]
        %v1055 = vld [vmem:[#allocation4 + $0x678] sm:$0xff]
        %v1056 = vld [vmem:[#allocation4 + $0x680] sm:$0xff]
        %v1057 = vld [vmem:[#allocation4 + $0x688] sm:$0xff]
        %v1058 = vld [vmem:[#allocation4 + $0x690] sm:$0xff]
        %v1059 = vld [vmem:[#allocation4 + $0x698] sm:$0xff]
        %v1060 = vld [vmem:[#allocation4 + $0x6a0] sm:$0xff]
        %v1061 = vld [vmem:[#allocation4 + $0x6a8] sm:$0xff]
        %v1062 = vld [vmem:[#allocation4 + $0x6b0] sm:$0xff]
        %v1063 = vld [vmem:[#allocation4 + $0x6b8] sm:$0xff]
        %v1064 = vld [vmem:[#allocation4 + $0x6c0] sm:$0xff]
        %v1065 = vld [vmem:[#allocation4 + $0x6c8] sm:$0xff]
        %v1066 = vld [vmem:[#allocation4 + $0x6d0] sm:$0xff]
        %v1067 = vld [vmem:[#allocation4 + $0x6d8] sm:$0xff]
        %v1068 = vld [vmem:[#allocation4 + $0x6e0] sm:$0xff]
        %v1069 = vld [vmem:[#allocation4 + $0x6e8] sm:$0xff]
        %v1070 = vld [vmem:[#allocation4 + $0x6f0] sm:$0xff]
        %v1071 = vld [vmem:[#allocation4 + $0x6f8] sm:$0xff]
        %v1072 = vld [vmem:[#allocation4 + $0x700] sm:$0xff]
        %v1073 = vld [vmem:[#allocation4 + $0x708] sm:$0xff]
        %v1074 = vld [vmem:[#allocation4 + $0x710] sm:$0xff]
        %v1075 = vld [vmem:[#allocation4 + $0x718] sm:$0xff]
        %v1076 = vld [vmem:[#allocation4 + $0x720] sm:$0xff]
        %v1077 = vld [vmem:[#allocation4 + $0x728] sm:$0xff]
        %v1078 = vld [vmem:[#allocation4 + $0x730] sm:$0xff]
        %v1079 = vld [vmem:[#allocation4 + $0x738] sm:$0xff]
        %v1080 = vld [vmem:[#allocation4 + $0x740] sm:$0xff]
        %v1081 = vld [vmem:[#allocation4 + $0x748] sm:$0xff]
        %v1082 = vld [vmem:[#allocation4 + $0x750] sm:$0xff]
        %v1083 = vld [vmem:[#allocation4 + $0x758] sm:$0xff]
        %v1084 = vld [vmem:[#allocation4 + $0x760] sm:$0xff]
        %v1085 = vld [vmem:[#allocation4 + $0x768] sm:$0xff]
        %v1086 = vld [vmem:[#allocation4 + $0x770] sm:$0xff]
        %v1087 = vld [vmem:[#allocation4 + $0x778] sm:$0xff]
        %v1088 = vld [vmem:[#allocation4 + $0x780] sm:$0xff]
        %v1089 = vld [vmem:[#allocation4 + $0x788] sm:$0xff]
        %v1090 = vld [vmem:[#allocation4 + $0x790] sm:$0xff]
        %v1091 = vld [vmem:[#allocation4 + $0x798] sm:$0xff]
        %v1092 = vld [vmem:[#allocation4 + $0x7a0] sm:$0xff]
        %v1093 = vld [vmem:[#allocation4 + $0x7a8] sm:$0xff]
        %v1094 = vld [vmem:[#allocation4 + $0x7b0] sm:$0xff]
        %v1095 = vld [vmem:[#allocation4 + $0x7b8] sm:$0xff]
        %v1096 = vld [vmem:[#allocation4 + $0x7c0] sm:$0xff]
        %v1097 = vld [vmem:[#allocation4 + $0x7c8] sm:$0xff]
        %v1098 = vld [vmem:[#allocation4 + $0x7d0] sm:$0xff]
        %v1099 = vld [vmem:[#allocation4 + $0x7d8] sm:$0xff]
        %v1100 = vld [vmem:[#allocation4 + $0x7e0] sm:$0xff]
        %v1101 = vld [vmem:[#allocation4 + $0x7e8] sm:$0xff]
        %v1102 = vld [vmem:[#allocation4 + $0x7f0] sm:$0xff]
        %v1103 = vld [vmem:[#allocation4 + $0x7f8] sm:$0xff]
        %v1104 = vld [vmem:[#allocation4 + $0x800] sm:$0xff]
        %v1105 = vld [vmem:[#allocation4 + $0x808] sm:$0xff]
        %v1106 = vld [vmem:[#allocation4 + $0x810] sm:$0xff]
        %v1107 = vld [vmem:[#allocation4 + $0x818] sm:$0xff]
        %v1108 = vld [vmem:[#allocation4 + $0x820] sm:$0xff]
        %v1109 = vld [vmem:[#allocation4 + $0x828] sm:$0xff]
        %v1110 = vld [vmem:[#allocation4 + $0x830] sm:$0xff]
        %v1111 = vld [vmem:[#allocation4 + $0x838] sm:$0xff]
        %v1112 = vld [vmem:[#allocation4 + $0x840] sm:$0xff]
        %v1113 = vld [vmem:[#allocation4 + $0x848] sm:$0xff]
        %v1114 = vld [vmem:[#allocation4 + $0x850] sm:$0xff]
        %v1115 = vld [vmem:[#allocation4 + $0x858] sm:$0xff]
        %v1116 = vld [vmem:[#allocation4 + $0x860] sm:$0xff]
        %v1117 = vld [vmem:[#allocation4 + $0x868] sm:$0xff]
        %v1118 = vld [vmem:[#allocation4 + $0x870] sm:$0xff]
        %v1119 = vld [vmem:[#allocation4 + $0x878] sm:$0xff]
        %v1120 = vld [vmem:[#allocation4 + $0x880] sm:$0xff]
        %v1121 = vld [vmem:[#allocation4 + $0x888] sm:$0xff]
        %v1122 = vld [vmem:[#allocation4 + $0x890] sm:$0xff]
        %v1123 = vld [vmem:[#allocation4 + $0x898] sm:$0xff]
        %v1124 = vld [vmem:[#allocation4 + $0x8a0] sm:$0xff]
        %v1125 = vld [vmem:[#allocation4 + $0x8a8] sm:$0xff]
        %v1126 = vld [vmem:[#allocation4 + $0x8b0] sm:$0xff]
        %v1127 = vld [vmem:[#allocation4 + $0x8b8] sm:$0xff]
        %v1128 = vld [vmem:[#allocation4 + $0x8c0] sm:$0xff]
        %v1129 = vld [vmem:[#allocation4 + $0x8c8] sm:$0xff]
        %v1130 = vld [vmem:[#allocation4 + $0x8d0] sm:$0xff]
        %v1131 = vld [vmem:[#allocation4 + $0x8d8] sm:$0xff]
        %v1132 = vld [vmem:[#allocation4 + $0x8e0] sm:$0xff]
        %v1133 = vld [vmem:[#allocation4 + $0x8e8] sm:$0xff]
        %v1134 = vld [vmem:[#allocation4 + $0x8f0] sm:$0xff]
        %v1135 = vld [vmem:[#allocation4 + $0x8f8] sm:$0xff]
        %1136 = vmatprep.subr.mxu0 %v849
        %1137 = vmatpush1.msra.mxu0 %v848
        %1138 = vmatprep.subr.mxu0 %v851
        %1139 = vmatpush1.msra.mxu0 %v850
        %1140 = vmatprep.subr.mxu0 %v853
        %1141 = vmatpush1.msra.mxu0 %v852
        %1142 = vmatprep.subr.mxu0 %v855
        %1143 = vmatpush1.msra.mxu0 %v854
        %1144 = vmatprep.subr.mxu0 %v857
        %1145 = vmatpush1.msra.mxu0 %v856
        %1146 = vmatprep.subr.mxu0 %v859
        %1147 = vmatpush1.msra.mxu0 %v858
        %1148 = vmatprep.subr.mxu0 %v861
        %1149 = vmatpush1.msra.mxu0 %v860
        %1150 = vmatprep.subr.mxu0 %v863
        %1151 = vmatpush1.msra.mxu0 %v862
        %1152 = vmatprep.subr.mxu0 %v865
        %1153 = vmatpush1.msra.mxu0 %v864
        %1154 = vmatprep.subr.mxu0 %v867
        %1155 = vmatpush1.msra.mxu0 %v866
        %1156 = vmatprep.subr.mxu0 %v869
        %1157 = vmatpush1.msra.mxu0 %v868
        %1158 = vmatprep.subr.mxu0 %v871
        %1159 = vmatpush1.msra.mxu0 %v870
        %1160 = vmatprep.subr.mxu0 %v873
        %1161 = vmatpush1.msra.mxu0 %v872
        %1162 = vmatprep.subr.mxu0 %v875
        %1163 = vmatpush1.msra.mxu0 %v874
        %1164 = vmatprep.subr.mxu0 %v877
        %1165 = vmatpush1.msra.mxu0 %v876
        %1166 = vmatprep.subr.mxu0 %v879
        %1167 = vmatpush1.msra.mxu0 %v878
        %1168 = vmatprep.subr.mxu0 %v881
        %1169 = vmatpush1.msra.mxu0 %v880
        %1170 = vmatprep.subr.mxu0 %v883
        %1171 = vmatpush1.msra.mxu0 %v882
        %1172 = vmatprep.subr.mxu0 %v885
        %1173 = vmatpush1.msra.mxu0 %v884
        %1174 = vmatprep.subr.mxu0 %v887
        %1175 = vmatpush1.msra.mxu0 %v886
        %1176 = vmatprep.subr.mxu0 %v889
        %1177 = vmatpush1.msra.mxu0 %v888
        %1178 = vmatprep.subr.mxu0 %v891
        %1179 = vmatpush1.msra.mxu0 %v890
        %1180 = vmatprep.subr.mxu0 %v893
        %1181 = vmatpush1.msra.mxu0 %v892
        %1182 = vmatprep.subr.mxu0 %v895
        %1183 = vmatpush1.msra.mxu0 %v894
        %1184 = vmatprep.subr.mxu0 %v897
        %1185 = vmatpush1.msra.mxu0 %v896
        %1186 = vmatprep.subr.mxu0 %v899
        %1187 = vmatpush1.msra.mxu0 %v898
        %1188 = vmatprep.subr.mxu0 %v901
        %1189 = vmatpush1.msra.mxu0 %v900
        %1190 = vmatprep.subr.mxu0 %v903
        %1191 = vmatpush1.msra.mxu0 %v902
        %1192 = vmatprep.subr.mxu0 %v905
        %1193 = vmatpush1.msra.mxu0 %v904
        %1194 = vmatprep.subr.mxu0 %v907
        %1195 = vmatpush1.msra.mxu0 %v906
        %1196 = vmatprep.subr.mxu0 %v909
        %1197 = vmatpush1.msra.mxu0 %v908
        %1198 = vmatprep.subr.mxu0 %v911
        %1199 = vmatpush1.msra.mxu0 %v910
        %1200 = vmatprep.mubr.f32.mxu0 %v705
        %1201 = vmatmul.mubr.f32.gmra.mrb[0].mxu0 %v704
        %v1202 = vpop.f32.mrb[0].mxu0
        %v1203 = vadd.f32 0.0, %v1202
        %v1204 = vpop.f32.mrb[0].mxu0
        %v1205 = vadd.f32 0.0, %v1204
        %1206 = vmatprep.mubr.f32.mxu0 %v714
        %1207 = vmatmul.mubr.f32.gmra.mrb[0].mxu0 %v713
        %v1208 = vpop.f32.mrb[0].mxu0
        %v1209 = vadd.f32 0.0, %v1208
        %v1210 = vpop.f32.mrb[0].mxu0
        %v1211 = vadd.f32 0.0, %v1210
        %1212 = vmatprep.mubr.f32.mxu0 %v723
        %1213 = vmatmul.mubr.f32.gmra.mrb[0].mxu0 %v722
        %v1214 = vpop.f32.mrb[0].mxu0
        %v1215 = vadd.f32 0.0, %v1214
        %v1216 = vpop.f32.mrb[0].mxu0
        %v1217 = vadd.f32 0.0, %v1216
        %1218 = vmatprep.mubr.f32.mxu0 %v732
        %1219 = vmatmul.mubr.f32.gmra.mrb[0].mxu0 %v731
        %v1220 = vpop.f32.mrb[0].mxu0
        %v1221 = vadd.f32 0.0, %v1220
        %v1222 = vpop.f32.mrb[0].mxu0
        %v1223 = vadd.f32 0.0, %v1222
        %1224 = vmatprep.mubr.f32.mxu0 %v741
        %1225 = vmatmul.mubr.f32.gmra.mrb[0].mxu0 %v740
        %v1226 = vpop.f32.mrb[0].mxu0
        %v1227 = vadd.f32 0.0, %v1226
        %v1228 = vpop.f32.mrb[0].mxu0
        %v1229 = vadd.f32 0.0, %v1228
        %1230 = vmatprep.mubr.f32.mxu0 %v750
        %1231 = vmatmul.mubr.f32.gmra.mrb[0].mxu0 %v749
        %v1232 = vpop.f32.mrb[0].mxu0
        %v1233 = vadd.f32 0.0, %v1232
        %v1234 = vpop.f32.mrb[0].mxu0
        %v1235 = vadd.f32 0.0, %v1234
        %1236 = vmatprep.mubr.f32.mxu0 %v759
        %1237 = vmatmul.mubr.f32.gmra.mrb[0].mxu0 %v758
        %v1238 = vpop.f32.mrb[0].mxu0
        %v1239 = vadd.f32 0.0, %v1238
        %v1240 = vpop.f32.mrb[0].mxu0
        %v1241 = vadd.f32 0.0, %v1240
        %1242 = vmatprep.mubr.f32.mxu0 %v768
        %1243 = vmatmul.mubr.f32.gmra.mrb[0].mxu0 %v767
        %v1244 = vpop.f32.mrb[0].mxu0
        %v1245 = vadd.f32 0.0, %v1244
        %v1246 = vpop.f32.mrb[0].mxu0
        %v1247 = vadd.f32 0.0, %v1246
        %1248 = vmatprep.mubr.f32.mxu0 %v777
        %1249 = vmatmul.mubr.f32.gmra.mrb[0].mxu0 %v776
        %v1250 = vpop.f32.mrb[0].mxu0
        %v1251 = vadd.f32 0.0, %v1250
        %v1252 = vpop.f32.mrb[0].mxu0
        %v1253 = vadd.f32 0.0, %v1252
        %1254 = vmatprep.mubr.f32.mxu0 %v786
        %1255 = vmatmul.mubr.f32.gmra.mrb[0].mxu0 %v785
        %v1256 = vpop.f32.mrb[0].mxu0
        %v1257 = vadd.f32 0.0, %v1256
        %v1258 = vpop.f32.mrb[0].mxu0
        %v1259 = vadd.f32 0.0, %v1258
        %1260 = vmatprep.mubr.f32.mxu0 %v795
        %1261 = vmatmul.mubr.f32.gmra.mrb[0].mxu0 %v794
        %v1262 = vpop.f32.mrb[0].mxu0
        %v1263 = vadd.f32 0.0, %v1262
        %v1264 = vpop.f32.mrb[0].mxu0
        %v1265 = vadd.f32 0.0, %v1264
        %1266 = vmatprep.mubr.f32.mxu0 %v804
        %1267 = vmatmul.mubr.f32.gmra.mrb[0].mxu0 %v803
        %v1268 = vpop.f32.mrb[0].mxu0
        %v1269 = vadd.f32 0.0, %v1268
        %v1270 = vpop.f32.mrb[0].mxu0
        %v1271 = vadd.f32 0.0, %v1270
        %1272 = vmatprep.mubr.f32.mxu0 %v813
        %1273 = vmatmul.mubr.f32.gmra.mrb[0].mxu0 %v812
        %v1274 = vpop.f32.mrb[0].mxu0
        %v1275 = vadd.f32 0.0, %v1274
        %v1276 = vpop.f32.mrb[0].mxu0
        %v1277 = vadd.f32 0.0, %v1276
        %1278 = vmatprep.mubr.f32.mxu0 %v822
        %1279 = vmatmul.mubr.f32.gmra.mrb[0].mxu0 %v821
        %v1280 = vpop.f32.mrb[0].mxu0
        %v1281 = vadd.f32 0.0, %v1280
        %v1282 = vpop.f32.mrb[0].mxu0
        %v1283 = vadd.f32 0.0, %v1282
        %1284 = vmatprep.mubr.f32.mxu0 %v831
        %1285 = vmatmul.mubr.f32.gmra.mrb[0].mxu0 %v830
        %v1286 = vpop.f32.mrb[0].mxu0
        %v1287 = vadd.f32 0.0, %v1286
        %v1288 = vpop.f32.mrb[0].mxu0
        %v1289 = vadd.f32 0.0, %v1288
        %1290 = vmatprep.mubr.f32.mxu0 %v840
        %1291 = vmatmul.mubr.f32.gmra.mrb[0].mxu0 %v839
        %v1292 = vpop.f32.mrb[0].mxu0
        %v1293 = vadd.f32 0.0, %v1292
        %v1294 = vpop.f32.mrb[0].mxu0
        %v1295 = vadd.f32 0.0, %v1294
        %1296 = vdwg.mxu0
        %1297 = vmatprep.subr.mxu0 %v913
        %1298 = vmatpush1.msra.mxu0 %v912
        %1299 = vmatprep.subr.mxu0 %v915
        %1300 = vmatpush1.msra.mxu0 %v914
        %1301 = vmatprep.subr.mxu0 %v917
        %1302 = vmatpush1.msra.mxu0 %v916
        %1303 = vmatprep.subr.mxu0 %v919
        %1304 = vmatpush1.msra.mxu0 %v918
        %1305 = vmatprep.subr.mxu0 %v921
        %1306 = vmatpush1.msra.mxu0 %v920
        %1307 = vmatprep.subr.mxu0 %v923
        %1308 = vmatpush1.msra.mxu0 %v922
        %1309 = vmatprep.subr.mxu0 %v925
        %1310 = vmatpush1.msra.mxu0 %v924
        %1311 = vmatprep.subr.mxu0 %v927
        %1312 = vmatpush1.msra.mxu0 %v926
        %1313 = vmatprep.subr.mxu0 %v929
        %1314 = vmatpush1.msra.mxu0 %v928
        %1315 = vmatprep.subr.mxu0 %v931
        %1316 = vmatpush1.msra.mxu0 %v930
        %1317 = vmatprep.subr.mxu0 %v933
        %1318 = vmatpush1.msra.mxu0 %v932
        %1319 = vmatprep.subr.mxu0 %v935
        %1320 = vmatpush1.msra.mxu0 %v934
        %1321 = vmatprep.subr.mxu0 %v937
        %1322 = vmatpush1.msra.mxu0 %v936
        %1323 = vmatprep.subr.mxu0 %v939
        %1324 = vmatpush1.msra.mxu0 %v938
        %1325 = vmatprep.subr.mxu0 %v941
        %1326 = vmatpush1.msra.mxu0 %v940
        %1327 = vmatprep.subr.mxu0 %v943
        %1328 = vmatpush1.msra.mxu0 %v942
        %1329 = vmatprep.subr.mxu0 %v945
        %1330 = vmatpush1.msra.mxu0 %v944
        %1331 = vmatprep.subr.mxu0 %v947
        %1332 = vmatpush1.msra.mxu0 %v946
        %1333 = vmatprep.subr.mxu0 %v949
        %1334 = vmatpush1.msra.mxu0 %v948
        %1335 = vmatprep.subr.mxu0 %v951
        %1336 = vmatpush1.msra.mxu0 %v950
        %1337 = vmatprep.subr.mxu0 %v953
        %1338 = vmatpush1.msra.mxu0 %v952
        %1339 = vmatprep.subr.mxu0 %v955
        %1340 = vmatpush1.msra.mxu0 %v954
        %1341 = vmatprep.subr.mxu0 %v957
        %1342 = vmatpush1.msra.mxu0 %v956
        %1343 = vmatprep.subr.mxu0 %v959
        %1344 = vmatpush1.msra.mxu0 %v958
        %1345 = vmatprep.subr.mxu0 %v961
        %1346 = vmatpush1.msra.mxu0 %v960
        %1347 = vmatprep.subr.mxu0 %v963
        %1348 = vmatpush1.msra.mxu0 %v962
        %1349 = vmatprep.subr.mxu0 %v965
        %1350 = vmatpush1.msra.mxu0 %v964
        %1351 = vmatprep.subr.mxu0 %v967
        %1352 = vmatpush1.msra.mxu0 %v966
        %1353 = vmatprep.subr.mxu0 %v969
        %1354 = vmatpush1.msra.mxu0 %v968
        %1355 = vmatprep.subr.mxu0 %v971
        %1356 = vmatpush1.msra.mxu0 %v970
        %1357 = vmatprep.subr.mxu0 %v973
        %1358 = vmatpush1.msra.mxu0 %v972
        %1359 = vmatprep.subr.mxu0 %v975
        %1360 = vmatpush1.msra.mxu0 %v974
        %1361 = vmatprep.mubr.f32.mxu0 %v707
        %1362 = vmatmul.mubr.f32.gmra.mrb[0].mxu0 %v706
        %v1363 = vpop.f32.mrb[0].mxu0
        %v1364 = vadd.f32 %v1203, %v1363
        %v1365 = vpop.f32.mrb[0].mxu0
        %v1366 = vadd.f32 %v1205, %v1365
        %1367 = vmatprep.mubr.f32.mxu0 %v716
        %1368 = vmatmul.mubr.f32.gmra.mrb[0].mxu0 %v715
        %v1369 = vpop.f32.mrb[0].mxu0
        %v1370 = vadd.f32 %v1209, %v1369
        %v1371 = vpop.f32.mrb[0].mxu0
        %v1372 = vadd.f32 %v1211, %v1371
        %1373 = vmatprep.mubr.f32.mxu0 %v725
        %1374 = vmatmul.mubr.f32.gmra.mrb[0].mxu0 %v724
        %v1375 = vpop.f32.mrb[0].mxu0
        %v1376 = vadd.f32 %v1215, %v1375
        %v1377 = vpop.f32.mrb[0].mxu0
        %v1378 = vadd.f32 %v1217, %v1377
        %1379 = vmatprep.mubr.f32.mxu0 %v734
        %1380 = vmatmul.mubr.f32.gmra.mrb[0].mxu0 %v733
        %v1381 = vpop.f32.mrb[0].mxu0
        %v1382 = vadd.f32 %v1221, %v1381
        %v1383 = vpop.f32.mrb[0].mxu0
        %v1384 = vadd.f32 %v1223, %v1383
        %1385 = vmatprep.mubr.f32.mxu0 %v743
        %1386 = vmatmul.mubr.f32.gmra.mrb[0].mxu0 %v742
        %v1387 = vpop.f32.mrb[0].mxu0
        %v1388 = vadd.f32 %v1227, %v1387
        %v1389 = vpop.f32.mrb[0].mxu0
        %v1390 = vadd.f32 %v1229, %v1389
        %1391 = vmatprep.mubr.f32.mxu0 %v752
        %1392 = vmatmul.mubr.f32.gmra.mrb[0].mxu0 %v751
        %v1393 = vpop.f32.mrb[0].mxu0
        %v1394 = vadd.f32 %v1233, %v1393
        %v1395 = vpop.f32.mrb[0].mxu0
        %v1396 = vadd.f32 %v1235, %v1395
        %1397 = vmatprep.mubr.f32.mxu0 %v761
        %1398 = vmatmul.mubr.f32.gmra.mrb[0].mxu0 %v760
        %v1399 = vpop.f32.mrb[0].mxu0
        %v1400 = vadd.f32 %v1239, %v1399
        %v1401 = vpop.f32.mrb[0].mxu0
        %v1402 = vadd.f32 %v1241, %v1401
        %1403 = vmatprep.mubr.f32.mxu0 %v770
        %1404 = vmatmul.mubr.f32.gmra.mrb[0].mxu0 %v769
        %v1405 = vpop.f32.mrb[0].mxu0
        %v1406 = vadd.f32 %v1245, %v1405
        %v1407 = vpop.f32.mrb[0].mxu0
        %v1408 = vadd.f32 %v1247, %v1407
        %1409 = vmatprep.mubr.f32.mxu0 %v779
        %1410 = vmatmul.mubr.f32.gmra.mrb[0].mxu0 %v778
        %v1411 = vpop.f32.mrb[0].mxu0
        %v1412 = vadd.f32 %v1251, %v1411
        %v1413 = vpop.f32.mrb[0].mxu0
        %v1414 = vadd.f32 %v1253, %v1413
        %1415 = vmatprep.mubr.f32.mxu0 %v788
        %1416 = vmatmul.mubr.f32.gmra.mrb[0].mxu0 %v787
        %v1417 = vpop.f32.mrb[0].mxu0
        %v1418 = vadd.f32 %v1257, %v1417
        %v1419 = vpop.f32.mrb[0].mxu0
        %v1420 = vadd.f32 %v1259, %v1419
        %1421 = vmatprep.mubr.f32.mxu0 %v797
        %1422 = vmatmul.mubr.f32.gmra.mrb[0].mxu0 %v796
        %v1423 = vpop.f32.mrb[0].mxu0
        %v1424 = vadd.f32 %v1263, %v1423
        %v1425 = vpop.f32.mrb[0].mxu0
        %v1426 = vadd.f32 %v1265, %v1425
        %1427 = vmatprep.mubr.f32.mxu0 %v806
        %1428 = vmatmul.mubr.f32.gmra.mrb[0].mxu0 %v805
        %v1429 = vpop.f32.mrb[0].mxu0
        %v1430 = vadd.f32 %v1269, %v1429
        %v1431 = vpop.f32.mrb[0].mxu0
        %v1432 = vadd.f32 %v1271, %v1431
        %1433 = vmatprep.mubr.f32.mxu0 %v815
        %1434 = vmatmul.mubr.f32.gmra.mrb[0].mxu0 %v814
        %v1435 = vpop.f32.mrb[0].mxu0
        %v1436 = vadd.f32 %v1275, %v1435
        %v1437 = vpop.f32.mrb[0].mxu0
        %v1438 = vadd.f32 %v1277, %v1437
        %1439 = vmatprep.mubr.f32.mxu0 %v824
        %1440 = vmatmul.mubr.f32.gmra.mrb[0].mxu0 %v823
        %v1441 = vpop.f32.mrb[0].mxu0
        %v1442 = vadd.f32 %v1281, %v1441
        %v1443 = vpop.f32.mrb[0].mxu0
        %v1444 = vadd.f32 %v1283, %v1443
        %1445 = vmatprep.mubr.f32.mxu0 %v833
        %1446 = vmatmul.mubr.f32.gmra.mrb[0].mxu0 %v832
        %v1447 = vpop.f32.mrb[0].mxu0
        %v1448 = vadd.f32 %v1287, %v1447
        %v1449 = vpop.f32.mrb[0].mxu0
        %v1450 = vadd.f32 %v1289, %v1449
        %1451 = vmatprep.mubr.f32.mxu0 %v842
        %1452 = vmatmul.mubr.f32.gmra.mrb[0].mxu0 %v841
        %v1453 = vpop.f32.mrb[0].mxu0
        %v1454 = vadd.f32 %v1293, %v1453
        %v1455 = vpop.f32.mrb[0].mxu0
        %v1456 = vadd.f32 %v1295, %v1455
        %1457 = vdwg.mxu0
        %1458 = vmatprep.subr.mxu0 %v977
        %1459 = vmatpush1.msra.mxu0 %v976
        %1460 = vmatprep.subr.mxu0 %v979
        %1461 = vmatpush1.msra.mxu0 %v978
        %1462 = vmatprep.subr.mxu0 %v981
        %1463 = vmatpush1.msra.mxu0 %v980
        %1464 = vmatprep.subr.mxu0 %v983
        %1465 = vmatpush1.msra.mxu0 %v982
        %1466 = vmatprep.subr.mxu0 %v985
        %1467 = vmatpush1.msra.mxu0 %v984
        %1468 = vmatprep.subr.mxu0 %v987
        %1469 = vmatpush1.msra.mxu0 %v986
        %1470 = vmatprep.subr.mxu0 %v989
        %1471 = vmatpush1.msra.mxu0 %v988
        %1472 = vmatprep.subr.mxu0 %v991
        %1473 = vmatpush1.msra.mxu0 %v990
        %1474 = vmatprep.subr.mxu0 %v993
        %1475 = vmatpush1.msra.mxu0 %v992
        %1476 = vmatprep.subr.mxu0 %v995
        %1477 = vmatpush1.msra.mxu0 %v994
        %1478 = vmatprep.subr.mxu0 %v997
        %1479 = vmatpush1.msra.mxu0 %v996
        %1480 = vmatprep.subr.mxu0 %v999
        %1481 = vmatpush1.msra.mxu0 %v998
        %1482 = vmatprep.subr.mxu0 %v1001
        %1483 = vmatpush1.msra.mxu0 %v1000
        %1484 = vmatprep.subr.mxu0 %v1003
        %1485 = vmatpush1.msra.mxu0 %v1002
        %1486 = vmatprep.subr.mxu0 %v1005
        %1487 = vmatpush1.msra.mxu0 %v1004
        %1488 = vmatprep.subr.mxu0 %v1007
        %1489 = vmatpush1.msra.mxu0 %v1006
        %1490 = vmatprep.subr.mxu0 %v1009
        %1491 = vmatpush1.msra.mxu0 %v1008
        %1492 = vmatprep.subr.mxu0 %v1011
        %1493 = vmatpush1.msra.mxu0 %v1010
        %1494 = vmatprep.subr.mxu0 %v1013
        %1495 = vmatpush1.msra.mxu0 %v1012
        %1496 = vmatprep.subr.mxu0 %v1015
        %1497 = vmatpush1.msra.mxu0 %v1014
        %1498 = vmatprep.subr.mxu0 %v1017
        %1499 = vmatpush1.msra.mxu0 %v1016
        %1500 = vmatprep.subr.mxu0 %v1019
        %1501 = vmatpush1.msra.mxu0 %v1018
        %1502 = vmatprep.subr.mxu0 %v1021
        %1503 = vmatpush1.msra.mxu0 %v1020
        %1504 = vmatprep.subr.mxu0 %v1023
        %1505 = vmatpush1.msra.mxu0 %v1022
        %1506 = vmatprep.subr.mxu0 %v1025
        %1507 = vmatpush1.msra.mxu0 %v1024
        %1508 = vmatprep.subr.mxu0 %v1027
        %1509 = vmatpush1.msra.mxu0 %v1026
        %1510 = vmatprep.subr.mxu0 %v1029
        %1511 = vmatpush1.msra.mxu0 %v1028
        %1512 = vmatprep.subr.mxu0 %v1031
        %1513 = vmatpush1.msra.mxu0 %v1030
        %1514 = vmatprep.subr.mxu0 %v1033
        %1515 = vmatpush1.msra.mxu0 %v1032
        %1516 = vmatprep.subr.mxu0 %v1035
        %1517 = vmatpush1.msra.mxu0 %v1034
        %1518 = vmatprep.subr.mxu0 %v1037
        %1519 = vmatpush1.msra.mxu0 %v1036
        %1520 = vmatprep.subr.mxu0 %v1039
        %1521 = vmatpush1.msra.mxu0 %v1038
        %1522 = vmatprep.mubr.f32.mxu0 %v709
        %1523 = vmatmul.mubr.f32.gmra.mrb[0].mxu0 %v708
        %v1524 = vpop.f32.mrb[0].mxu0
        %v1525 = vadd.f32 %v1364, %v1524
        %v1526 = vpop.f32.mrb[0].mxu0
        %v1527 = vadd.f32 %v1366, %v1526
        %1528 = vmatprep.mubr.f32.mxu0 %v718
        %1529 = vmatmul.mubr.f32.gmra.mrb[0].mxu0 %v717
        %v1530 = vpop.f32.mrb[0].mxu0
        %v1531 = vadd.f32 %v1370, %v1530
        %v1532 = vpop.f32.mrb[0].mxu0
        %v1533 = vadd.f32 %v1372, %v1532
        %1534 = vmatprep.mubr.f32.mxu0 %v727
        %1535 = vmatmul.mubr.f32.gmra.mrb[0].mxu0 %v726
        %v1536 = vpop.f32.mrb[0].mxu0
        %v1537 = vadd.f32 %v1376, %v1536
        %v1538 = vpop.f32.mrb[0].mxu0
        %v1539 = vadd.f32 %v1378, %v1538
        %1540 = vmatprep.mubr.f32.mxu0 %v736
        %1541 = vmatmul.mubr.f32.gmra.mrb[0].mxu0 %v735
        %v1542 = vpop.f32.mrb[0].mxu0
        %v1543 = vadd.f32 %v1382, %v1542
        %v1544 = vpop.f32.mrb[0].mxu0
        %v1545 = vadd.f32 %v1384, %v1544
        %1546 = vmatprep.mubr.f32.mxu0 %v745
        %1547 = vmatmul.mubr.f32.gmra.mrb[0].mxu0 %v744
        %v1548 = vpop.f32.mrb[0].mxu0
        %v1549 = vadd.f32 %v1388, %v1548
        %v1550 = vpop.f32.mrb[0].mxu0
        %v1551 = vadd.f32 %v1390, %v1550
        %1552 = vmatprep.mubr.f32.mxu0 %v754
        %1553 = vmatmul.mubr.f32.gmra.mrb[0].mxu0 %v753
        %v1554 = vpop.f32.mrb[0].mxu0
        %v1555 = vadd.f32 %v1394, %v1554
        %v1556 = vpop.f32.mrb[0].mxu0
        %v1557 = vadd.f32 %v1396, %v1556
        %1558 = vmatprep.mubr.f32.mxu0 %v763
        %1559 = vmatmul.mubr.f32.gmra.mrb[0].mxu0 %v762
        %v1560 = vpop.f32.mrb[0].mxu0
        %v1561 = vadd.f32 %v1400, %v1560
        %v1562 = vpop.f32.mrb[0].mxu0
        %v1563 = vadd.f32 %v1402, %v1562
        %1564 = vmatprep.mubr.f32.mxu0 %v772
        %1565 = vmatmul.mubr.f32.gmra.mrb[0].mxu0 %v771
        %v1566 = vpop.f32.mrb[0].mxu0
        %v1567 = vadd.f32 %v1406, %v1566
        %v1568 = vpop.f32.mrb[0].mxu0
        %v1569 = vadd.f32 %v1408, %v1568
        %1570 = vmatprep.mubr.f32.mxu0 %v781
        %1571 = vmatmul.mubr.f32.gmra.mrb[0].mxu0 %v780
        %v1572 = vpop.f32.mrb[0].mxu0
        %v1573 = vadd.f32 %v1412, %v1572
        %v1574 = vpop.f32.mrb[0].mxu0
        %v1575 = vadd.f32 %v1414, %v1574
        %1576 = vmatprep.mubr.f32.mxu0 %v790
        %1577 = vmatmul.mubr.f32.gmra.mrb[0].mxu0 %v789
        %v1578 = vpop.f32.mrb[0].mxu0
        %v1579 = vadd.f32 %v1418, %v1578
        %v1580 = vpop.f32.mrb[0].mxu0
        %v1581 = vadd.f32 %v1420, %v1580
        %1582 = vmatprep.mubr.f32.mxu0 %v799
        %1583 = vmatmul.mubr.f32.gmra.mrb[0].mxu0 %v798
        %v1584 = vpop.f32.mrb[0].mxu0
        %v1585 = vadd.f32 %v1424, %v1584
        %v1586 = vpop.f32.mrb[0].mxu0
        %v1587 = vadd.f32 %v1426, %v1586
        %1588 = vmatprep.mubr.f32.mxu0 %v808
        %1589 = vmatmul.mubr.f32.gmra.mrb[0].mxu0 %v807
        %v1590 = vpop.f32.mrb[0].mxu0
        %v1591 = vadd.f32 %v1430, %v1590
        %v1592 = vpop.f32.mrb[0].mxu0
        %v1593 = vadd.f32 %v1432, %v1592
        %1594 = vmatprep.mubr.f32.mxu0 %v817
        %1595 = vmatmul.mubr.f32.gmra.mrb[0].mxu0 %v816
        %v1596 = vpop.f32.mrb[0].mxu0
        %v1597 = vadd.f32 %v1436, %v1596
        %v1598 = vpop.f32.mrb[0].mxu0
        %v1599 = vadd.f32 %v1438, %v1598
        %1600 = vmatprep.mubr.f32.mxu0 %v826
        %1601 = vmatmul.mubr.f32.gmra.mrb[0].mxu0 %v825
        %v1602 = vpop.f32.mrb[0].mxu0
        %v1603 = vadd.f32 %v1442, %v1602
        %v1604 = vpop.f32.mrb[0].mxu0
        %v1605 = vadd.f32 %v1444, %v1604
        %1606 = vmatprep.mubr.f32.mxu0 %v835
        %1607 = vmatmul.mubr.f32.gmra.mrb[0].mxu0 %v834
        %v1608 = vpop.f32.mrb[0].mxu0
        %v1609 = vadd.f32 %v1448, %v1608
        %v1610 = vpop.f32.mrb[0].mxu0
        %v1611 = vadd.f32 %v1450, %v1610
        %1612 = vmatprep.mubr.f32.mxu0 %v844
        %1613 = vmatmul.mubr.f32.gmra.mrb[0].mxu0 %v843
        %v1614 = vpop.f32.mrb[0].mxu0
        %v1615 = vadd.f32 %v1454, %v1614
        %v1616 = vpop.f32.mrb[0].mxu0
        %v1617 = vadd.f32 %v1456, %v1616
        %1618 = vdwg.mxu0
        %1619 = vmatprep.subr.mxu0 %v1041
        %1620 = vmatpush1.msra.mxu0 %v1040
        %1621 = vmatprep.subr.mxu0 %v1043
        %1622 = vmatpush1.msra.mxu0 %v1042
        %1623 = vmatprep.subr.mxu0 %v1045
        %1624 = vmatpush1.msra.mxu0 %v1044
        %1625 = vmatprep.subr.mxu0 %v1047
        %1626 = vmatpush1.msra.mxu0 %v1046
        %1627 = vmatprep.subr.mxu0 %v1049
        %1628 = vmatpush1.msra.mxu0 %v1048
        %1629 = vmatprep.subr.mxu0 %v1051
        %1630 = vmatpush1.msra.mxu0 %v1050
        %1631 = vmatprep.subr.mxu0 %v1053
        %1632 = vmatpush1.msra.mxu0 %v1052
        %1633 = vmatprep.subr.mxu0 %v1055
        %1634 = vmatpush1.msra.mxu0 %v1054
        %1635 = vmatprep.subr.mxu0 %v1057
        %1636 = vmatpush1.msra.mxu0 %v1056
        %1637 = vmatprep.subr.mxu0 %v1059
        %1638 = vmatpush1.msra.mxu0 %v1058
        %1639 = vmatprep.subr.mxu0 %v1061
        %1640 = vmatpush1.msra.mxu0 %v1060
        %1641 = vmatprep.subr.mxu0 %v1063
        %1642 = vmatpush1.msra.mxu0 %v1062
        %1643 = vmatprep.subr.mxu0 %v1065
        %1644 = vmatpush1.msra.mxu0 %v1064
        %1645 = vmatprep.subr.mxu0 %v1067
        %1646 = vmatpush1.msra.mxu0 %v1066
        %1647 = vmatprep.subr.mxu0 %v1069
        %1648 = vmatpush1.msra.mxu0 %v1068
        %1649 = vmatprep.subr.mxu0 %v1071
        %1650 = vmatpush1.msra.mxu0 %v1070
        %1651 = vmatprep.subr.mxu0 %v1073
        %1652 = vmatpush1.msra.mxu0 %v1072
        %1653 = vmatprep.subr.mxu0 %v1075
        %1654 = vmatpush1.msra.mxu0 %v1074
        %1655 = vmatprep.subr.mxu0 %v1077
        %1656 = vmatpush1.msra.mxu0 %v1076
        %1657 = vmatprep.subr.mxu0 %v1079
        %1658 = vmatpush1.msra.mxu0 %v1078
        %1659 = vmatprep.subr.mxu0 %v1081
        %1660 = vmatpush1.msra.mxu0 %v1080
        %1661 = vmatprep.subr.mxu0 %v1083
        %1662 = vmatpush1.msra.mxu0 %v1082
        %1663 = vmatprep.subr.mxu0 %v1085
        %1664 = vmatpush1.msra.mxu0 %v1084
        %1665 = vmatprep.subr.mxu0 %v1087
        %1666 = vmatpush1.msra.mxu0 %v1086
        %1667 = vmatprep.subr.mxu0 %v1089
        %1668 = vmatpush1.msra.mxu0 %v1088
        %1669 = vmatprep.subr.mxu0 %v1091
        %1670 = vmatpush1.msra.mxu0 %v1090
        %1671 = vmatprep.subr.mxu0 %v1093
        %1672 = vmatpush1.msra.mxu0 %v1092
        %1673 = vmatprep.subr.mxu0 %v1095
        %1674 = vmatpush1.msra.mxu0 %v1094
        %1675 = vmatprep.subr.mxu0 %v1097
        %1676 = vmatpush1.msra.mxu0 %v1096
        %1677 = vmatprep.subr.mxu0 %v1099
        %1678 = vmatpush1.msra.mxu0 %v1098
        %1679 = vmatprep.subr.mxu0 %v1101
        %1680 = vmatpush1.msra.mxu0 %v1100
        %1681 = vmatprep.subr.mxu0 %v1103
        %1682 = vmatpush1.msra.mxu0 %v1102
        %1683 = vmatprep.mubr.f32.mxu0 %v711
        %1684 = vmatmul.mubr.f32.gmra.mrb[0].mxu0 %v710
        %v1685 = vpop.f32.mrb[0].mxu0
        %v1686 = vadd.f32 %v1525, %v1685
        %v1687 = vpop.f32.mrb[0].mxu0
        %v1688 = vadd.f32 %v1527, %v1687
        %1689 = vmatprep.mubr.f32.mxu0 %v720
        %1690 = vmatmul.mubr.f32.gmra.mrb[0].mxu0 %v719
        %v1691 = vpop.f32.mrb[0].mxu0
        %v1692 = vadd.f32 %v1531, %v1691
        %v1693 = vpop.f32.mrb[0].mxu0
        %v1694 = vadd.f32 %v1533, %v1693
        %1695 = vmatprep.mubr.f32.mxu0 %v729
        %1696 = vmatmul.mubr.f32.gmra.mrb[0].mxu0 %v728
        %v1697 = vpop.f32.mrb[0].mxu0
        %v1698 = vadd.f32 %v1537, %v1697
        %v1699 = vpop.f32.mrb[0].mxu0
        %v1700 = vadd.f32 %v1539, %v1699
        %1701 = vmatprep.mubr.f32.mxu0 %v738
        %1702 = vmatmul.mubr.f32.gmra.mrb[0].mxu0 %v737
        %v1703 = vpop.f32.mrb[0].mxu0
        %v1704 = vadd.f32 %v1543, %v1703
        %v1705 = vpop.f32.mrb[0].mxu0
        %v1706 = vadd.f32 %v1545, %v1705
        %1707 = vmatprep.mubr.f32.mxu0 %v747
        %1708 = vmatmul.mubr.f32.gmra.mrb[0].mxu0 %v746
        %v1709 = vpop.f32.mrb[0].mxu0
        %v1710 = vadd.f32 %v1549, %v1709
        %v1711 = vpop.f32.mrb[0].mxu0
        %v1712 = vadd.f32 %v1551, %v1711
        %1713 = vmatprep.mubr.f32.mxu0 %v756
        %1714 = vmatmul.mubr.f32.gmra.mrb[0].mxu0 %v755
        %v1715 = vpop.f32.mrb[0].mxu0
        %v1716 = vadd.f32 %v1555, %v1715
        %v1717 = vpop.f32.mrb[0].mxu0
        %v1718 = vadd.f32 %v1557, %v1717
        %1719 = vmatprep.mubr.f32.mxu0 %v765
        %1720 = vmatmul.mubr.f32.gmra.mrb[0].mxu0 %v764
        %v1721 = vpop.f32.mrb[0].mxu0
        %v1722 = vadd.f32 %v1561, %v1721
        %v1723 = vpop.f32.mrb[0].mxu0
        %v1724 = vadd.f32 %v1563, %v1723
        %1725 = vmatprep.mubr.f32.mxu0 %v774
        %1726 = vmatmul.mubr.f32.gmra.mrb[0].mxu0 %v773
        %v1727 = vpop.f32.mrb[0].mxu0
        %v1728 = vadd.f32 %v1567, %v1727
        %v1729 = vpop.f32.mrb[0].mxu0
        %v1730 = vadd.f32 %v1569, %v1729
        %1731 = vmatprep.mubr.f32.mxu0 %v783
        %1732 = vmatmul.mubr.f32.gmra.mrb[0].mxu0 %v782
        %v1733 = vpop.f32.mrb[0].mxu0
        %v1734 = vadd.f32 %v1573, %v1733
        %v1735 = vpop.f32.mrb[0].mxu0
        %v1736 = vadd.f32 %v1575, %v1735
        %1737 = vmatprep.mubr.f32.mxu0 %v792
        %1738 = vmatmul.mubr.f32.gmra.mrb[0].mxu0 %v791
        %v1739 = vpop.f32.mrb[0].mxu0
        %v1740 = vadd.f32 %v1579, %v1739
        %v1741 = vpop.f32.mrb[0].mxu0
        %v1742 = vadd.f32 %v1581, %v1741
        %1743 = vmatprep.mubr.f32.mxu0 %v801
        %1744 = vmatmul.mubr.f32.gmra.mrb[0].mxu0 %v800
        %v1745 = vpop.f32.mrb[0].mxu0
        %v1746 = vadd.f32 %v1585, %v1745
        %v1747 = vpop.f32.mrb[0].mxu0
        %v1748 = vadd.f32 %v1587, %v1747
        %1749 = vmatprep.mubr.f32.mxu0 %v810
        %1750 = vmatmul.mubr.f32.gmra.mrb[0].mxu0 %v809
        %v1751 = vpop.f32.mrb[0].mxu0
        %v1752 = vadd.f32 %v1591, %v1751
        %v1753 = vpop.f32.mrb[0].mxu0
        %v1754 = vadd.f32 %v1593, %v1753
        %1755 = vmatprep.mubr.f32.mxu0 %v819
        %1756 = vmatmul.mubr.f32.gmra.mrb[0].mxu0 %v818
        %v1757 = vpop.f32.mrb[0].mxu0
        %v1758 = vadd.f32 %v1597, %v1757
        %v1759 = vpop.f32.mrb[0].mxu0
        %v1760 = vadd.f32 %v1599, %v1759
        %1761 = vmatprep.mubr.f32.mxu0 %v828
        %1762 = vmatmul.mubr.f32.gmra.mrb[0].mxu0 %v827
        %v1763 = vpop.f32.mrb[0].mxu0
        %v1764 = vadd.f32 %v1603, %v1763
        %v1765 = vpop.f32.mrb[0].mxu0
        %v1766 = vadd.f32 %v1605, %v1765
        %1767 = vmatprep.mubr.f32.mxu0 %v837
        %1768 = vmatmul.mubr.f32.gmra.mrb[0].mxu0 %v836
        %v1769 = vpop.f32.mrb[0].mxu0
        %v1770 = vadd.f32 %v1609, %v1769
        %v1771 = vpop.f32.mrb[0].mxu0
        %v1772 = vadd.f32 %v1611, %v1771
        %1773 = vmatprep.mubr.f32.mxu0 %v846
        %1774 = vmatmul.mubr.f32.gmra.mrb[0].mxu0 %v845
        %v1775 = vpop.f32.mrb[0].mxu0
        %v1776 = vadd.f32 %v1615, %v1775
        %v1777 = vpop.f32.mrb[0].mxu0
        %v1778 = vadd.f32 %v1617, %v1777
        %1779 = vdwg.mxu0
        %1780 = vmatprep.subr.mxu0 %v1105
        %1781 = vmatpush1.msra.mxu0 %v1104
        %1782 = vmatprep.subr.mxu0 %v1107
        %1783 = vmatpush1.msra.mxu0 %v1106
        %1784 = vmatprep.subr.mxu0 %v1109
        %1785 = vmatpush1.msra.mxu0 %v1108
        %1786 = vmatprep.subr.mxu0 %v1111
        %1787 = vmatpush1.msra.mxu0 %v1110
        %1788 = vmatprep.subr.mxu0 %v1113
        %1789 = vmatpush1.msra.mxu0 %v1112
        %1790 = vmatprep.subr.mxu0 %v1115
        %1791 = vmatpush1.msra.mxu0 %v1114
        %1792 = vmatprep.subr.mxu0 %v1117
        %1793 = vmatpush1.msra.mxu0 %v1116
        %1794 = vmatprep.subr.mxu0 %v1119
        %1795 = vmatpush1.msra.mxu0 %v1118
        %1796 = vmatprep.subr.mxu0 %v1121
        %1797 = vmatpush1.msra.mxu0 %v1120
        %1798 = vmatprep.subr.mxu0 %v1123
        %1799 = vmatpush1.msra.mxu0 %v1122
        %1800 = vmatprep.subr.mxu0 %v1125
        %1801 = vmatpush1.msra.mxu0 %v1124
        %1802 = vmatprep.subr.mxu0 %v1127
        %1803 = vmatpush1.msra.mxu0 %v1126
        %1804 = vmatprep.subr.mxu0 %v1129
        %1805 = vmatpush1.msra.mxu0 %v1128
        %1806 = vmatprep.subr.mxu0 %v1131
        %1807 = vmatpush1.msra.mxu0 %v1130
        %1808 = vmatprep.subr.mxu0 %v1133
        %1809 = vmatpush1.msra.mxu0 %v1132
        %1810 = vmatprep.subr.mxu0 %v1135
        %1811 = vmatpush1.msra.mxu0 %v1134
        %1812 = vmatprep.subr.mxu0 0.0
        %1813 = vmatpush1.msra.mxu0 0.0
        %1814 = vmatprep.subr.mxu0 0.0
        %1815 = vmatpush1.msra.mxu0 0.0
        %1816 = vmatprep.subr.mxu0 0.0
        %1817 = vmatpush1.msra.mxu0 0.0
        %1818 = vmatprep.subr.mxu0 0.0
        %1819 = vmatpush1.msra.mxu0 0.0
        %1820 = vmatprep.subr.mxu0 0.0
        %1821 = vmatpush1.msra.mxu0 0.0
        %1822 = vmatprep.subr.mxu0 0.0
        %1823 = vmatpush1.msra.mxu0 0.0
        %1824 = vmatprep.subr.mxu0 0.0
        %1825 = vmatpush1.msra.mxu0 0.0
        %1826 = vmatprep.subr.mxu0 0.0
        %1827 = vmatpush1.msra.mxu0 0.0
        %1828 = vmatprep.subr.mxu0 0.0
        %1829 = vmatpush1.msra.mxu0 0.0
        %1830 = vmatprep.subr.mxu0 0.0
        %1831 = vmatpush1.msra.mxu0 0.0
        %1832 = vmatprep.subr.mxu0 0.0
        %1833 = vmatpush1.msra.mxu0 0.0
        %1834 = vmatprep.subr.mxu0 0.0
        %1835 = vmatpush1.msra.mxu0 0.0
        %1836 = vmatprep.subr.mxu0 0.0
        %1837 = vmatpush1.msra.mxu0 0.0
        %1838 = vmatprep.subr.mxu0 0.0
        %1839 = vmatpush1.msra.mxu0 0.0
        %1840 = vmatprep.subr.mxu0 0.0
        %1841 = vmatpush1.msra.mxu0 0.0
        %1842 = vmatprep.subr.mxu0 0.0
        %1843 = vmatpush1.msra.mxu0 0.0
        %1844 = vmatprep.mubr.f32.mxu0 0.0
        %1845 = vmatmul.mubr.f32.gmra.mrb[0].mxu0 %v712
        %v1846 = vpop.f32.mrb[0].mxu0
        %v1847 = vadd.f32 %v1686, %v1846
        %v1848 = vpop.f32.mrb[0].mxu0
        %v1849 = vadd.f32 %v1688, %v1848
        %1850 = vmatprep.mubr.f32.mxu0 0.0
        %1851 = vmatmul.mubr.f32.gmra.mrb[0].mxu0 %v721
        %v1852 = vpop.f32.mrb[0].mxu0
        %v1853 = vadd.f32 %v1692, %v1852
        %v1854 = vpop.f32.mrb[0].mxu0
        %v1855 = vadd.f32 %v1694, %v1854
        %1856 = vmatprep.mubr.f32.mxu0 0.0
        %1857 = vmatmul.mubr.f32.gmra.mrb[0].mxu0 %v730
        %v1858 = vpop.f32.mrb[0].mxu0
        %v1859 = vadd.f32 %v1698, %v1858
        %v1860 = vpop.f32.mrb[0].mxu0
        %v1861 = vadd.f32 %v1700, %v1860
        %1862 = vmatprep.mubr.f32.mxu0 0.0
        %1863 = vmatmul.mubr.f32.gmra.mrb[0].mxu0 %v739
        %v1864 = vpop.f32.mrb[0].mxu0
        %v1865 = vadd.f32 %v1704, %v1864
        %v1866 = vpop.f32.mrb[0].mxu0
        %v1867 = vadd.f32 %v1706, %v1866
        %1868 = vmatprep.mubr.f32.mxu0 0.0
        %1869 = vmatmul.mubr.f32.gmra.mrb[0].mxu0 %v748
        %v1870 = vpop.f32.mrb[0].mxu0
        %v1871 = vadd.f32 %v1710, %v1870
        %v1872 = vpop.f32.mrb[0].mxu0
        %v1873 = vadd.f32 %v1712, %v1872
        %1874 = vmatprep.mubr.f32.mxu0 0.0
        %1875 = vmatmul.mubr.f32.gmra.mrb[0].mxu0 %v757
        %v1876 = vpop.f32.mrb[0].mxu0
        %v1877 = vadd.f32 %v1716, %v1876
        %v1878 = vpop.f32.mrb[0].mxu0
        %v1879 = vadd.f32 %v1718, %v1878
        %1880 = vmatprep.mubr.f32.mxu0 0.0
        %1881 = vmatmul.mubr.f32.gmra.mrb[0].mxu0 %v766
        %v1882 = vpop.f32.mrb[0].mxu0
        %v1883 = vadd.f32 %v1722, %v1882
        %v1884 = vpop.f32.mrb[0].mxu0
        %v1885 = vadd.f32 %v1724, %v1884
        %1886 = vmatprep.mubr.f32.mxu0 0.0
        %1887 = vmatmul.mubr.f32.gmra.mrb[0].mxu0 %v775
        %v1888 = vpop.f32.mrb[0].mxu0
        %v1889 = vadd.f32 %v1728, %v1888
        %v1890 = vpop.f32.mrb[0].mxu0
        %v1891 = vadd.f32 %v1730, %v1890
        %1892 = vmatprep.mubr.f32.mxu0 0.0
        %1893 = vmatmul.mubr.f32.gmra.mrb[0].mxu0 %v784
        %v1894 = vpop.f32.mrb[0].mxu0
        %v1895 = vadd.f32 %v1734, %v1894
        %v1896 = vpop.f32.mrb[0].mxu0
        %v1897 = vadd.f32 %v1736, %v1896
        %1898 = vmatprep.mubr.f32.mxu0 0.0
        %1899 = vmatmul.mubr.f32.gmra.mrb[0].mxu0 %v793
        %v1900 = vpop.f32.mrb[0].mxu0
        %v1901 = vadd.f32 %v1740, %v1900
        %v1902 = vpop.f32.mrb[0].mxu0
        %v1903 = vadd.f32 %v1742, %v1902
        %1904 = vmatprep.mubr.f32.mxu0 0.0
        %1905 = vmatmul.mubr.f32.gmra.mrb[0].mxu0 %v802
        %v1906 = vpop.f32.mrb[0].mxu0
        %v1907 = vadd.f32 %v1746, %v1906
        %v1908 = vpop.f32.mrb[0].mxu0
        %v1909 = vadd.f32 %v1748, %v1908
        %1910 = vmatprep.mubr.f32.mxu0 0.0
        %1911 = vmatmul.mubr.f32.gmra.mrb[0].mxu0 %v811
        %v1912 = vpop.f32.mrb[0].mxu0
        %v1913 = vadd.f32 %v1752, %v1912
        %v1914 = vpop.f32.mrb[0].mxu0
        %v1915 = vadd.f32 %v1754, %v1914
        %1916 = vmatprep.mubr.f32.mxu0 0.0
        %1917 = vmatmul.mubr.f32.gmra.mrb[0].mxu0 %v820
        %v1918 = vpop.f32.mrb[0].mxu0
        %v1919 = vadd.f32 %v1758, %v1918
        %v1920 = vpop.f32.mrb[0].mxu0
        %v1921 = vadd.f32 %v1760, %v1920
        %1922 = vmatprep.mubr.f32.mxu0 0.0
        %1923 = vmatmul.mubr.f32.gmra.mrb[0].mxu0 %v829
        %v1924 = vpop.f32.mrb[0].mxu0
        %v1925 = vadd.f32 %v1764, %v1924
        %v1926 = vpop.f32.mrb[0].mxu0
        %v1927 = vadd.f32 %v1766, %v1926
        %1928 = vmatprep.mubr.f32.mxu0 0.0
        %1929 = vmatmul.mubr.f32.gmra.mrb[0].mxu0 %v838
        %v1930 = vpop.f32.mrb[0].mxu0
        %v1931 = vadd.f32 %v1770, %v1930
        %v1932 = vpop.f32.mrb[0].mxu0
        %v1933 = vadd.f32 %v1772, %v1932
        %1934 = vmatprep.mubr.f32.mxu0 0.0
        %1935 = vmatmul.mubr.f32.gmra.mrb[0].mxu0 %v847
        %v1936 = vpop.f32.mrb[0].mxu0
        %v1937 = vadd.f32 %v1776, %v1936
        %v1938 = vpop.f32.mrb[0].mxu0
        %v1939 = vadd.f32 %v1778, %v1938
        %1940 = vdwg.mxu0
        %v1942 = vlaneseq
        %v1943 = vshrl.u32 %v1942, 7
        %v1944 = vsub.s32 0, %v1943
        %v1945 = vrot.slane %v288, %v1944
        %v1946 = vlaneseq
        %v1947 = vshrl.u32 %v1946, 7
        %v1948 = vsub.s32 1, %v1947
        %v1949 = vrot.slane %v288, %v1948
        %v1952 = vmul.f32 %v1847, %v1945
        %v1953 = vmul.f32 %v1849, %v1949
        %v1954 = vmul.f32 %v1853, %v1945
        %v1955 = vmul.f32 %v1855, %v1949
        %v1956 = vmul.f32 %v1859, %v1945
        %v1957 = vmul.f32 %v1861, %v1949
        %v1958 = vmul.f32 %v1865, %v1945
        %v1959 = vmul.f32 %v1867, %v1949
        %v1960 = vmul.f32 %v1871, %v1945
        %v1961 = vmul.f32 %v1873, %v1949
        %v1962 = vmul.f32 %v1877, %v1945
        %v1963 = vmul.f32 %v1879, %v1949
        %v1964 = vmul.f32 %v1883, %v1945
        %v1965 = vmul.f32 %v1885, %v1949
        %v1966 = vmul.f32 %v1889, %v1945
        %v1967 = vmul.f32 %v1891, %v1949
        %v1968 = vmul.f32 %v1895, %v1945
        %v1969 = vmul.f32 %v1897, %v1949
        %v1970 = vmul.f32 %v1901, %v1945
        %v1971 = vmul.f32 %v1903, %v1949
        %v1972 = vmul.f32 %v1907, %v1945
        %v1973 = vmul.f32 %v1909, %v1949
        %v1974 = vmul.f32 %v1913, %v1945
        %v1975 = vmul.f32 %v1915, %v1949
        %v1976 = vmul.f32 %v1919, %v1945
        %v1977 = vmul.f32 %v1921, %v1949
        %v1978 = vmul.f32 %v1925, %v1945
        %v1979 = vmul.f32 %v1927, %v1949
        %v1980 = vmul.f32 %v1931, %v1945
        %v1981 = vmul.f32 %v1933, %v1949
        %v1982 = vmul.f32 %v1937, %v1945
        %v1983 = vmul.f32 %v1939, %v1949
        %v1985 = vlaneseq
        %v1986 = vshrl.u32 %v1985, 7
        %v1987 = vsub.s32 0, %v1986
        %v1988 = vrot.slane %v289, %v1987
        %v1989 = vlaneseq
        %v1990 = vshrl.u32 %v1989, 7
        %v1991 = vsub.s32 1, %v1990
        %v1992 = vrot.slane %v289, %v1991
        %v1995 = vadd.f32 %v1952, %v1988
        %v1996 = vadd.f32 %v1953, %v1992
        %v1997 = vadd.f32 %v1954, %v1988
        %v1998 = vadd.f32 %v1955, %v1992
        %v1999 = vadd.f32 %v1956, %v1988
        %v2000 = vadd.f32 %v1957, %v1992
        %v2001 = vadd.f32 %v1958, %v1988
        %v2002 = vadd.f32 %v1959, %v1992
        %v2003 = vadd.f32 %v1960, %v1988
        %v2004 = vadd.f32 %v1961, %v1992
        %v2005 = vadd.f32 %v1962, %v1988
        %v2006 = vadd.f32 %v1963, %v1992
        %v2007 = vadd.f32 %v1964, %v1988
        %v2008 = vadd.f32 %v1965, %v1992
        %v2009 = vadd.f32 %v1966, %v1988
        %v2010 = vadd.f32 %v1967, %v1992
        %v2011 = vadd.f32 %v1968, %v1988
        %v2012 = vadd.f32 %v1969, %v1992
        %v2013 = vadd.f32 %v1970, %v1988
        %v2014 = vadd.f32 %v1971, %v1992
        %v2015 = vadd.f32 %v1972, %v1988
        %v2016 = vadd.f32 %v1973, %v1992
        %v2017 = vadd.f32 %v1974, %v1988
        %v2018 = vadd.f32 %v1975, %v1992
        %v2019 = vadd.f32 %v1976, %v1988
        %v2020 = vadd.f32 %v1977, %v1992
        %v2021 = vadd.f32 %v1978, %v1988
        %v2022 = vadd.f32 %v1979, %v1992
        %v2023 = vadd.f32 %v1980, %v1988
        %v2024 = vadd.f32 %v1981, %v1992
        %v2025 = vadd.f32 %v1982, %v1988
        %v2026 = vadd.f32 %v1983, %v1992
        %v2027 = vmax.f32 %v1995, 0.0
        %v2028 = vmax.f32 %v1996, 0.0
        %v2029 = vmax.f32 %v1997, 0.0
        %v2030 = vmax.f32 %v1998, 0.0
        %v2031 = vmax.f32 %v1999, 0.0
        %v2032 = vmax.f32 %v2000, 0.0
        %v2033 = vmax.f32 %v2001, 0.0
        %v2034 = vmax.f32 %v2002, 0.0
        %v2035 = vmax.f32 %v2003, 0.0
        %v2036 = vmax.f32 %v2004, 0.0
        %v2037 = vmax.f32 %v2005, 0.0
        %v2038 = vmax.f32 %v2006, 0.0
        %v2039 = vmax.f32 %v2007, 0.0
        %v2040 = vmax.f32 %v2008, 0.0
        %v2041 = vmax.f32 %v2009, 0.0
        %v2042 = vmax.f32 %v2010, 0.0
        %v2043 = vmax.f32 %v2011, 0.0
        %v2044 = vmax.f32 %v2012, 0.0
        %v2045 = vmax.f32 %v2013, 0.0
        %v2046 = vmax.f32 %v2014, 0.0
        %v2047 = vmax.f32 %v2015, 0.0
        %v2048 = vmax.f32 %v2016, 0.0
        %v2049 = vmax.f32 %v2017, 0.0
        %v2050 = vmax.f32 %v2018, 0.0
        %v2051 = vmax.f32 %v2019, 0.0
        %v2052 = vmax.f32 %v2020, 0.0
        %v2053 = vmax.f32 %v2021, 0.0
        %v2054 = vmax.f32 %v2022, 0.0
        %v2055 = vmax.f32 %v2023, 0.0
        %v2056 = vmax.f32 %v2024, 0.0
        %v2057 = vmax.f32 %v2025, 0.0
        %v2058 = vmax.f32 %v2026, 0.0
        %vm2091 = vcmask 1040384
        %v2092 = vrot.slane %v2027, 7
        %v2093 = vrot.slane %v2028, 7
        %v2094 = vrot.slane %v2029, 7
        %v2095 = vsel %vm2091, %v2092, %v2094
        %v2096 = vrot.slane %v2030, 7
        %v2097 = vsel %vm2091, %v2093, %v2096
        %v2098 = vrot.slane %v2031, 7
        %v2099 = vrot.slane %v2032, 7
        %v2100 = vrot.slane %v2033, 7
        %v2101 = vsel %vm2091, %v2098, %v2100
        %v2102 = vrot.slane %v2034, 7
        %v2103 = vsel %vm2091, %v2099, %v2102
        %v2104 = vrot.slane %v2035, 7
        %v2105 = vrot.slane %v2036, 7
        %v2106 = vrot.slane %v2037, 7
        %v2107 = vsel %vm2091, %v2104, %v2106
        %v2108 = vrot.slane %v2038, 7
        %v2109 = vsel %vm2091, %v2105, %v2108
        %v2110 = vrot.slane %v2039, 7
        %v2111 = vrot.slane %v2040, 7
        %v2112 = vrot.slane %v2041, 7
        %v2113 = vsel %vm2091, %v2110, %v2112
        %v2114 = vrot.slane %v2042, 7
        %v2115 = vsel %vm2091, %v2111, %v2114
        %v2116 = vrot.slane %v2043, 7
        %v2117 = vrot.slane %v2044, 7
        %v2118 = vrot.slane %v2045, 7
        %v2119 = vsel %vm2091, %v2116, %v2118
        %v2120 = vrot.slane %v2046, 7
        %v2121 = vsel %vm2091, %v2117, %v2120
        %v2122 = vrot.slane %v2047, 7
        %v2123 = vrot.slane %v2048, 7
        %v2124 = vrot.slane %v2049, 7
        %v2125 = vsel %vm2091, %v2122, %v2124
        %v2126 = vrot.slane %v2050, 7
        %v2127 = vsel %vm2091, %v2123, %v2126
        %v2128 = vrot.slane %v2051, 7
        %v2129 = vrot.slane %v2052, 7
        %v2130 = vrot.slane %v2053, 7
        %v2131 = vsel %vm2091, %v2128, %v2130
        %v2132 = vrot.slane %v2054, 7
        %v2133 = vsel %vm2091, %v2129, %v2132
        %v2134 = vrot.slane %v2055, 7
        %v2135 = vrot.slane %v2056, 7
        %v2136 = vrot.slane %v2057, 7
        %v2137 = vsel %vm2091, %v2134, %v2136
        %v2138 = vrot.slane %v2058, 7
        %v2139 = vsel %vm2091, %v2135, %v2138
        %s2188 = scalar_lea.vmem %s286, 48
        %2189 = vst [vmem:[%s2188] sm:$0xfe] %v2092
        %2190 = vst [vmem:[%s2188 + $0x8] sm:$0xfe] %v2093
        %2191 = vst [vmem:[%s2188 + $0x10] sm:$0xff] %v2095
        %2192 = vst [vmem:[%s2188 + $0x18] sm:$0xff] %v2097
        %2193 = vst [vmem:[%s2188 + $0x20] sm:$0x1] %v2094
        %2194 = vst [vmem:[%s2188 + $0x28] sm:$0x1] %v2096
        %2195 = vst [vmem:[%s2188 + $0x30] sm:$0xfe] %v2098
        %2196 = vst [vmem:[%s2188 + $0x38] sm:$0xfe] %v2099
        %2197 = vst [vmem:[%s2188 + $0x40] sm:$0xff] %v2101
        %2198 = vst [vmem:[%s2188 + $0x48] sm:$0xff] %v2103
        %2199 = vst [vmem:[%s2188 + $0x50] sm:$0x1] %v2100
        %2200 = vst [vmem:[%s2188 + $0x58] sm:$0x1] %v2102
        %2201 = vst [vmem:[%s2188 + $0x60] sm:$0xfe] %v2104
        %2202 = vst [vmem:[%s2188 + $0x68] sm:$0xfe] %v2105
        %2203 = vst [vmem:[%s2188 + $0x70] sm:$0xff] %v2107
        %2204 = vst [vmem:[%s2188 + $0x78] sm:$0xff] %v2109
        %2205 = vst [vmem:[%s2188 + $0x80] sm:$0x1] %v2106
        %2206 = vst [vmem:[%s2188 + $0x88] sm:$0x1] %v2108
        %2207 = vst [vmem:[%s2188 + $0x90] sm:$0xfe] %v2110
        %2208 = vst [vmem:[%s2188 + $0x98] sm:$0xfe] %v2111
        %2209 = vst [vmem:[%s2188 + $0xa0] sm:$0xff] %v2113
        %2210 = vst [vmem:[%s2188 + $0xa8] sm:$0xff] %v2115
        %2211 = vst [vmem:[%s2188 + $0xb0] sm:$0x1] %v2112
        %2212 = vst [vmem:[%s2188 + $0xb8] sm:$0x1] %v2114
        %2213 = vst [vmem:[%s2188 + $0xc0] sm:$0xfe] %v2116
        %2214 = vst [vmem:[%s2188 + $0xc8] sm:$0xfe] %v2117
        %2215 = vst [vmem:[%s2188 + $0xd0] sm:$0xff] %v2119
        %2216 = vst [vmem:[%s2188 + $0xd8] sm:$0xff] %v2121
        %2217 = vst [vmem:[%s2188 + $0xe0] sm:$0x1] %v2118
        %2218 = vst [vmem:[%s2188 + $0xe8] sm:$0x1] %v2120
        %2219 = vst [vmem:[%s2188 + $0xf0] sm:$0xfe] %v2122
        %2220 = vst [vmem:[%s2188 + $0xf8] sm:$0xfe] %v2123
        %2221 = vst [vmem:[%s2188 + $0x100] sm:$0xff] %v2125
        %2222 = vst [vmem:[%s2188 + $0x108] sm:$0xff] %v2127
        %2223 = vst [vmem:[%s2188 + $0x110] sm:$0x1] %v2124
        %2224 = vst [vmem:[%s2188 + $0x118] sm:$0x1] %v2126
        %2225 = vst [vmem:[%s2188 + $0x120] sm:$0xfe] %v2128
        %2226 = vst [vmem:[%s2188 + $0x128] sm:$0xfe] %v2129
        %2227 = vst [vmem:[%s2188 + $0x130] sm:$0xff] %v2131
        %2228 = vst [vmem:[%s2188 + $0x138] sm:$0xff] %v2133
        %2229 = vst [vmem:[%s2188 + $0x140] sm:$0x1] %v2130
        %2230 = vst [vmem:[%s2188 + $0x148] sm:$0x1] %v2132
        %2231 = vst [vmem:[%s2188 + $0x150] sm:$0xfe] %v2134
        %2232 = vst [vmem:[%s2188 + $0x158] sm:$0xfe] %v2135
        %2233 = vst [vmem:[%s2188 + $0x160] sm:$0xff] %v2137
        %2234 = vst [vmem:[%s2188 + $0x168] sm:$0xff] %v2139
        %2235 = vst [vmem:[%s2188 + $0x170] sm:$0x1] %v2136
        %2236 = vst [vmem:[%s2188 + $0x178] sm:$0x1] %v2138
        %s2237 = scalar_lea.vmem %s274, 192
        %v2238 = vld [vmem:[%s2237] sm:$0xff]
        %v2239 = vld [vmem:[%s2237 + $0x8] sm:$0xff]
        %v2240 = vld [vmem:[%s2237 + $0x18] sm:$0xff]
        %v2241 = vld [vmem:[%s2237 + $0x20] sm:$0xff]
        %v2242 = vld [vmem:[%s2237 + $0x30] sm:$0xff]
        %v2243 = vld [vmem:[%s2237 + $0x38] sm:$0xff]
        %v2244 = vld [vmem:[%s2237 + $0x48] sm:$0xff]
        %v2245 = vld [vmem:[%s2237 + $0x50] sm:$0xff]
        %v2246 = vld [vmem:[%s2237 + $0x60] sm:$0xff]
        %v2247 = vld [vmem:[%s2237 + $0x68] sm:$0xff]
        %v2248 = vld [vmem:[%s2237 + $0x78] sm:$0xff]
        %v2249 = vld [vmem:[%s2237 + $0x80] sm:$0xff]
        %v2250 = vld [vmem:[%s2237 + $0x90] sm:$0xff]
        %v2251 = vld [vmem:[%s2237 + $0x98] sm:$0xff]
        %v2252 = vld [vmem:[%s2237 + $0xa8] sm:$0xff]
        %v2253 = vld [vmem:[%s2237 + $0xb0] sm:$0xff]
        %2254 = vst [vmem:[#allocation3] sm:$0xff] %v2238
        %2255 = vst [vmem:[#allocation3 + $0x48] sm:$0xff] %v2239
        %2256 = vst [vmem:[#allocation3 + $0x90] sm:$0xff] %v2240
        %2257 = vst [vmem:[#allocation3 + $0xd8] sm:$0xff] %v2241
        %2258 = vst [vmem:[#allocation3 + $0x120] sm:$0xff] %v2242
        %2259 = vst [vmem:[#allocation3 + $0x168] sm:$0xff] %v2243
        %2260 = vst [vmem:[#allocation3 + $0x1b0] sm:$0xff] %v2244
        %2261 = vst [vmem:[#allocation3 + $0x1f8] sm:$0xff] %v2245
        %2262 = vst [vmem:[#allocation3 + $0x240] sm:$0xff] %v2246
        %2263 = vst [vmem:[#allocation3 + $0x288] sm:$0xff] %v2247
        %2264 = vst [vmem:[#allocation3 + $0x2d0] sm:$0xff] %v2248
        %2265 = vst [vmem:[#allocation3 + $0x318] sm:$0xff] %v2249
        %2266 = vst [vmem:[#allocation3 + $0x360] sm:$0xff] %v2250
        %2267 = vst [vmem:[#allocation3 + $0x3a8] sm:$0xff] %v2251
        %2268 = vst [vmem:[#allocation3 + $0x3f0] sm:$0xff] %v2252
        %2269 = vst [vmem:[#allocation3 + $0x438] sm:$0xff] %v2253
        %v2270 = vld [vmem:[%s2237 + $0x1] sm:$0xff]
        %v2271 = vld [vmem:[%s2237 + $0x9] sm:$0xff]
        %v2272 = vld [vmem:[%s2237 + $0x19] sm:$0xff]
        %v2273 = vld [vmem:[%s2237 + $0x21] sm:$0xff]
        %v2274 = vld [vmem:[%s2237 + $0x31] sm:$0xff]
        %v2275 = vld [vmem:[%s2237 + $0x39] sm:$0xff]
        %v2276 = vld [vmem:[%s2237 + $0x49] sm:$0xff]
        %v2277 = vld [vmem:[%s2237 + $0x51] sm:$0xff]
        %v2278 = vld [vmem:[%s2237 + $0x61] sm:$0xff]
        %v2279 = vld [vmem:[%s2237 + $0x69] sm:$0xff]
        %v2280 = vld [vmem:[%s2237 + $0x79] sm:$0xff]
        %v2281 = vld [vmem:[%s2237 + $0x81] sm:$0xff]
        %v2282 = vld [vmem:[%s2237 + $0x91] sm:$0xff]
        %v2283 = vld [vmem:[%s2237 + $0x99] sm:$0xff]
        %v2284 = vld [vmem:[%s2237 + $0xa9] sm:$0xff]
        %v2285 = vld [vmem:[%s2237 + $0xb1] sm:$0xff]
        %2286 = vst [vmem:[#allocation3 + $0x8] sm:$0xff] %v2270
        %2287 = vst [vmem:[#allocation3 + $0x50] sm:$0xff] %v2271
        %2288 = vst [vmem:[#allocation3 + $0x98] sm:$0xff] %v2272
        %2289 = vst [vmem:[#allocation3 + $0xe0] sm:$0xff] %v2273
        %2290 = vst [vmem:[#allocation3 + $0x128] sm:$0xff] %v2274
        %2291 = vst [vmem:[#allocation3 + $0x170] sm:$0xff] %v2275
        %2292 = vst [vmem:[#allocation3 + $0x1b8] sm:$0xff] %v2276
        %2293 = vst [vmem:[#allocation3 + $0x200] sm:$0xff] %v2277
        %2294 = vst [vmem:[#allocation3 + $0x248] sm:$0xff] %v2278
        %2295 = vst [vmem:[#allocation3 + $0x290] sm:$0xff] %v2279
        %2296 = vst [vmem:[#allocation3 + $0x2d8] sm:$0xff] %v2280
        %2297 = vst [vmem:[#allocation3 + $0x320] sm:$0xff] %v2281
        %2298 = vst [vmem:[#allocation3 + $0x368] sm:$0xff] %v2282
        %2299 = vst [vmem:[#allocation3 + $0x3b0] sm:$0xff] %v2283
        %2300 = vst [vmem:[#allocation3 + $0x3f8] sm:$0xff] %v2284
        %2301 = vst [vmem:[#allocation3 + $0x440] sm:$0xff] %v2285
        %v2302 = vld [vmem:[%s2237 + $0x2] sm:$0xff]
        %v2303 = vld [vmem:[%s2237 + $0xa] sm:$0xff]
        %v2304 = vld [vmem:[%s2237 + $0x1a] sm:$0xff]
        %v2305 = vld [vmem:[%s2237 + $0x22] sm:$0xff]
        %v2306 = vld [vmem:[%s2237 + $0x32] sm:$0xff]
        %v2307 = vld [vmem:[%s2237 + $0x3a] sm:$0xff]
        %v2308 = vld [vmem:[%s2237 + $0x4a] sm:$0xff]
        %v2309 = vld [vmem:[%s2237 + $0x52] sm:$0xff]
        %v2310 = vld [vmem:[%s2237 + $0x62] sm:$0xff]
        %v2311 = vld [vmem:[%s2237 + $0x6a] sm:$0xff]
        %v2312 = vld [vmem:[%s2237 + $0x7a] sm:$0xff]
        %v2313 = vld [vmem:[%s2237 + $0x82] sm:$0xff]
        %v2314 = vld [vmem:[%s2237 + $0x92] sm:$0xff]
        %v2315 = vld [vmem:[%s2237 + $0x9a] sm:$0xff]
        %v2316 = vld [vmem:[%s2237 + $0xaa] sm:$0xff]
        %v2317 = vld [vmem:[%s2237 + $0xb2] sm:$0xff]
        %2318 = vst [vmem:[#allocation3 + $0x10] sm:$0xff] %v2302
        %2319 = vst [vmem:[#allocation3 + $0x58] sm:$0xff] %v2303
        %2320 = vst [vmem:[#allocation3 + $0xa0] sm:$0xff] %v2304
        %2321 = vst [vmem:[#allocation3 + $0xe8] sm:$0xff] %v2305
        %2322 = vst [vmem:[#allocation3 + $0x130] sm:$0xff] %v2306
        %2323 = vst [vmem:[#allocation3 + $0x178] sm:$0xff] %v2307
        %2324 = vst [vmem:[#allocation3 + $0x1c0] sm:$0xff] %v2308
        %2325 = vst [vmem:[#allocation3 + $0x208] sm:$0xff] %v2309
        %2326 = vst [vmem:[#allocation3 + $0x250] sm:$0xff] %v2310
        %2327 = vst [vmem:[#allocation3 + $0x298] sm:$0xff] %v2311
        %2328 = vst [vmem:[#allocation3 + $0x2e0] sm:$0xff] %v2312
        %2329 = vst [vmem:[#allocation3 + $0x328] sm:$0xff] %v2313
        %2330 = vst [vmem:[#allocation3 + $0x370] sm:$0xff] %v2314
        %2331 = vst [vmem:[#allocation3 + $0x3b8] sm:$0xff] %v2315
        %2332 = vst [vmem:[#allocation3 + $0x400] sm:$0xff] %v2316
        %2333 = vst [vmem:[#allocation3 + $0x448] sm:$0xff] %v2317
        %s2334 = scalar_lea.vmem %s274, 216
        %v2335 = vld [vmem:[%s2334] sm:$0xff]
        %v2336 = vld [vmem:[%s2334 + $0x8] sm:$0xff]
        %v2337 = vld [vmem:[%s2334 + $0x18] sm:$0xff]
        %v2338 = vld [vmem:[%s2334 + $0x20] sm:$0xff]
        %v2339 = vld [vmem:[%s2334 + $0x30] sm:$0xff]
        %v2340 = vld [vmem:[%s2334 + $0x38] sm:$0xff]
        %v2341 = vld [vmem:[%s2334 + $0x48] sm:$0xff]
        %v2342 = vld [vmem:[%s2334 + $0x50] sm:$0xff]
        %v2343 = vld [vmem:[%s2334 + $0x60] sm:$0xff]
        %v2344 = vld [vmem:[%s2334 + $0x68] sm:$0xff]
        %v2345 = vld [vmem:[%s2334 + $0x78] sm:$0xff]
        %v2346 = vld [vmem:[%s2334 + $0x80] sm:$0xff]
        %v2347 = vld [vmem:[%s2334 + $0x90] sm:$0xff]
        %v2348 = vld [vmem:[%s2334 + $0x98] sm:$0xff]
        %v2349 = vld [vmem:[%s2334 + $0xa8] sm:$0xff]
        %v2350 = vld [vmem:[%s2334 + $0xb0] sm:$0xff]
        %2351 = vst [vmem:[#allocation3 + $0x18] sm:$0xff] %v2335
        %2352 = vst [vmem:[#allocation3 + $0x60] sm:$0xff] %v2336
        %2353 = vst [vmem:[#allocation3 + $0xa8] sm:$0xff] %v2337
        %2354 = vst [vmem:[#allocation3 + $0xf0] sm:$0xff] %v2338
        %2355 = vst [vmem:[#allocation3 + $0x138] sm:$0xff] %v2339
        %2356 = vst [vmem:[#allocation3 + $0x180] sm:$0xff] %v2340
        %2357 = vst [vmem:[#allocation3 + $0x1c8] sm:$0xff] %v2341
        %2358 = vst [vmem:[#allocation3 + $0x210] sm:$0xff] %v2342
        %2359 = vst [vmem:[#allocation3 + $0x258] sm:$0xff] %v2343
        %2360 = vst [vmem:[#allocation3 + $0x2a0] sm:$0xff] %v2344
        %2361 = vst [vmem:[#allocation3 + $0x2e8] sm:$0xff] %v2345
        %2362 = vst [vmem:[#allocation3 + $0x330] sm:$0xff] %v2346
        %2363 = vst [vmem:[#allocation3 + $0x378] sm:$0xff] %v2347
        %2364 = vst [vmem:[#allocation3 + $0x3c0] sm:$0xff] %v2348
        %2365 = vst [vmem:[#allocation3 + $0x408] sm:$0xff] %v2349
        %2366 = vst [vmem:[#allocation3 + $0x450] sm:$0xff] %v2350
        %v2367 = vld [vmem:[%s2334 + $0x1] sm:$0xff]
        %v2368 = vld [vmem:[%s2334 + $0x9] sm:$0xff]
        %v2369 = vld [vmem:[%s2334 + $0x19] sm:$0xff]
        %v2370 = vld [vmem:[%s2334 + $0x21] sm:$0xff]
        %v2371 = vld [vmem:[%s2334 + $0x31] sm:$0xff]
        %v2372 = vld [vmem:[%s2334 + $0x39] sm:$0xff]
        %v2373 = vld [vmem:[%s2334 + $0x49] sm:$0xff]
        %v2374 = vld [vmem:[%s2334 + $0x51] sm:$0xff]
        %v2375 = vld [vmem:[%s2334 + $0x61] sm:$0xff]
        %v2376 = vld [vmem:[%s2334 + $0x69] sm:$0xff]
        %v2377 = vld [vmem:[%s2334 + $0x79] sm:$0xff]
        %v2378 = vld [vmem:[%s2334 + $0x81] sm:$0xff]
        %v2379 = vld [vmem:[%s2334 + $0x91] sm:$0xff]
        %v2380 = vld [vmem:[%s2334 + $0x99] sm:$0xff]
        %v2381 = vld [vmem:[%s2334 + $0xa9] sm:$0xff]
        %v2382 = vld [vmem:[%s2334 + $0xb1] sm:$0xff]
        %2383 = vst [vmem:[#allocation3 + $0x20] sm:$0xff] %v2367
        %2384 = vst [vmem:[#allocation3 + $0x68] sm:$0xff] %v2368
        %2385 = vst [vmem:[#allocation3 + $0xb0] sm:$0xff] %v2369
        %2386 = vst [vmem:[#allocation3 + $0xf8] sm:$0xff] %v2370
        %2387 = vst [vmem:[#allocation3 + $0x140] sm:$0xff] %v2371
        %2388 = vst [vmem:[#allocation3 + $0x188] sm:$0xff] %v2372
        %2389 = vst [vmem:[#allocation3 + $0x1d0] sm:$0xff] %v2373
        %2390 = vst [vmem:[#allocation3 + $0x218] sm:$0xff] %v2374
        %2391 = vst [vmem:[#allocation3 + $0x260] sm:$0xff] %v2375
        %2392 = vst [vmem:[#allocation3 + $0x2a8] sm:$0xff] %v2376
        %2393 = vst [vmem:[#allocation3 + $0x2f0] sm:$0xff] %v2377
        %2394 = vst [vmem:[#allocation3 + $0x338] sm:$0xff] %v2378
        %2395 = vst [vmem:[#allocation3 + $0x380] sm:$0xff] %v2379
        %2396 = vst [vmem:[#allocation3 + $0x3c8] sm:$0xff] %v2380
        %2397 = vst [vmem:[#allocation3 + $0x410] sm:$0xff] %v2381
        %2398 = vst [vmem:[#allocation3 + $0x458] sm:$0xff] %v2382
        %v2399 = vld [vmem:[%s2334 + $0x2] sm:$0xff]
        %v2400 = vld [vmem:[%s2334 + $0xa] sm:$0xff]
        %v2401 = vld [vmem:[%s2334 + $0x1a] sm:$0xff]
        %v2402 = vld [vmem:[%s2334 + $0x22] sm:$0xff]
        %v2403 = vld [vmem:[%s2334 + $0x32] sm:$0xff]
        %v2404 = vld [vmem:[%s2334 + $0x3a] sm:$0xff]
        %v2405 = vld [vmem:[%s2334 + $0x4a] sm:$0xff]
        %v2406 = vld [vmem:[%s2334 + $0x52] sm:$0xff]
        %v2407 = vld [vmem:[%s2334 + $0x62] sm:$0xff]
        %v2408 = vld [vmem:[%s2334 + $0x6a] sm:$0xff]
        %v2409 = vld [vmem:[%s2334 + $0x7a] sm:$0xff]
        %v2410 = vld [vmem:[%s2334 + $0x82] sm:$0xff]
        %v2411 = vld [vmem:[%s2334 + $0x92] sm:$0xff]
        %v2412 = vld [vmem:[%s2334 + $0x9a] sm:$0xff]
        %v2413 = vld [vmem:[%s2334 + $0xaa] sm:$0xff]
        %v2414 = vld [vmem:[%s2334 + $0xb2] sm:$0xff]
        %2415 = vst [vmem:[#allocation3 + $0x28] sm:$0xff] %v2399
        %2416 = vst [vmem:[#allocation3 + $0x70] sm:$0xff] %v2400
        %2417 = vst [vmem:[#allocation3 + $0xb8] sm:$0xff] %v2401
        %2418 = vst [vmem:[#allocation3 + $0x100] sm:$0xff] %v2402
        %2419 = vst [vmem:[#allocation3 + $0x148] sm:$0xff] %v2403
        %2420 = vst [vmem:[#allocation3 + $0x190] sm:$0xff] %v2404
        %2421 = vst [vmem:[#allocation3 + $0x1d8] sm:$0xff] %v2405
        %2422 = vst [vmem:[#allocation3 + $0x220] sm:$0xff] %v2406
        %2423 = vst [vmem:[#allocation3 + $0x268] sm:$0xff] %v2407
        %2424 = vst [vmem:[#allocation3 + $0x2b0] sm:$0xff] %v2408
        %2425 = vst [vmem:[#allocation3 + $0x2f8] sm:$0xff] %v2409
        %2426 = vst [vmem:[#allocation3 + $0x340] sm:$0xff] %v2410
        %2427 = vst [vmem:[#allocation3 + $0x388] sm:$0xff] %v2411
        %2428 = vst [vmem:[#allocation3 + $0x3d0] sm:$0xff] %v2412
        %2429 = vst [vmem:[#allocation3 + $0x418] sm:$0xff] %v2413
        %2430 = vst [vmem:[#allocation3 + $0x460] sm:$0xff] %v2414
        %s2431 = scalar_lea.vmem %s274, 240
        %v2432 = vld [vmem:[%s2431] sm:$0xff]
        %v2433 = vld [vmem:[%s2431 + $0x8] sm:$0xff]
        %v2434 = vld [vmem:[%s2431 + $0x18] sm:$0xff]
        %v2435 = vld [vmem:[%s2431 + $0x20] sm:$0xff]
        %v2436 = vld [vmem:[%s2431 + $0x30] sm:$0xff]
        %v2437 = vld [vmem:[%s2431 + $0x38] sm:$0xff]
        %v2438 = vld [vmem:[%s2431 + $0x48] sm:$0xff]
        %v2439 = vld [vmem:[%s2431 + $0x50] sm:$0xff]
        %v2440 = vld [vmem:[%s2431 + $0x60] sm:$0xff]
        %v2441 = vld [vmem:[%s2431 + $0x68] sm:$0xff]
        %v2442 = vld [vmem:[%s2431 + $0x78] sm:$0xff]
        %v2443 = vld [vmem:[%s2431 + $0x80] sm:$0xff]
        %v2444 = vld [vmem:[%s2431 + $0x90] sm:$0xff]
        %v2445 = vld [vmem:[%s2431 + $0x98] sm:$0xff]
        %v2446 = vld [vmem:[%s2431 + $0xa8] sm:$0xff]
        %v2447 = vld [vmem:[%s2431 + $0xb0] sm:$0xff]
        %2448 = vst [vmem:[#allocation3 + $0x30] sm:$0xff] %v2432
        %2449 = vst [vmem:[#allocation3 + $0x78] sm:$0xff] %v2433
        %2450 = vst [vmem:[#allocation3 + $0xc0] sm:$0xff] %v2434
        %2451 = vst [vmem:[#allocation3 + $0x108] sm:$0xff] %v2435
        %2452 = vst [vmem:[#allocation3 + $0x150] sm:$0xff] %v2436
        %2453 = vst [vmem:[#allocation3 + $0x198] sm:$0xff] %v2437
        %2454 = vst [vmem:[#allocation3 + $0x1e0] sm:$0xff] %v2438
        %2455 = vst [vmem:[#allocation3 + $0x228] sm:$0xff] %v2439
        %2456 = vst [vmem:[#allocation3 + $0x270] sm:$0xff] %v2440
        %2457 = vst [vmem:[#allocation3 + $0x2b8] sm:$0xff] %v2441
        %2458 = vst [vmem:[#allocation3 + $0x300] sm:$0xff] %v2442
        %2459 = vst [vmem:[#allocation3 + $0x348] sm:$0xff] %v2443
        %2460 = vst [vmem:[#allocation3 + $0x390] sm:$0xff] %v2444
        %2461 = vst [vmem:[#allocation3 + $0x3d8] sm:$0xff] %v2445
        %2462 = vst [vmem:[#allocation3 + $0x420] sm:$0xff] %v2446
        %2463 = vst [vmem:[#allocation3 + $0x468] sm:$0xff] %v2447
        %v2464 = vld [vmem:[%s2431 + $0x1] sm:$0xff]
        %v2465 = vld [vmem:[%s2431 + $0x9] sm:$0xff]
        %v2466 = vld [vmem:[%s2431 + $0x19] sm:$0xff]
        %v2467 = vld [vmem:[%s2431 + $0x21] sm:$0xff]
        %v2468 = vld [vmem:[%s2431 + $0x31] sm:$0xff]
        %v2469 = vld [vmem:[%s2431 + $0x39] sm:$0xff]
        %v2470 = vld [vmem:[%s2431 + $0x49] sm:$0xff]
        %v2471 = vld [vmem:[%s2431 + $0x51] sm:$0xff]
        %v2472 = vld [vmem:[%s2431 + $0x61] sm:$0xff]
        %v2473 = vld [vmem:[%s2431 + $0x69] sm:$0xff]
        %v2474 = vld [vmem:[%s2431 + $0x79] sm:$0xff]
        %v2475 = vld [vmem:[%s2431 + $0x81] sm:$0xff]
        %v2476 = vld [vmem:[%s2431 + $0x91] sm:$0xff]
        %v2477 = vld [vmem:[%s2431 + $0x99] sm:$0xff]
        %v2478 = vld [vmem:[%s2431 + $0xa9] sm:$0xff]
        %v2479 = vld [vmem:[%s2431 + $0xb1] sm:$0xff]
        %2480 = vst [vmem:[#allocation3 + $0x38] sm:$0xff] %v2464
        %2481 = vst [vmem:[#allocation3 + $0x80] sm:$0xff] %v2465
        %2482 = vst [vmem:[#allocation3 + $0xc8] sm:$0xff] %v2466
        %2483 = vst [vmem:[#allocation3 + $0x110] sm:$0xff] %v2467
        %2484 = vst [vmem:[#allocation3 + $0x158] sm:$0xff] %v2468
        %2485 = vst [vmem:[#allocation3 + $0x1a0] sm:$0xff] %v2469
        %2486 = vst [vmem:[#allocation3 + $0x1e8] sm:$0xff] %v2470
        %2487 = vst [vmem:[#allocation3 + $0x230] sm:$0xff] %v2471
        %2488 = vst [vmem:[#allocation3 + $0x278] sm:$0xff] %v2472
        %2489 = vst [vmem:[#allocation3 + $0x2c0] sm:$0xff] %v2473
        %2490 = vst [vmem:[#allocation3 + $0x308] sm:$0xff] %v2474
        %2491 = vst [vmem:[#allocation3 + $0x350] sm:$0xff] %v2475
        %2492 = vst [vmem:[#allocation3 + $0x398] sm:$0xff] %v2476
        %2493 = vst [vmem:[#allocation3 + $0x3e0] sm:$0xff] %v2477
        %2494 = vst [vmem:[#allocation3 + $0x428] sm:$0xff] %v2478
        %2495 = vst [vmem:[#allocation3 + $0x470] sm:$0xff] %v2479
        %v2496 = vld [vmem:[%s2431 + $0x2] sm:$0xff]
        %v2497 = vld [vmem:[%s2431 + $0xa] sm:$0xff]
        %v2498 = vld [vmem:[%s2431 + $0x1a] sm:$0xff]
        %v2499 = vld [vmem:[%s2431 + $0x22] sm:$0xff]
        %v2500 = vld [vmem:[%s2431 + $0x32] sm:$0xff]
        %v2501 = vld [vmem:[%s2431 + $0x3a] sm:$0xff]
        %v2502 = vld [vmem:[%s2431 + $0x4a] sm:$0xff]
        %v2503 = vld [vmem:[%s2431 + $0x52] sm:$0xff]
        %v2504 = vld [vmem:[%s2431 + $0x62] sm:$0xff]
        %v2505 = vld [vmem:[%s2431 + $0x6a] sm:$0xff]
        %v2506 = vld [vmem:[%s2431 + $0x7a] sm:$0xff]
        %v2507 = vld [vmem:[%s2431 + $0x82] sm:$0xff]
        %v2508 = vld [vmem:[%s2431 + $0x92] sm:$0xff]
        %v2509 = vld [vmem:[%s2431 + $0x9a] sm:$0xff]
        %v2510 = vld [vmem:[%s2431 + $0xaa] sm:$0xff]
        %v2511 = vld [vmem:[%s2431 + $0xb2] sm:$0xff]
        %2512 = vst [vmem:[#allocation3 + $0x40] sm:$0xff] %v2496
        %2513 = vst [vmem:[#allocation3 + $0x88] sm:$0xff] %v2497
        %2514 = vst [vmem:[#allocation3 + $0xd0] sm:$0xff] %v2498
        %2515 = vst [vmem:[#allocation3 + $0x118] sm:$0xff] %v2499
        %2516 = vst [vmem:[#allocation3 + $0x160] sm:$0xff] %v2500
        %2517 = vst [vmem:[#allocation3 + $0x1a8] sm:$0xff] %v2501
        %2518 = vst [vmem:[#allocation3 + $0x1f0] sm:$0xff] %v2502
        %2519 = vst [vmem:[#allocation3 + $0x238] sm:$0xff] %v2503
        %2520 = vst [vmem:[#allocation3 + $0x280] sm:$0xff] %v2504
        %2521 = vst [vmem:[#allocation3 + $0x2c8] sm:$0xff] %v2505
        %2522 = vst [vmem:[#allocation3 + $0x310] sm:$0xff] %v2506
        %2523 = vst [vmem:[#allocation3 + $0x358] sm:$0xff] %v2507
        %2524 = vst [vmem:[#allocation3 + $0x3a0] sm:$0xff] %v2508
        %2525 = vst [vmem:[#allocation3 + $0x3e8] sm:$0xff] %v2509
        %2526 = vst [vmem:[#allocation3 + $0x430] sm:$0xff] %v2510
        %2527 = vst [vmem:[#allocation3 + $0x478] sm:$0xff] %v2511
        %v2528 = vld [vmem:[#allocation3] sm:$0xff]
        %v2529 = vld [vmem:[#allocation3 + $0x8] sm:$0xff]
        %v2530 = vld [vmem:[#allocation3 + $0x10] sm:$0xff]
        %v2531 = vld [vmem:[#allocation3 + $0x18] sm:$0xff]
        %v2532 = vld [vmem:[#allocation3 + $0x20] sm:$0xff]
        %v2533 = vld [vmem:[#allocation3 + $0x28] sm:$0xff]
        %v2534 = vld [vmem:[#allocation3 + $0x30] sm:$0xff]
        %v2535 = vld [vmem:[#allocation3 + $0x38] sm:$0xff]
        %v2536 = vld [vmem:[#allocation3 + $0x40] sm:$0xff]
        %v2537 = vld [vmem:[#allocation3 + $0x48] sm:$0xff]
        %v2538 = vld [vmem:[#allocation3 + $0x50] sm:$0xff]
        %v2539 = vld [vmem:[#allocation3 + $0x58] sm:$0xff]
        %v2540 = vld [vmem:[#allocation3 + $0x60] sm:$0xff]
        %v2541 = vld [vmem:[#allocation3 + $0x68] sm:$0xff]
        %v2542 = vld [vmem:[#allocation3 + $0x70] sm:$0xff]
        %v2543 = vld [vmem:[#allocation3 + $0x78] sm:$0xff]
        %v2544 = vld [vmem:[#allocation3 + $0x80] sm:$0xff]
        %v2545 = vld [vmem:[#allocation3 + $0x88] sm:$0xff]
        %v2546 = vld [vmem:[#allocation3 + $0x90] sm:$0xff]
        %v2547 = vld [vmem:[#allocation3 + $0x98] sm:$0xff]
        %v2548 = vld [vmem:[#allocation3 + $0xa0] sm:$0xff]
        %v2549 = vld [vmem:[#allocation3 + $0xa8] sm:$0xff]
        %v2550 = vld [vmem:[#allocation3 + $0xb0] sm:$0xff]
        %v2551 = vld [vmem:[#allocation3 + $0xb8] sm:$0xff]
        %v2552 = vld [vmem:[#allocation3 + $0xc0] sm:$0xff]
        %v2553 = vld [vmem:[#allocation3 + $0xc8] sm:$0xff]
        %v2554 = vld [vmem:[#allocation3 + $0xd0] sm:$0xff]
        %v2555 = vld [vmem:[#allocation3 + $0xd8] sm:$0xff]
        %v2556 = vld [vmem:[#allocation3 + $0xe0] sm:$0xff]
        %v2557 = vld [vmem:[#allocation3 + $0xe8] sm:$0xff]
        %v2558 = vld [vmem:[#allocation3 + $0xf0] sm:$0xff]
        %v2559 = vld [vmem:[#allocation3 + $0xf8] sm:$0xff]
        %v2560 = vld [vmem:[#allocation3 + $0x100] sm:$0xff]
        %v2561 = vld [vmem:[#allocation3 + $0x108] sm:$0xff]
        %v2562 = vld [vmem:[#allocation3 + $0x110] sm:$0xff]
        %v2563 = vld [vmem:[#allocation3 + $0x118] sm:$0xff]
        %v2564 = vld [vmem:[#allocation3 + $0x120] sm:$0xff]
        %v2565 = vld [vmem:[#allocation3 + $0x128] sm:$0xff]
        %v2566 = vld [vmem:[#allocation3 + $0x130] sm:$0xff]
        %v2567 = vld [vmem:[#allocation3 + $0x138] sm:$0xff]
        %v2568 = vld [vmem:[#allocation3 + $0x140] sm:$0xff]
        %v2569 = vld [vmem:[#allocation3 + $0x148] sm:$0xff]
        %v2570 = vld [vmem:[#allocation3 + $0x150] sm:$0xff]
        %v2571 = vld [vmem:[#allocation3 + $0x158] sm:$0xff]
        %v2572 = vld [vmem:[#allocation3 + $0x160] sm:$0xff]
        %v2573 = vld [vmem:[#allocation3 + $0x168] sm:$0xff]
        %v2574 = vld [vmem:[#allocation3 + $0x170] sm:$0xff]
        %v2575 = vld [vmem:[#allocation3 + $0x178] sm:$0xff]
        %v2576 = vld [vmem:[#allocation3 + $0x180] sm:$0xff]
        %v2577 = vld [vmem:[#allocation3 + $0x188] sm:$0xff]
        %v2578 = vld [vmem:[#allocation3 + $0x190] sm:$0xff]
        %v2579 = vld [vmem:[#allocation3 + $0x198] sm:$0xff]
        %v2580 = vld [vmem:[#allocation3 + $0x1a0] sm:$0xff]
        %v2581 = vld [vmem:[#allocation3 + $0x1a8] sm:$0xff]
        %v2582 = vld [vmem:[#allocation3 + $0x1b0] sm:$0xff]
        %v2583 = vld [vmem:[#allocation3 + $0x1b8] sm:$0xff]
        %v2584 = vld [vmem:[#allocation3 + $0x1c0] sm:$0xff]
        %v2585 = vld [vmem:[#allocation3 + $0x1c8] sm:$0xff]
        %v2586 = vld [vmem:[#allocation3 + $0x1d0] sm:$0xff]
        %v2587 = vld [vmem:[#allocation3 + $0x1d8] sm:$0xff]
        %v2588 = vld [vmem:[#allocation3 + $0x1e0] sm:$0xff]
        %v2589 = vld [vmem:[#allocation3 + $0x1e8] sm:$0xff]
        %v2590 = vld [vmem:[#allocation3 + $0x1f0] sm:$0xff]
        %v2591 = vld [vmem:[#allocation3 + $0x1f8] sm:$0xff]
        %v2592 = vld [vmem:[#allocation3 + $0x200] sm:$0xff]
        %v2593 = vld [vmem:[#allocation3 + $0x208] sm:$0xff]
        %v2594 = vld [vmem:[#allocation3 + $0x210] sm:$0xff]
        %v2595 = vld [vmem:[#allocation3 + $0x218] sm:$0xff]
        %v2596 = vld [vmem:[#allocation3 + $0x220] sm:$0xff]
        %v2597 = vld [vmem:[#allocation3 + $0x228] sm:$0xff]
        %v2598 = vld [vmem:[#allocation3 + $0x230] sm:$0xff]
        %v2599 = vld [vmem:[#allocation3 + $0x238] sm:$0xff]
        %v2600 = vld [vmem:[#allocation3 + $0x240] sm:$0xff]
        %v2601 = vld [vmem:[#allocation3 + $0x248] sm:$0xff]
        %v2602 = vld [vmem:[#allocation3 + $0x250] sm:$0xff]
        %v2603 = vld [vmem:[#allocation3 + $0x258] sm:$0xff]
        %v2604 = vld [vmem:[#allocation3 + $0x260] sm:$0xff]
        %v2605 = vld [vmem:[#allocation3 + $0x268] sm:$0xff]
        %v2606 = vld [vmem:[#allocation3 + $0x270] sm:$0xff]
        %v2607 = vld [vmem:[#allocation3 + $0x278] sm:$0xff]
        %v2608 = vld [vmem:[#allocation3 + $0x280] sm:$0xff]
        %v2609 = vld [vmem:[#allocation3 + $0x288] sm:$0xff]
        %v2610 = vld [vmem:[#allocation3 + $0x290] sm:$0xff]
        %v2611 = vld [vmem:[#allocation3 + $0x298] sm:$0xff]
        %v2612 = vld [vmem:[#allocation3 + $0x2a0] sm:$0xff]
        %v2613 = vld [vmem:[#allocation3 + $0x2a8] sm:$0xff]
        %v2614 = vld [vmem:[#allocation3 + $0x2b0] sm:$0xff]
        %v2615 = vld [vmem:[#allocation3 + $0x2b8] sm:$0xff]
        %v2616 = vld [vmem:[#allocation3 + $0x2c0] sm:$0xff]
        %v2617 = vld [vmem:[#allocation3 + $0x2c8] sm:$0xff]
        %v2618 = vld [vmem:[#allocation3 + $0x2d0] sm:$0xff]
        %v2619 = vld [vmem:[#allocation3 + $0x2d8] sm:$0xff]
        %v2620 = vld [vmem:[#allocation3 + $0x2e0] sm:$0xff]
        %v2621 = vld [vmem:[#allocation3 + $0x2e8] sm:$0xff]
        %v2622 = vld [vmem:[#allocation3 + $0x2f0] sm:$0xff]
        %v2623 = vld [vmem:[#allocation3 + $0x2f8] sm:$0xff]
        %v2624 = vld [vmem:[#allocation3 + $0x300] sm:$0xff]
        %v2625 = vld [vmem:[#allocation3 + $0x308] sm:$0xff]
        %v2626 = vld [vmem:[#allocation3 + $0x310] sm:$0xff]
        %v2627 = vld [vmem:[#allocation3 + $0x318] sm:$0xff]
        %v2628 = vld [vmem:[#allocation3 + $0x320] sm:$0xff]
        %v2629 = vld [vmem:[#allocation3 + $0x328] sm:$0xff]
        %v2630 = vld [vmem:[#allocation3 + $0x330] sm:$0xff]
        %v2631 = vld [vmem:[#allocation3 + $0x338] sm:$0xff]
        %v2632 = vld [vmem:[#allocation3 + $0x340] sm:$0xff]
        %v2633 = vld [vmem:[#allocation3 + $0x348] sm:$0xff]
        %v2634 = vld [vmem:[#allocation3 + $0x350] sm:$0xff]
        %v2635 = vld [vmem:[#allocation3 + $0x358] sm:$0xff]
        %v2636 = vld [vmem:[#allocation3 + $0x360] sm:$0xff]
        %v2637 = vld [vmem:[#allocation3 + $0x368] sm:$0xff]
        %v2638 = vld [vmem:[#allocation3 + $0x370] sm:$0xff]
        %v2639 = vld [vmem:[#allocation3 + $0x378] sm:$0xff]
        %v2640 = vld [vmem:[#allocation3 + $0x380] sm:$0xff]
        %v2641 = vld [vmem:[#allocation3 + $0x388] sm:$0xff]
        %v2642 = vld [vmem:[#allocation3 + $0x390] sm:$0xff]
        %v2643 = vld [vmem:[#allocation3 + $0x398] sm:$0xff]
        %v2644 = vld [vmem:[#allocation3 + $0x3a0] sm:$0xff]
        %v2645 = vld [vmem:[#allocation3 + $0x3a8] sm:$0xff]
        %v2646 = vld [vmem:[#allocation3 + $0x3b0] sm:$0xff]
        %v2647 = vld [vmem:[#allocation3 + $0x3b8] sm:$0xff]
        %v2648 = vld [vmem:[#allocation3 + $0x3c0] sm:$0xff]
        %v2649 = vld [vmem:[#allocation3 + $0x3c8] sm:$0xff]
        %v2650 = vld [vmem:[#allocation3 + $0x3d0] sm:$0xff]
        %v2651 = vld [vmem:[#allocation3 + $0x3d8] sm:$0xff]
        %v2652 = vld [vmem:[#allocation3 + $0x3e0] sm:$0xff]
        %v2653 = vld [vmem:[#allocation3 + $0x3e8] sm:$0xff]
        %v2654 = vld [vmem:[#allocation3 + $0x3f0] sm:$0xff]
        %v2655 = vld [vmem:[#allocation3 + $0x3f8] sm:$0xff]
        %v2656 = vld [vmem:[#allocation3 + $0x400] sm:$0xff]
        %v2657 = vld [vmem:[#allocation3 + $0x408] sm:$0xff]
        %v2658 = vld [vmem:[#allocation3 + $0x410] sm:$0xff]
        %v2659 = vld [vmem:[#allocation3 + $0x418] sm:$0xff]
        %v2660 = vld [vmem:[#allocation3 + $0x420] sm:$0xff]
        %v2661 = vld [vmem:[#allocation3 + $0x428] sm:$0xff]
        %v2662 = vld [vmem:[#allocation3 + $0x430] sm:$0xff]
        %v2663 = vld [vmem:[#allocation3 + $0x438] sm:$0xff]
        %v2664 = vld [vmem:[#allocation3 + $0x440] sm:$0xff]
        %v2665 = vld [vmem:[#allocation3 + $0x448] sm:$0xff]
        %v2666 = vld [vmem:[#allocation3 + $0x450] sm:$0xff]
        %v2667 = vld [vmem:[#allocation3 + $0x458] sm:$0xff]
        %v2668 = vld [vmem:[#allocation3 + $0x460] sm:$0xff]
        %v2669 = vld [vmem:[#allocation3 + $0x468] sm:$0xff]
        %v2670 = vld [vmem:[#allocation3 + $0x470] sm:$0xff]
        %v2671 = vld [vmem:[#allocation3 + $0x478] sm:$0xff]
        %v2672 = vld [vmem:[#allocation4] sm:$0xff]
        %v2673 = vld [vmem:[#allocation4 + $0x8] sm:$0xff]
        %v2674 = vld [vmem:[#allocation4 + $0x10] sm:$0xff]
        %v2675 = vld [vmem:[#allocation4 + $0x18] sm:$0xff]
        %v2676 = vld [vmem:[#allocation4 + $0x20] sm:$0xff]
        %v2677 = vld [vmem:[#allocation4 + $0x28] sm:$0xff]
        %v2678 = vld [vmem:[#allocation4 + $0x30] sm:$0xff]
        %v2679 = vld [vmem:[#allocation4 + $0x38] sm:$0xff]
        %v2680 = vld [vmem:[#allocation4 + $0x40] sm:$0xff]
        %v2681 = vld [vmem:[#allocation4 + $0x48] sm:$0xff]
        %v2682 = vld [vmem:[#allocation4 + $0x50] sm:$0xff]
        %v2683 = vld [vmem:[#allocation4 + $0x58] sm:$0xff]
        %v2684 = vld [vmem:[#allocation4 + $0x60] sm:$0xff]
        %v2685 = vld [vmem:[#allocation4 + $0x68] sm:$0xff]
        %v2686 = vld [vmem:[#allocation4 + $0x70] sm:$0xff]
        %v2687 = vld [vmem:[#allocation4 + $0x78] sm:$0xff]
        %v2688 = vld [vmem:[#allocation4 + $0x80] sm:$0xff]
        %v2689 = vld [vmem:[#allocation4 + $0x88] sm:$0xff]
        %v2690 = vld [vmem:[#allocation4 + $0x90] sm:$0xff]
        %v2691 = vld [vmem:[#allocation4 + $0x98] sm:$0xff]
        %v2692 = vld [vmem:[#allocation4 + $0xa0] sm:$0xff]
        %v2693 = vld [vmem:[#allocation4 + $0xa8] sm:$0xff]
        %v2694 = vld [vmem:[#allocation4 + $0xb0] sm:$0xff]
        %v2695 = vld [vmem:[#allocation4 + $0xb8] sm:$0xff]
        %v2696 = vld [vmem:[#allocation4 + $0xc0] sm:$0xff]
        %v2697 = vld [vmem:[#allocation4 + $0xc8] sm:$0xff]
        %v2698 = vld [vmem:[#allocation4 + $0xd0] sm:$0xff]
        %v2699 = vld [vmem:[#allocation4 + $0xd8] sm:$0xff]
        %v2700 = vld [vmem:[#allocation4 + $0xe0] sm:$0xff]
        %v2701 = vld [vmem:[#allocation4 + $0xe8] sm:$0xff]
        %v2702 = vld [vmem:[#allocation4 + $0xf0] sm:$0xff]
        %v2703 = vld [vmem:[#allocation4 + $0xf8] sm:$0xff]
        %v2704 = vld [vmem:[#allocation4 + $0x100] sm:$0xff]
        %v2705 = vld [vmem:[#allocation4 + $0x108] sm:$0xff]
        %v2706 = vld [vmem:[#allocation4 + $0x110] sm:$0xff]
        %v2707 = vld [vmem:[#allocation4 + $0x118] sm:$0xff]
        %v2708 = vld [vmem:[#allocation4 + $0x120] sm:$0xff]
        %v2709 = vld [vmem:[#allocation4 + $0x128] sm:$0xff]
        %v2710 = vld [vmem:[#allocation4 + $0x130] sm:$0xff]
        %v2711 = vld [vmem:[#allocation4 + $0x138] sm:$0xff]
        %v2712 = vld [vmem:[#allocation4 + $0x140] sm:$0xff]
        %v2713 = vld [vmem:[#allocation4 + $0x148] sm:$0xff]
        %v2714 = vld [vmem:[#allocation4 + $0x150] sm:$0xff]
        %v2715 = vld [vmem:[#allocation4 + $0x158] sm:$0xff]
        %v2716 = vld [vmem:[#allocation4 + $0x160] sm:$0xff]
        %v2717 = vld [vmem:[#allocation4 + $0x168] sm:$0xff]
        %v2718 = vld [vmem:[#allocation4 + $0x170] sm:$0xff]
        %v2719 = vld [vmem:[#allocation4 + $0x178] sm:$0xff]
        %v2720 = vld [vmem:[#allocation4 + $0x180] sm:$0xff]
        %v2721 = vld [vmem:[#allocation4 + $0x188] sm:$0xff]
        %v2722 = vld [vmem:[#allocation4 + $0x190] sm:$0xff]
        %v2723 = vld [vmem:[#allocation4 + $0x198] sm:$0xff]
        %v2724 = vld [vmem:[#allocation4 + $0x1a0] sm:$0xff]
        %v2725 = vld [vmem:[#allocation4 + $0x1a8] sm:$0xff]
        %v2726 = vld [vmem:[#allocation4 + $0x1b0] sm:$0xff]
        %v2727 = vld [vmem:[#allocation4 + $0x1b8] sm:$0xff]
        %v2728 = vld [vmem:[#allocation4 + $0x1c0] sm:$0xff]
        %v2729 = vld [vmem:[#allocation4 + $0x1c8] sm:$0xff]
        %v2730 = vld [vmem:[#allocation4 + $0x1d0] sm:$0xff]
        %v2731 = vld [vmem:[#allocation4 + $0x1d8] sm:$0xff]
        %v2732 = vld [vmem:[#allocation4 + $0x1e0] sm:$0xff]
        %v2733 = vld [vmem:[#allocation4 + $0x1e8] sm:$0xff]
        %v2734 = vld [vmem:[#allocation4 + $0x1f0] sm:$0xff]
        %v2735 = vld [vmem:[#allocation4 + $0x1f8] sm:$0xff]
        %v2736 = vld [vmem:[#allocation4 + $0x200] sm:$0xff]
        %v2737 = vld [vmem:[#allocation4 + $0x208] sm:$0xff]
        %v2738 = vld [vmem:[#allocation4 + $0x210] sm:$0xff]
        %v2739 = vld [vmem:[#allocation4 + $0x218] sm:$0xff]
        %v2740 = vld [vmem:[#allocation4 + $0x220] sm:$0xff]
        %v2741 = vld [vmem:[#allocation4 + $0x228] sm:$0xff]
        %v2742 = vld [vmem:[#allocation4 + $0x230] sm:$0xff]
        %v2743 = vld [vmem:[#allocation4 + $0x238] sm:$0xff]
        %v2744 = vld [vmem:[#allocation4 + $0x240] sm:$0xff]
        %v2745 = vld [vmem:[#allocation4 + $0x248] sm:$0xff]
        %v2746 = vld [vmem:[#allocation4 + $0x250] sm:$0xff]
        %v2747 = vld [vmem:[#allocation4 + $0x258] sm:$0xff]
        %v2748 = vld [vmem:[#allocation4 + $0x260] sm:$0xff]
        %v2749 = vld [vmem:[#allocation4 + $0x268] sm:$0xff]
        %v2750 = vld [vmem:[#allocation4 + $0x270] sm:$0xff]
        %v2751 = vld [vmem:[#allocation4 + $0x278] sm:$0xff]
        %v2752 = vld [vmem:[#allocation4 + $0x280] sm:$0xff]
        %v2753 = vld [vmem:[#allocation4 + $0x288] sm:$0xff]
        %v2754 = vld [vmem:[#allocation4 + $0x290] sm:$0xff]
        %v2755 = vld [vmem:[#allocation4 + $0x298] sm:$0xff]
        %v2756 = vld [vmem:[#allocation4 + $0x2a0] sm:$0xff]
        %v2757 = vld [vmem:[#allocation4 + $0x2a8] sm:$0xff]
        %v2758 = vld [vmem:[#allocation4 + $0x2b0] sm:$0xff]
        %v2759 = vld [vmem:[#allocation4 + $0x2b8] sm:$0xff]
        %v2760 = vld [vmem:[#allocation4 + $0x2c0] sm:$0xff]
        %v2761 = vld [vmem:[#allocation4 + $0x2c8] sm:$0xff]
        %v2762 = vld [vmem:[#allocation4 + $0x2d0] sm:$0xff]
        %v2763 = vld [vmem:[#allocation4 + $0x2d8] sm:$0xff]
        %v2764 = vld [vmem:[#allocation4 + $0x2e0] sm:$0xff]
        %v2765 = vld [vmem:[#allocation4 + $0x2e8] sm:$0xff]
        %v2766 = vld [vmem:[#allocation4 + $0x2f0] sm:$0xff]
        %v2767 = vld [vmem:[#allocation4 + $0x2f8] sm:$0xff]
        %v2768 = vld [vmem:[#allocation4 + $0x300] sm:$0xff]
        %v2769 = vld [vmem:[#allocation4 + $0x308] sm:$0xff]
        %v2770 = vld [vmem:[#allocation4 + $0x310] sm:$0xff]
        %v2771 = vld [vmem:[#allocation4 + $0x318] sm:$0xff]
        %v2772 = vld [vmem:[#allocation4 + $0x320] sm:$0xff]
        %v2773 = vld [vmem:[#allocation4 + $0x328] sm:$0xff]
        %v2774 = vld [vmem:[#allocation4 + $0x330] sm:$0xff]
        %v2775 = vld [vmem:[#allocation4 + $0x338] sm:$0xff]
        %v2776 = vld [vmem:[#allocation4 + $0x340] sm:$0xff]
        %v2777 = vld [vmem:[#allocation4 + $0x348] sm:$0xff]
        %v2778 = vld [vmem:[#allocation4 + $0x350] sm:$0xff]
        %v2779 = vld [vmem:[#allocation4 + $0x358] sm:$0xff]
        %v2780 = vld [vmem:[#allocation4 + $0x360] sm:$0xff]
        %v2781 = vld [vmem:[#allocation4 + $0x368] sm:$0xff]
        %v2782 = vld [vmem:[#allocation4 + $0x370] sm:$0xff]
        %v2783 = vld [vmem:[#allocation4 + $0x378] sm:$0xff]
        %v2784 = vld [vmem:[#allocation4 + $0x380] sm:$0xff]
        %v2785 = vld [vmem:[#allocation4 + $0x388] sm:$0xff]
        %v2786 = vld [vmem:[#allocation4 + $0x390] sm:$0xff]
        %v2787 = vld [vmem:[#allocation4 + $0x398] sm:$0xff]
        %v2788 = vld [vmem:[#allocation4 + $0x3a0] sm:$0xff]
        %v2789 = vld [vmem:[#allocation4 + $0x3a8] sm:$0xff]
        %v2790 = vld [vmem:[#allocation4 + $0x3b0] sm:$0xff]
        %v2791 = vld [vmem:[#allocation4 + $0x3b8] sm:$0xff]
        %v2792 = vld [vmem:[#allocation4 + $0x3c0] sm:$0xff]
        %v2793 = vld [vmem:[#allocation4 + $0x3c8] sm:$0xff]
        %v2794 = vld [vmem:[#allocation4 + $0x3d0] sm:$0xff]
        %v2795 = vld [vmem:[#allocation4 + $0x3d8] sm:$0xff]
        %v2796 = vld [vmem:[#allocation4 + $0x3e0] sm:$0xff]
        %v2797 = vld [vmem:[#allocation4 + $0x3e8] sm:$0xff]
        %v2798 = vld [vmem:[#allocation4 + $0x3f0] sm:$0xff]
        %v2799 = vld [vmem:[#allocation4 + $0x3f8] sm:$0xff]
        %v2800 = vld [vmem:[#allocation4 + $0x400] sm:$0xff]
        %v2801 = vld [vmem:[#allocation4 + $0x408] sm:$0xff]
        %v2802 = vld [vmem:[#allocation4 + $0x410] sm:$0xff]
        %v2803 = vld [vmem:[#allocation4 + $0x418] sm:$0xff]
        %v2804 = vld [vmem:[#allocation4 + $0x420] sm:$0xff]
        %v2805 = vld [vmem:[#allocation4 + $0x428] sm:$0xff]
        %v2806 = vld [vmem:[#allocation4 + $0x430] sm:$0xff]
        %v2807 = vld [vmem:[#allocation4 + $0x438] sm:$0xff]
        %v2808 = vld [vmem:[#allocation4 + $0x440] sm:$0xff]
        %v2809 = vld [vmem:[#allocation4 + $0x448] sm:$0xff]
        %v2810 = vld [vmem:[#allocation4 + $0x450] sm:$0xff]
        %v2811 = vld [vmem:[#allocation4 + $0x458] sm:$0xff]
        %v2812 = vld [vmem:[#allocation4 + $0x460] sm:$0xff]
        %v2813 = vld [vmem:[#allocation4 + $0x468] sm:$0xff]
        %v2814 = vld [vmem:[#allocation4 + $0x470] sm:$0xff]
        %v2815 = vld [vmem:[#allocation4 + $0x478] sm:$0xff]
        %v2816 = vld [vmem:[#allocation4 + $0x480] sm:$0xff]
        %v2817 = vld [vmem:[#allocation4 + $0x488] sm:$0xff]
        %v2818 = vld [vmem:[#allocation4 + $0x490] sm:$0xff]
        %v2819 = vld [vmem:[#allocation4 + $0x498] sm:$0xff]
        %v2820 = vld [vmem:[#allocation4 + $0x4a0] sm:$0xff]
        %v2821 = vld [vmem:[#allocation4 + $0x4a8] sm:$0xff]
        %v2822 = vld [vmem:[#allocation4 + $0x4b0] sm:$0xff]
        %v2823 = vld [vmem:[#allocation4 + $0x4b8] sm:$0xff]
        %v2824 = vld [vmem:[#allocation4 + $0x4c0] sm:$0xff]
        %v2825 = vld [vmem:[#allocation4 + $0x4c8] sm:$0xff]
        %v2826 = vld [vmem:[#allocation4 + $0x4d0] sm:$0xff]
        %v2827 = vld [vmem:[#allocation4 + $0x4d8] sm:$0xff]
        %v2828 = vld [vmem:[#allocation4 + $0x4e0] sm:$0xff]
        %v2829 = vld [vmem:[#allocation4 + $0x4e8] sm:$0xff]
        %v2830 = vld [vmem:[#allocation4 + $0x4f0] sm:$0xff]
        %v2831 = vld [vmem:[#allocation4 + $0x4f8] sm:$0xff]
        %v2832 = vld [vmem:[#allocation4 + $0x500] sm:$0xff]
        %v2833 = vld [vmem:[#allocation4 + $0x508] sm:$0xff]
        %v2834 = vld [vmem:[#allocation4 + $0x510] sm:$0xff]
        %v2835 = vld [vmem:[#allocation4 + $0x518] sm:$0xff]
        %v2836 = vld [vmem:[#allocation4 + $0x520] sm:$0xff]
        %v2837 = vld [vmem:[#allocation4 + $0x528] sm:$0xff]
        %v2838 = vld [vmem:[#allocation4 + $0x530] sm:$0xff]
        %v2839 = vld [vmem:[#allocation4 + $0x538] sm:$0xff]
        %v2840 = vld [vmem:[#allocation4 + $0x540] sm:$0xff]
        %v2841 = vld [vmem:[#allocation4 + $0x548] sm:$0xff]
        %v2842 = vld [vmem:[#allocation4 + $0x550] sm:$0xff]
        %v2843 = vld [vmem:[#allocation4 + $0x558] sm:$0xff]
        %v2844 = vld [vmem:[#allocation4 + $0x560] sm:$0xff]
        %v2845 = vld [vmem:[#allocation4 + $0x568] sm:$0xff]
        %v2846 = vld [vmem:[#allocation4 + $0x570] sm:$0xff]
        %v2847 = vld [vmem:[#allocation4 + $0x578] sm:$0xff]
        %v2848 = vld [vmem:[#allocation4 + $0x580] sm:$0xff]
        %v2849 = vld [vmem:[#allocation4 + $0x588] sm:$0xff]
        %v2850 = vld [vmem:[#allocation4 + $0x590] sm:$0xff]
        %v2851 = vld [vmem:[#allocation4 + $0x598] sm:$0xff]
        %v2852 = vld [vmem:[#allocation4 + $0x5a0] sm:$0xff]
        %v2853 = vld [vmem:[#allocation4 + $0x5a8] sm:$0xff]
        %v2854 = vld [vmem:[#allocation4 + $0x5b0] sm:$0xff]
        %v2855 = vld [vmem:[#allocation4 + $0x5b8] sm:$0xff]
        %v2856 = vld [vmem:[#allocation4 + $0x5c0] sm:$0xff]
        %v2857 = vld [vmem:[#allocation4 + $0x5c8] sm:$0xff]
        %v2858 = vld [vmem:[#allocation4 + $0x5d0] sm:$0xff]
        %v2859 = vld [vmem:[#allocation4 + $0x5d8] sm:$0xff]
        %v2860 = vld [vmem:[#allocation4 + $0x5e0] sm:$0xff]
        %v2861 = vld [vmem:[#allocation4 + $0x5e8] sm:$0xff]
        %v2862 = vld [vmem:[#allocation4 + $0x5f0] sm:$0xff]
        %v2863 = vld [vmem:[#allocation4 + $0x5f8] sm:$0xff]
        %v2864 = vld [vmem:[#allocation4 + $0x600] sm:$0xff]
        %v2865 = vld [vmem:[#allocation4 + $0x608] sm:$0xff]
        %v2866 = vld [vmem:[#allocation4 + $0x610] sm:$0xff]
        %v2867 = vld [vmem:[#allocation4 + $0x618] sm:$0xff]
        %v2868 = vld [vmem:[#allocation4 + $0x620] sm:$0xff]
        %v2869 = vld [vmem:[#allocation4 + $0x628] sm:$0xff]
        %v2870 = vld [vmem:[#allocation4 + $0x630] sm:$0xff]
        %v2871 = vld [vmem:[#allocation4 + $0x638] sm:$0xff]
        %v2872 = vld [vmem:[#allocation4 + $0x640] sm:$0xff]
        %v2873 = vld [vmem:[#allocation4 + $0x648] sm:$0xff]
        %v2874 = vld [vmem:[#allocation4 + $0x650] sm:$0xff]
        %v2875 = vld [vmem:[#allocation4 + $0x658] sm:$0xff]
        %v2876 = vld [vmem:[#allocation4 + $0x660] sm:$0xff]
        %v2877 = vld [vmem:[#allocation4 + $0x668] sm:$0xff]
        %v2878 = vld [vmem:[#allocation4 + $0x670] sm:$0xff]
        %v2879 = vld [vmem:[#allocation4 + $0x678] sm:$0xff]
        %v2880 = vld [vmem:[#allocation4 + $0x680] sm:$0xff]
        %v2881 = vld [vmem:[#allocation4 + $0x688] sm:$0xff]
        %v2882 = vld [vmem:[#allocation4 + $0x690] sm:$0xff]
        %v2883 = vld [vmem:[#allocation4 + $0x698] sm:$0xff]
        %v2884 = vld [vmem:[#allocation4 + $0x6a0] sm:$0xff]
        %v2885 = vld [vmem:[#allocation4 + $0x6a8] sm:$0xff]
        %v2886 = vld [vmem:[#allocation4 + $0x6b0] sm:$0xff]
        %v2887 = vld [vmem:[#allocation4 + $0x6b8] sm:$0xff]
        %v2888 = vld [vmem:[#allocation4 + $0x6c0] sm:$0xff]
        %v2889 = vld [vmem:[#allocation4 + $0x6c8] sm:$0xff]
        %v2890 = vld [vmem:[#allocation4 + $0x6d0] sm:$0xff]
        %v2891 = vld [vmem:[#allocation4 + $0x6d8] sm:$0xff]
        %v2892 = vld [vmem:[#allocation4 + $0x6e0] sm:$0xff]
        %v2893 = vld [vmem:[#allocation4 + $0x6e8] sm:$0xff]
        %v2894 = vld [vmem:[#allocation4 + $0x6f0] sm:$0xff]
        %v2895 = vld [vmem:[#allocation4 + $0x6f8] sm:$0xff]
        %v2896 = vld [vmem:[#allocation4 + $0x700] sm:$0xff]
        %v2897 = vld [vmem:[#allocation4 + $0x708] sm:$0xff]
        %v2898 = vld [vmem:[#allocation4 + $0x710] sm:$0xff]
        %v2899 = vld [vmem:[#allocation4 + $0x718] sm:$0xff]
        %v2900 = vld [vmem:[#allocation4 + $0x720] sm:$0xff]
        %v2901 = vld [vmem:[#allocation4 + $0x728] sm:$0xff]
        %v2902 = vld [vmem:[#allocation4 + $0x730] sm:$0xff]
        %v2903 = vld [vmem:[#allocation4 + $0x738] sm:$0xff]
        %v2904 = vld [vmem:[#allocation4 + $0x740] sm:$0xff]
        %v2905 = vld [vmem:[#allocation4 + $0x748] sm:$0xff]
        %v2906 = vld [vmem:[#allocation4 + $0x750] sm:$0xff]
        %v2907 = vld [vmem:[#allocation4 + $0x758] sm:$0xff]
        %v2908 = vld [vmem:[#allocation4 + $0x760] sm:$0xff]
        %v2909 = vld [vmem:[#allocation4 + $0x768] sm:$0xff]
        %v2910 = vld [vmem:[#allocation4 + $0x770] sm:$0xff]
        %v2911 = vld [vmem:[#allocation4 + $0x778] sm:$0xff]
        %v2912 = vld [vmem:[#allocation4 + $0x780] sm:$0xff]
        %v2913 = vld [vmem:[#allocation4 + $0x788] sm:$0xff]
        %v2914 = vld [vmem:[#allocation4 + $0x790] sm:$0xff]
        %v2915 = vld [vmem:[#allocation4 + $0x798] sm:$0xff]
        %v2916 = vld [vmem:[#allocation4 + $0x7a0] sm:$0xff]
        %v2917 = vld [vmem:[#allocation4 + $0x7a8] sm:$0xff]
        %v2918 = vld [vmem:[#allocation4 + $0x7b0] sm:$0xff]
        %v2919 = vld [vmem:[#allocation4 + $0x7b8] sm:$0xff]
        %v2920 = vld [vmem:[#allocation4 + $0x7c0] sm:$0xff]
        %v2921 = vld [vmem:[#allocation4 + $0x7c8] sm:$0xff]
        %v2922 = vld [vmem:[#allocation4 + $0x7d0] sm:$0xff]
        %v2923 = vld [vmem:[#allocation4 + $0x7d8] sm:$0xff]
        %v2924 = vld [vmem:[#allocation4 + $0x7e0] sm:$0xff]
        %v2925 = vld [vmem:[#allocation4 + $0x7e8] sm:$0xff]
        %v2926 = vld [vmem:[#allocation4 + $0x7f0] sm:$0xff]
        %v2927 = vld [vmem:[#allocation4 + $0x7f8] sm:$0xff]
        %v2928 = vld [vmem:[#allocation4 + $0x800] sm:$0xff]
        %v2929 = vld [vmem:[#allocation4 + $0x808] sm:$0xff]
        %v2930 = vld [vmem:[#allocation4 + $0x810] sm:$0xff]
        %v2931 = vld [vmem:[#allocation4 + $0x818] sm:$0xff]
        %v2932 = vld [vmem:[#allocation4 + $0x820] sm:$0xff]
        %v2933 = vld [vmem:[#allocation4 + $0x828] sm:$0xff]
        %v2934 = vld [vmem:[#allocation4 + $0x830] sm:$0xff]
        %v2935 = vld [vmem:[#allocation4 + $0x838] sm:$0xff]
        %v2936 = vld [vmem:[#allocation4 + $0x840] sm:$0xff]
        %v2937 = vld [vmem:[#allocation4 + $0x848] sm:$0xff]
        %v2938 = vld [vmem:[#allocation4 + $0x850] sm:$0xff]
        %v2939 = vld [vmem:[#allocation4 + $0x858] sm:$0xff]
        %v2940 = vld [vmem:[#allocation4 + $0x860] sm:$0xff]
        %v2941 = vld [vmem:[#allocation4 + $0x868] sm:$0xff]
        %v2942 = vld [vmem:[#allocation4 + $0x870] sm:$0xff]
        %v2943 = vld [vmem:[#allocation4 + $0x878] sm:$0xff]
        %v2944 = vld [vmem:[#allocation4 + $0x880] sm:$0xff]
        %v2945 = vld [vmem:[#allocation4 + $0x888] sm:$0xff]
        %v2946 = vld [vmem:[#allocation4 + $0x890] sm:$0xff]
        %v2947 = vld [vmem:[#allocation4 + $0x898] sm:$0xff]
        %v2948 = vld [vmem:[#allocation4 + $0x8a0] sm:$0xff]
        %v2949 = vld [vmem:[#allocation4 + $0x8a8] sm:$0xff]
        %v2950 = vld [vmem:[#allocation4 + $0x8b0] sm:$0xff]
        %v2951 = vld [vmem:[#allocation4 + $0x8b8] sm:$0xff]
        %v2952 = vld [vmem:[#allocation4 + $0x8c0] sm:$0xff]
        %v2953 = vld [vmem:[#allocation4 + $0x8c8] sm:$0xff]
        %v2954 = vld [vmem:[#allocation4 + $0x8d0] sm:$0xff]
        %v2955 = vld [vmem:[#allocation4 + $0x8d8] sm:$0xff]
        %v2956 = vld [vmem:[#allocation4 + $0x8e0] sm:$0xff]
        %v2957 = vld [vmem:[#allocation4 + $0x8e8] sm:$0xff]
        %v2958 = vld [vmem:[#allocation4 + $0x8f0] sm:$0xff]
        %v2959 = vld [vmem:[#allocation4 + $0x8f8] sm:$0xff]
        %2960 = vmatprep.subr.mxu0 %v2673
        %2961 = vmatpush1.msra.mxu0 %v2672
        %2962 = vmatprep.subr.mxu0 %v2675
        %2963 = vmatpush1.msra.mxu0 %v2674
        %2964 = vmatprep.subr.mxu0 %v2677
        %2965 = vmatpush1.msra.mxu0 %v2676
        %2966 = vmatprep.subr.mxu0 %v2679
        %2967 = vmatpush1.msra.mxu0 %v2678
        %2968 = vmatprep.subr.mxu0 %v2681
        %2969 = vmatpush1.msra.mxu0 %v2680
        %2970 = vmatprep.subr.mxu0 %v2683
        %2971 = vmatpush1.msra.mxu0 %v2682
        %2972 = vmatprep.subr.mxu0 %v2685
        %2973 = vmatpush1.msra.mxu0 %v2684
        %2974 = vmatprep.subr.mxu0 %v2687
        %2975 = vmatpush1.msra.mxu0 %v2686
        %2976 = vmatprep.subr.mxu0 %v2689
        %2977 = vmatpush1.msra.mxu0 %v2688
        %2978 = vmatprep.subr.mxu0 %v2691
        %2979 = vmatpush1.msra.mxu0 %v2690
        %2980 = vmatprep.subr.mxu0 %v2693
        %2981 = vmatpush1.msra.mxu0 %v2692
        %2982 = vmatprep.subr.mxu0 %v2695
        %2983 = vmatpush1.msra.mxu0 %v2694
        %2984 = vmatprep.subr.mxu0 %v2697
        %2985 = vmatpush1.msra.mxu0 %v2696
        %2986 = vmatprep.subr.mxu0 %v2699
        %2987 = vmatpush1.msra.mxu0 %v2698
        %2988 = vmatprep.subr.mxu0 %v2701
        %2989 = vmatpush1.msra.mxu0 %v2700
        %2990 = vmatprep.subr.mxu0 %v2703
        %2991 = vmatpush1.msra.mxu0 %v2702
        %2992 = vmatprep.subr.mxu0 %v2705
        %2993 = vmatpush1.msra.mxu0 %v2704
        %2994 = vmatprep.subr.mxu0 %v2707
        %2995 = vmatpush1.msra.mxu0 %v2706
        %2996 = vmatprep.subr.mxu0 %v2709
        %2997 = vmatpush1.msra.mxu0 %v2708
        %2998 = vmatprep.subr.mxu0 %v2711
        %2999 = vmatpush1.msra.mxu0 %v2710
        %3000 = vmatprep.subr.mxu0 %v2713
        %3001 = vmatpush1.msra.mxu0 %v2712
        %3002 = vmatprep.subr.mxu0 %v2715
        %3003 = vmatpush1.msra.mxu0 %v2714
        %3004 = vmatprep.subr.mxu0 %v2717
        %3005 = vmatpush1.msra.mxu0 %v2716
        %3006 = vmatprep.subr.mxu0 %v2719
        %3007 = vmatpush1.msra.mxu0 %v2718
        %3008 = vmatprep.subr.mxu0 %v2721
        %3009 = vmatpush1.msra.mxu0 %v2720
        %3010 = vmatprep.subr.mxu0 %v2723
        %3011 = vmatpush1.msra.mxu0 %v2722
        %3012 = vmatprep.subr.mxu0 %v2725
        %3013 = vmatpush1.msra.mxu0 %v2724
        %3014 = vmatprep.subr.mxu0 %v2727
        %3015 = vmatpush1.msra.mxu0 %v2726
        %3016 = vmatprep.subr.mxu0 %v2729
        %3017 = vmatpush1.msra.mxu0 %v2728
        %3018 = vmatprep.subr.mxu0 %v2731
        %3019 = vmatpush1.msra.mxu0 %v2730
        %3020 = vmatprep.subr.mxu0 %v2733
        %3021 = vmatpush1.msra.mxu0 %v2732
        %3022 = vmatprep.subr.mxu0 %v2735
        %3023 = vmatpush1.msra.mxu0 %v2734
        %3024 = vmatprep.mubr.f32.mxu0 %v2529
        %3025 = vmatmul.mubr.f32.gmra.mrb[0].mxu0 %v2528
        %v3026 = vpop.f32.mrb[0].mxu0
        %v3027 = vadd.f32 0.0, %v3026
        %v3028 = vpop.f32.mrb[0].mxu0
        %v3029 = vadd.f32 0.0, %v3028
        %3030 = vmatprep.mubr.f32.mxu0 %v2538
        %3031 = vmatmul.mubr.f32.gmra.mrb[0].mxu0 %v2537
        %v3032 = vpop.f32.mrb[0].mxu0
        %v3033 = vadd.f32 0.0, %v3032
        %v3034 = vpop.f32.mrb[0].mxu0
        %v3035 = vadd.f32 0.0, %v3034
        %3036 = vmatprep.mubr.f32.mxu0 %v2547
        %3037 = vmatmul.mubr.f32.gmra.mrb[0].mxu0 %v2546
        %v3038 = vpop.f32.mrb[0].mxu0
        %v3039 = vadd.f32 0.0, %v3038
        %v3040 = vpop.f32.mrb[0].mxu0
        %v3041 = vadd.f32 0.0, %v3040
        %3042 = vmatprep.mubr.f32.mxu0 %v2556
        %3043 = vmatmul.mubr.f32.gmra.mrb[0].mxu0 %v2555
        %v3044 = vpop.f32.mrb[0].mxu0
        %v3045 = vadd.f32 0.0, %v3044
        %v3046 = vpop.f32.mrb[0].mxu0
        %v3047 = vadd.f32 0.0, %v3046
        %3048 = vmatprep.mubr.f32.mxu0 %v2565
        %3049 = vmatmul.mubr.f32.gmra.mrb[0].mxu0 %v2564
        %v3050 = vpop.f32.mrb[0].mxu0
        %v3051 = vadd.f32 0.0, %v3050
        %v3052 = vpop.f32.mrb[0].mxu0
        %v3053 = vadd.f32 0.0, %v3052
        %3054 = vmatprep.mubr.f32.mxu0 %v2574
        %3055 = vmatmul.mubr.f32.gmra.mrb[0].mxu0 %v2573
        %v3056 = vpop.f32.mrb[0].mxu0
        %v3057 = vadd.f32 0.0, %v3056
        %v3058 = vpop.f32.mrb[0].mxu0
        %v3059 = vadd.f32 0.0, %v3058
        %3060 = vmatprep.mubr.f32.mxu0 %v2583
        %3061 = vmatmul.mubr.f32.gmra.mrb[0].mxu0 %v2582
        %v3062 = vpop.f32.mrb[0].mxu0
        %v3063 = vadd.f32 0.0, %v3062
        %v3064 = vpop.f32.mrb[0].mxu0
        %v3065 = vadd.f32 0.0, %v3064
        %3066 = vmatprep.mubr.f32.mxu0 %v2592
        %3067 = vmatmul.mubr.f32.gmra.mrb[0].mxu0 %v2591
        %v3068 = vpop.f32.mrb[0].mxu0
        %v3069 = vadd.f32 0.0, %v3068
        %v3070 = vpop.f32.mrb[0].mxu0
        %v3071 = vadd.f32 0.0, %v3070
        %3072 = vmatprep.mubr.f32.mxu0 %v2601
        %3073 = vmatmul.mubr.f32.gmra.mrb[0].mxu0 %v2600
        %v3074 = vpop.f32.mrb[0].mxu0
        %v3075 = vadd.f32 0.0, %v3074
        %v3076 = vpop.f32.mrb[0].mxu0
        %v3077 = vadd.f32 0.0, %v3076
        %3078 = vmatprep.mubr.f32.mxu0 %v2610
        %3079 = vmatmul.mubr.f32.gmra.mrb[0].mxu0 %v2609
        %v3080 = vpop.f32.mrb[0].mxu0
        %v3081 = vadd.f32 0.0, %v3080
        %v3082 = vpop.f32.mrb[0].mxu0
        %v3083 = vadd.f32 0.0, %v3082
        %3084 = vmatprep.mubr.f32.mxu0 %v2619
        %3085 = vmatmul.mubr.f32.gmra.mrb[0].mxu0 %v2618
        %v3086 = vpop.f32.mrb[0].mxu0
        %v3087 = vadd.f32 0.0, %v3086
        %v3088 = vpop.f32.mrb[0].mxu0
        %v3089 = vadd.f32 0.0, %v3088
        %3090 = vmatprep.mubr.f32.mxu0 %v2628
        %3091 = vmatmul.mubr.f32.gmra.mrb[0].mxu0 %v2627
        %v3092 = vpop.f32.mrb[0].mxu0
        %v3093 = vadd.f32 0.0, %v3092
        %v3094 = vpop.f32.mrb[0].mxu0
        %v3095 = vadd.f32 0.0, %v3094
        %3096 = vmatprep.mubr.f32.mxu0 %v2637
        %3097 = vmatmul.mubr.f32.gmra.mrb[0].mxu0 %v2636
        %v3098 = vpop.f32.mrb[0].mxu0
        %v3099 = vadd.f32 0.0, %v3098
        %v3100 = vpop.f32.mrb[0].mxu0
        %v3101 = vadd.f32 0.0, %v3100
        %3102 = vmatprep.mubr.f32.mxu0 %v2646
        %3103 = vmatmul.mubr.f32.gmra.mrb[0].mxu0 %v2645
        %v3104 = vpop.f32.mrb[0].mxu0
        %v3105 = vadd.f32 0.0, %v3104
        %v3106 = vpop.f32.mrb[0].mxu0
        %v3107 = vadd.f32 0.0, %v3106
        %3108 = vmatprep.mubr.f32.mxu0 %v2655
        %3109 = vmatmul.mubr.f32.gmra.mrb[0].mxu0 %v2654
        %v3110 = vpop.f32.mrb[0].mxu0
        %v3111 = vadd.f32 0.0, %v3110
        %v3112 = vpop.f32.mrb[0].mxu0
        %v3113 = vadd.f32 0.0, %v3112
        %3114 = vmatprep.mubr.f32.mxu0 %v2664
        %3115 = vmatmul.mubr.f32.gmra.mrb[0].mxu0 %v2663
        %v3116 = vpop.f32.mrb[0].mxu0
        %v3117 = vadd.f32 0.0, %v3116
        %v3118 = vpop.f32.mrb[0].mxu0
        %v3119 = vadd.f32 0.0, %v3118
        %3120 = vdwg.mxu0
        %3121 = vmatprep.subr.mxu0 %v2737
        %3122 = vmatpush1.msra.mxu0 %v2736
        %3123 = vmatprep.subr.mxu0 %v2739
        %3124 = vmatpush1.msra.mxu0 %v2738
        %3125 = vmatprep.subr.mxu0 %v2741
        %3126 = vmatpush1.msra.mxu0 %v2740
        %3127 = vmatprep.subr.mxu0 %v2743
        %3128 = vmatpush1.msra.mxu0 %v2742
        %3129 = vmatprep.subr.mxu0 %v2745
        %3130 = vmatpush1.msra.mxu0 %v2744
        %3131 = vmatprep.subr.mxu0 %v2747
        %3132 = vmatpush1.msra.mxu0 %v2746
        %3133 = vmatprep.subr.mxu0 %v2749
        %3134 = vmatpush1.msra.mxu0 %v2748
        %3135 = vmatprep.subr.mxu0 %v2751
        %3136 = vmatpush1.msra.mxu0 %v2750
        %3137 = vmatprep.subr.mxu0 %v2753
        %3138 = vmatpush1.msra.mxu0 %v2752
        %3139 = vmatprep.subr.mxu0 %v2755
        %3140 = vmatpush1.msra.mxu0 %v2754
        %3141 = vmatprep.subr.mxu0 %v2757
        %3142 = vmatpush1.msra.mxu0 %v2756
        %3143 = vmatprep.subr.mxu0 %v2759
        %3144 = vmatpush1.msra.mxu0 %v2758
        %3145 = vmatprep.subr.mxu0 %v2761
        %3146 = vmatpush1.msra.mxu0 %v2760
        %3147 = vmatprep.subr.mxu0 %v2763
        %3148 = vmatpush1.msra.mxu0 %v2762
        %3149 = vmatprep.subr.mxu0 %v2765
        %3150 = vmatpush1.msra.mxu0 %v2764
        %3151 = vmatprep.subr.mxu0 %v2767
        %3152 = vmatpush1.msra.mxu0 %v2766
        %3153 = vmatprep.subr.mxu0 %v2769
        %3154 = vmatpush1.msra.mxu0 %v2768
        %3155 = vmatprep.subr.mxu0 %v2771
        %3156 = vmatpush1.msra.mxu0 %v2770
        %3157 = vmatprep.subr.mxu0 %v2773
        %3158 = vmatpush1.msra.mxu0 %v2772
        %3159 = vmatprep.subr.mxu0 %v2775
        %3160 = vmatpush1.msra.mxu0 %v2774
        %3161 = vmatprep.subr.mxu0 %v2777
        %3162 = vmatpush1.msra.mxu0 %v2776
        %3163 = vmatprep.subr.mxu0 %v2779
        %3164 = vmatpush1.msra.mxu0 %v2778
        %3165 = vmatprep.subr.mxu0 %v2781
        %3166 = vmatpush1.msra.mxu0 %v2780
        %3167 = vmatprep.subr.mxu0 %v2783
        %3168 = vmatpush1.msra.mxu0 %v2782
        %3169 = vmatprep.subr.mxu0 %v2785
        %3170 = vmatpush1.msra.mxu0 %v2784
        %3171 = vmatprep.subr.mxu0 %v2787
        %3172 = vmatpush1.msra.mxu0 %v2786
        %3173 = vmatprep.subr.mxu0 %v2789
        %3174 = vmatpush1.msra.mxu0 %v2788
        %3175 = vmatprep.subr.mxu0 %v2791
        %3176 = vmatpush1.msra.mxu0 %v2790
        %3177 = vmatprep.subr.mxu0 %v2793
        %3178 = vmatpush1.msra.mxu0 %v2792
        %3179 = vmatprep.subr.mxu0 %v2795
        %3180 = vmatpush1.msra.mxu0 %v2794
        %3181 = vmatprep.subr.mxu0 %v2797
        %3182 = vmatpush1.msra.mxu0 %v2796
        %3183 = vmatprep.subr.mxu0 %v2799
        %3184 = vmatpush1.msra.mxu0 %v2798
        %3185 = vmatprep.mubr.f32.mxu0 %v2531
        %3186 = vmatmul.mubr.f32.gmra.mrb[0].mxu0 %v2530
        %v3187 = vpop.f32.mrb[0].mxu0
        %v3188 = vadd.f32 %v3027, %v3187
        %v3189 = vpop.f32.mrb[0].mxu0
        %v3190 = vadd.f32 %v3029, %v3189
        %3191 = vmatprep.mubr.f32.mxu0 %v2540
        %3192 = vmatmul.mubr.f32.gmra.mrb[0].mxu0 %v2539
        %v3193 = vpop.f32.mrb[0].mxu0
        %v3194 = vadd.f32 %v3033, %v3193
        %v3195 = vpop.f32.mrb[0].mxu0
        %v3196 = vadd.f32 %v3035, %v3195
        %3197 = vmatprep.mubr.f32.mxu0 %v2549
        %3198 = vmatmul.mubr.f32.gmra.mrb[0].mxu0 %v2548
        %v3199 = vpop.f32.mrb[0].mxu0
        %v3200 = vadd.f32 %v3039, %v3199
        %v3201 = vpop.f32.mrb[0].mxu0
        %v3202 = vadd.f32 %v3041, %v3201
        %3203 = vmatprep.mubr.f32.mxu0 %v2558
        %3204 = vmatmul.mubr.f32.gmra.mrb[0].mxu0 %v2557
        %v3205 = vpop.f32.mrb[0].mxu0
        %v3206 = vadd.f32 %v3045, %v3205
        %v3207 = vpop.f32.mrb[0].mxu0
        %v3208 = vadd.f32 %v3047, %v3207
        %3209 = vmatprep.mubr.f32.mxu0 %v2567
        %3210 = vmatmul.mubr.f32.gmra.mrb[0].mxu0 %v2566
        %v3211 = vpop.f32.mrb[0].mxu0
        %v3212 = vadd.f32 %v3051, %v3211
        %v3213 = vpop.f32.mrb[0].mxu0
        %v3214 = vadd.f32 %v3053, %v3213
        %3215 = vmatprep.mubr.f32.mxu0 %v2576
        %3216 = vmatmul.mubr.f32.gmra.mrb[0].mxu0 %v2575
        %v3217 = vpop.f32.mrb[0].mxu0
        %v3218 = vadd.f32 %v3057, %v3217
        %v3219 = vpop.f32.mrb[0].mxu0
        %v3220 = vadd.f32 %v3059, %v3219
        %3221 = vmatprep.mubr.f32.mxu0 %v2585
        %3222 = vmatmul.mubr.f32.gmra.mrb[0].mxu0 %v2584
        %v3223 = vpop.f32.mrb[0].mxu0
        %v3224 = vadd.f32 %v3063, %v3223
        %v3225 = vpop.f32.mrb[0].mxu0
        %v3226 = vadd.f32 %v3065, %v3225
        %3227 = vmatprep.mubr.f32.mxu0 %v2594
        %3228 = vmatmul.mubr.f32.gmra.mrb[0].mxu0 %v2593
        %v3229 = vpop.f32.mrb[0].mxu0
        %v3230 = vadd.f32 %v3069, %v3229
        %v3231 = vpop.f32.mrb[0].mxu0
        %v3232 = vadd.f32 %v3071, %v3231
        %3233 = vmatprep.mubr.f32.mxu0 %v2603
        %3234 = vmatmul.mubr.f32.gmra.mrb[0].mxu0 %v2602
        %v3235 = vpop.f32.mrb[0].mxu0
        %v3236 = vadd.f32 %v3075, %v3235
        %v3237 = vpop.f32.mrb[0].mxu0
        %v3238 = vadd.f32 %v3077, %v3237
        %3239 = vmatprep.mubr.f32.mxu0 %v2612
        %3240 = vmatmul.mubr.f32.gmra.mrb[0].mxu0 %v2611
        %v3241 = vpop.f32.mrb[0].mxu0
        %v3242 = vadd.f32 %v3081, %v3241
        %v3243 = vpop.f32.mrb[0].mxu0
        %v3244 = vadd.f32 %v3083, %v3243
        %3245 = vmatprep.mubr.f32.mxu0 %v2621
        %3246 = vmatmul.mubr.f32.gmra.mrb[0].mxu0 %v2620
        %v3247 = vpop.f32.mrb[0].mxu0
        %v3248 = vadd.f32 %v3087, %v3247
        %v3249 = vpop.f32.mrb[0].mxu0
        %v3250 = vadd.f32 %v3089, %v3249
        %3251 = vmatprep.mubr.f32.mxu0 %v2630
        %3252 = vmatmul.mubr.f32.gmra.mrb[0].mxu0 %v2629
        %v3253 = vpop.f32.mrb[0].mxu0
        %v3254 = vadd.f32 %v3093, %v3253
        %v3255 = vpop.f32.mrb[0].mxu0
        %v3256 = vadd.f32 %v3095, %v3255
        %3257 = vmatprep.mubr.f32.mxu0 %v2639
        %3258 = vmatmul.mubr.f32.gmra.mrb[0].mxu0 %v2638
        %v3259 = vpop.f32.mrb[0].mxu0
        %v3260 = vadd.f32 %v3099, %v3259
        %v3261 = vpop.f32.mrb[0].mxu0
        %v3262 = vadd.f32 %v3101, %v3261
        %3263 = vmatprep.mubr.f32.mxu0 %v2648
        %3264 = vmatmul.mubr.f32.gmra.mrb[0].mxu0 %v2647
        %v3265 = vpop.f32.mrb[0].mxu0
        %v3266 = vadd.f32 %v3105, %v3265
        %v3267 = vpop.f32.mrb[0].mxu0
        %v3268 = vadd.f32 %v3107, %v3267
        %3269 = vmatprep.mubr.f32.mxu0 %v2657
        %3270 = vmatmul.mubr.f32.gmra.mrb[0].mxu0 %v2656
        %v3271 = vpop.f32.mrb[0].mxu0
        %v3272 = vadd.f32 %v3111, %v3271
        %v3273 = vpop.f32.mrb[0].mxu0
        %v3274 = vadd.f32 %v3113, %v3273
        %3275 = vmatprep.mubr.f32.mxu0 %v2666
        %3276 = vmatmul.mubr.f32.gmra.mrb[0].mxu0 %v2665
        %v3277 = vpop.f32.mrb[0].mxu0
        %v3278 = vadd.f32 %v3117, %v3277
        %v3279 = vpop.f32.mrb[0].mxu0
        %v3280 = vadd.f32 %v3119, %v3279
        %3281 = vdwg.mxu0
        %3282 = vmatprep.subr.mxu0 %v2801
        %3283 = vmatpush1.msra.mxu0 %v2800
        %3284 = vmatprep.subr.mxu0 %v2803
        %3285 = vmatpush1.msra.mxu0 %v2802
        %3286 = vmatprep.subr.mxu0 %v2805
        %3287 = vmatpush1.msra.mxu0 %v2804
        %3288 = vmatprep.subr.mxu0 %v2807
        %3289 = vmatpush1.msra.mxu0 %v2806
        %3290 = vmatprep.subr.mxu0 %v2809
        %3291 = vmatpush1.msra.mxu0 %v2808
        %3292 = vmatprep.subr.mxu0 %v2811
        %3293 = vmatpush1.msra.mxu0 %v2810
        %3294 = vmatprep.subr.mxu0 %v2813
        %3295 = vmatpush1.msra.mxu0 %v2812
        %3296 = vmatprep.subr.mxu0 %v2815
        %3297 = vmatpush1.msra.mxu0 %v2814
        %3298 = vmatprep.subr.mxu0 %v2817
        %3299 = vmatpush1.msra.mxu0 %v2816
        %3300 = vmatprep.subr.mxu0 %v2819
        %3301 = vmatpush1.msra.mxu0 %v2818
        %3302 = vmatprep.subr.mxu0 %v2821
        %3303 = vmatpush1.msra.mxu0 %v2820
        %3304 = vmatprep.subr.mxu0 %v2823
        %3305 = vmatpush1.msra.mxu0 %v2822
        %3306 = vmatprep.subr.mxu0 %v2825
        %3307 = vmatpush1.msra.mxu0 %v2824
        %3308 = vmatprep.subr.mxu0 %v2827
        %3309 = vmatpush1.msra.mxu0 %v2826
        %3310 = vmatprep.subr.mxu0 %v2829
        %3311 = vmatpush1.msra.mxu0 %v2828
        %3312 = vmatprep.subr.mxu0 %v2831
        %3313 = vmatpush1.msra.mxu0 %v2830
        %3314 = vmatprep.subr.mxu0 %v2833
        %3315 = vmatpush1.msra.mxu0 %v2832
        %3316 = vmatprep.subr.mxu0 %v2835
        %3317 = vmatpush1.msra.mxu0 %v2834
        %3318 = vmatprep.subr.mxu0 %v2837
        %3319 = vmatpush1.msra.mxu0 %v2836
        %3320 = vmatprep.subr.mxu0 %v2839
        %3321 = vmatpush1.msra.mxu0 %v2838
        %3322 = vmatprep.subr.mxu0 %v2841
        %3323 = vmatpush1.msra.mxu0 %v2840
        %3324 = vmatprep.subr.mxu0 %v2843
        %3325 = vmatpush1.msra.mxu0 %v2842
        %3326 = vmatprep.subr.mxu0 %v2845
        %3327 = vmatpush1.msra.mxu0 %v2844
        %3328 = vmatprep.subr.mxu0 %v2847
        %3329 = vmatpush1.msra.mxu0 %v2846
        %3330 = vmatprep.subr.mxu0 %v2849
        %3331 = vmatpush1.msra.mxu0 %v2848
        %3332 = vmatprep.subr.mxu0 %v2851
        %3333 = vmatpush1.msra.mxu0 %v2850
        %3334 = vmatprep.subr.mxu0 %v2853
        %3335 = vmatpush1.msra.mxu0 %v2852
        %3336 = vmatprep.subr.mxu0 %v2855
        %3337 = vmatpush1.msra.mxu0 %v2854
        %3338 = vmatprep.subr.mxu0 %v2857
        %3339 = vmatpush1.msra.mxu0 %v2856
        %3340 = vmatprep.subr.mxu0 %v2859
        %3341 = vmatpush1.msra.mxu0 %v2858
        %3342 = vmatprep.subr.mxu0 %v2861
        %3343 = vmatpush1.msra.mxu0 %v2860
        %3344 = vmatprep.subr.mxu0 %v2863
        %3345 = vmatpush1.msra.mxu0 %v2862
        %3346 = vmatprep.mubr.f32.mxu0 %v2533
        %3347 = vmatmul.mubr.f32.gmra.mrb[0].mxu0 %v2532
        %v3348 = vpop.f32.mrb[0].mxu0
        %v3349 = vadd.f32 %v3188, %v3348
        %v3350 = vpop.f32.mrb[0].mxu0
        %v3351 = vadd.f32 %v3190, %v3350
        %3352 = vmatprep.mubr.f32.mxu0 %v2542
        %3353 = vmatmul.mubr.f32.gmra.mrb[0].mxu0 %v2541
        %v3354 = vpop.f32.mrb[0].mxu0
        %v3355 = vadd.f32 %v3194, %v3354
        %v3356 = vpop.f32.mrb[0].mxu0
        %v3357 = vadd.f32 %v3196, %v3356
        %3358 = vmatprep.mubr.f32.mxu0 %v2551
        %3359 = vmatmul.mubr.f32.gmra.mrb[0].mxu0 %v2550
        %v3360 = vpop.f32.mrb[0].mxu0
        %v3361 = vadd.f32 %v3200, %v3360
        %v3362 = vpop.f32.mrb[0].mxu0
        %v3363 = vadd.f32 %v3202, %v3362
        %3364 = vmatprep.mubr.f32.mxu0 %v2560
        %3365 = vmatmul.mubr.f32.gmra.mrb[0].mxu0 %v2559
        %v3366 = vpop.f32.mrb[0].mxu0
        %v3367 = vadd.f32 %v3206, %v3366
        %v3368 = vpop.f32.mrb[0].mxu0
        %v3369 = vadd.f32 %v3208, %v3368
        %3370 = vmatprep.mubr.f32.mxu0 %v2569
        %3371 = vmatmul.mubr.f32.gmra.mrb[0].mxu0 %v2568
        %v3372 = vpop.f32.mrb[0].mxu0
        %v3373 = vadd.f32 %v3212, %v3372
        %v3374 = vpop.f32.mrb[0].mxu0
        %v3375 = vadd.f32 %v3214, %v3374
        %3376 = vmatprep.mubr.f32.mxu0 %v2578
        %3377 = vmatmul.mubr.f32.gmra.mrb[0].mxu0 %v2577
        %v3378 = vpop.f32.mrb[0].mxu0
        %v3379 = vadd.f32 %v3218, %v3378
        %v3380 = vpop.f32.mrb[0].mxu0
        %v3381 = vadd.f32 %v3220, %v3380
        %3382 = vmatprep.mubr.f32.mxu0 %v2587
        %3383 = vmatmul.mubr.f32.gmra.mrb[0].mxu0 %v2586
        %v3384 = vpop.f32.mrb[0].mxu0
        %v3385 = vadd.f32 %v3224, %v3384
        %v3386 = vpop.f32.mrb[0].mxu0
        %v3387 = vadd.f32 %v3226, %v3386
        %3388 = vmatprep.mubr.f32.mxu0 %v2596
        %3389 = vmatmul.mubr.f32.gmra.mrb[0].mxu0 %v2595
        %v3390 = vpop.f32.mrb[0].mxu0
        %v3391 = vadd.f32 %v3230, %v3390
        %v3392 = vpop.f32.mrb[0].mxu0
        %v3393 = vadd.f32 %v3232, %v3392
        %3394 = vmatprep.mubr.f32.mxu0 %v2605
        %3395 = vmatmul.mubr.f32.gmra.mrb[0].mxu0 %v2604
        %v3396 = vpop.f32.mrb[0].mxu0
        %v3397 = vadd.f32 %v3236, %v3396
        %v3398 = vpop.f32.mrb[0].mxu0
        %v3399 = vadd.f32 %v3238, %v3398
        %3400 = vmatprep.mubr.f32.mxu0 %v2614
        %3401 = vmatmul.mubr.f32.gmra.mrb[0].mxu0 %v2613
        %v3402 = vpop.f32.mrb[0].mxu0
        %v3403 = vadd.f32 %v3242, %v3402
        %v3404 = vpop.f32.mrb[0].mxu0
        %v3405 = vadd.f32 %v3244, %v3404
        %3406 = vmatprep.mubr.f32.mxu0 %v2623
        %3407 = vmatmul.mubr.f32.gmra.mrb[0].mxu0 %v2622
        %v3408 = vpop.f32.mrb[0].mxu0
        %v3409 = vadd.f32 %v3248, %v3408
        %v3410 = vpop.f32.mrb[0].mxu0
        %v3411 = vadd.f32 %v3250, %v3410
        %3412 = vmatprep.mubr.f32.mxu0 %v2632
        %3413 = vmatmul.mubr.f32.gmra.mrb[0].mxu0 %v2631
        %v3414 = vpop.f32.mrb[0].mxu0
        %v3415 = vadd.f32 %v3254, %v3414
        %v3416 = vpop.f32.mrb[0].mxu0
        %v3417 = vadd.f32 %v3256, %v3416
        %3418 = vmatprep.mubr.f32.mxu0 %v2641
        %3419 = vmatmul.mubr.f32.gmra.mrb[0].mxu0 %v2640
        %v3420 = vpop.f32.mrb[0].mxu0
        %v3421 = vadd.f32 %v3260, %v3420
        %v3422 = vpop.f32.mrb[0].mxu0
        %v3423 = vadd.f32 %v3262, %v3422
        %3424 = vmatprep.mubr.f32.mxu0 %v2650
        %3425 = vmatmul.mubr.f32.gmra.mrb[0].mxu0 %v2649
        %v3426 = vpop.f32.mrb[0].mxu0
        %v3427 = vadd.f32 %v3266, %v3426
        %v3428 = vpop.f32.mrb[0].mxu0
        %v3429 = vadd.f32 %v3268, %v3428
        %3430 = vmatprep.mubr.f32.mxu0 %v2659
        %3431 = vmatmul.mubr.f32.gmra.mrb[0].mxu0 %v2658
        %v3432 = vpop.f32.mrb[0].mxu0
        %v3433 = vadd.f32 %v3272, %v3432
        %v3434 = vpop.f32.mrb[0].mxu0
        %v3435 = vadd.f32 %v3274, %v3434
        %3436 = vmatprep.mubr.f32.mxu0 %v2668
        %3437 = vmatmul.mubr.f32.gmra.mrb[0].mxu0 %v2667
        %v3438 = vpop.f32.mrb[0].mxu0
        %v3439 = vadd.f32 %v3278, %v3438
        %v3440 = vpop.f32.mrb[0].mxu0
        %v3441 = vadd.f32 %v3280, %v3440
        %3442 = vdwg.mxu0
        %3443 = vmatprep.subr.mxu0 %v2865
        %3444 = vmatpush1.msra.mxu0 %v2864
        %3445 = vmatprep.subr.mxu0 %v2867
        %3446 = vmatpush1.msra.mxu0 %v2866
        %3447 = vmatprep.subr.mxu0 %v2869
        %3448 = vmatpush1.msra.mxu0 %v2868
        %3449 = vmatprep.subr.mxu0 %v2871
        %3450 = vmatpush1.msra.mxu0 %v2870
        %3451 = vmatprep.subr.mxu0 %v2873
        %3452 = vmatpush1.msra.mxu0 %v2872
        %3453 = vmatprep.subr.mxu0 %v2875
        %3454 = vmatpush1.msra.mxu0 %v2874
        %3455 = vmatprep.subr.mxu0 %v2877
        %3456 = vmatpush1.msra.mxu0 %v2876
        %3457 = vmatprep.subr.mxu0 %v2879
        %3458 = vmatpush1.msra.mxu0 %v2878
        %3459 = vmatprep.subr.mxu0 %v2881
        %3460 = vmatpush1.msra.mxu0 %v2880
        %3461 = vmatprep.subr.mxu0 %v2883
        %3462 = vmatpush1.msra.mxu0 %v2882
        %3463 = vmatprep.subr.mxu0 %v2885
        %3464 = vmatpush1.msra.mxu0 %v2884
        %3465 = vmatprep.subr.mxu0 %v2887
        %3466 = vmatpush1.msra.mxu0 %v2886
        %3467 = vmatprep.subr.mxu0 %v2889
        %3468 = vmatpush1.msra.mxu0 %v2888
        %3469 = vmatprep.subr.mxu0 %v2891
        %3470 = vmatpush1.msra.mxu0 %v2890
        %3471 = vmatprep.subr.mxu0 %v2893
        %3472 = vmatpush1.msra.mxu0 %v2892
        %3473 = vmatprep.subr.mxu0 %v2895
        %3474 = vmatpush1.msra.mxu0 %v2894
        %3475 = vmatprep.subr.mxu0 %v2897
        %3476 = vmatpush1.msra.mxu0 %v2896
        %3477 = vmatprep.subr.mxu0 %v2899
        %3478 = vmatpush1.msra.mxu0 %v2898
        %3479 = vmatprep.subr.mxu0 %v2901
        %3480 = vmatpush1.msra.mxu0 %v2900
        %3481 = vmatprep.subr.mxu0 %v2903
        %3482 = vmatpush1.msra.mxu0 %v2902
        %3483 = vmatprep.subr.mxu0 %v2905
        %3484 = vmatpush1.msra.mxu0 %v2904
        %3485 = vmatprep.subr.mxu0 %v2907
        %3486 = vmatpush1.msra.mxu0 %v2906
        %3487 = vmatprep.subr.mxu0 %v2909
        %3488 = vmatpush1.msra.mxu0 %v2908
        %3489 = vmatprep.subr.mxu0 %v2911
        %3490 = vmatpush1.msra.mxu0 %v2910
        %3491 = vmatprep.subr.mxu0 %v2913
        %3492 = vmatpush1.msra.mxu0 %v2912
        %3493 = vmatprep.subr.mxu0 %v2915
        %3494 = vmatpush1.msra.mxu0 %v2914
        %3495 = vmatprep.subr.mxu0 %v2917
        %3496 = vmatpush1.msra.mxu0 %v2916
        %3497 = vmatprep.subr.mxu0 %v2919
        %3498 = vmatpush1.msra.mxu0 %v2918
        %3499 = vmatprep.subr.mxu0 %v2921
        %3500 = vmatpush1.msra.mxu0 %v2920
        %3501 = vmatprep.subr.mxu0 %v2923
        %3502 = vmatpush1.msra.mxu0 %v2922
        %3503 = vmatprep.subr.mxu0 %v2925
        %3504 = vmatpush1.msra.mxu0 %v2924
        %3505 = vmatprep.subr.mxu0 %v2927
        %3506 = vmatpush1.msra.mxu0 %v2926
        %3507 = vmatprep.mubr.f32.mxu0 %v2535
        %3508 = vmatmul.mubr.f32.gmra.mrb[0].mxu0 %v2534
        %v3509 = vpop.f32.mrb[0].mxu0
        %v3510 = vadd.f32 %v3349, %v3509
        %v3511 = vpop.f32.mrb[0].mxu0
        %v3512 = vadd.f32 %v3351, %v3511
        %3513 = vmatprep.mubr.f32.mxu0 %v2544
        %3514 = vmatmul.mubr.f32.gmra.mrb[0].mxu0 %v2543
        %v3515 = vpop.f32.mrb[0].mxu0
        %v3516 = vadd.f32 %v3355, %v3515
        %v3517 = vpop.f32.mrb[0].mxu0
        %v3518 = vadd.f32 %v3357, %v3517
        %3519 = vmatprep.mubr.f32.mxu0 %v2553
        %3520 = vmatmul.mubr.f32.gmra.mrb[0].mxu0 %v2552
        %v3521 = vpop.f32.mrb[0].mxu0
        %v3522 = vadd.f32 %v3361, %v3521
        %v3523 = vpop.f32.mrb[0].mxu0
        %v3524 = vadd.f32 %v3363, %v3523
        %3525 = vmatprep.mubr.f32.mxu0 %v2562
        %3526 = vmatmul.mubr.f32.gmra.mrb[0].mxu0 %v2561
        %v3527 = vpop.f32.mrb[0].mxu0
        %v3528 = vadd.f32 %v3367, %v3527
        %v3529 = vpop.f32.mrb[0].mxu0
        %v3530 = vadd.f32 %v3369, %v3529
        %3531 = vmatprep.mubr.f32.mxu0 %v2571
        %3532 = vmatmul.mubr.f32.gmra.mrb[0].mxu0 %v2570
        %v3533 = vpop.f32.mrb[0].mxu0
        %v3534 = vadd.f32 %v3373, %v3533
        %v3535 = vpop.f32.mrb[0].mxu0
        %v3536 = vadd.f32 %v3375, %v3535
        %3537 = vmatprep.mubr.f32.mxu0 %v2580
        %3538 = vmatmul.mubr.f32.gmra.mrb[0].mxu0 %v2579
        %v3539 = vpop.f32.mrb[0].mxu0
        %v3540 = vadd.f32 %v3379, %v3539
        %v3541 = vpop.f32.mrb[0].mxu0
        %v3542 = vadd.f32 %v3381, %v3541
        %3543 = vmatprep.mubr.f32.mxu0 %v2589
        %3544 = vmatmul.mubr.f32.gmra.mrb[0].mxu0 %v2588
        %v3545 = vpop.f32.mrb[0].mxu0
        %v3546 = vadd.f32 %v3385, %v3545
        %v3547 = vpop.f32.mrb[0].mxu0
        %v3548 = vadd.f32 %v3387, %v3547
        %3549 = vmatprep.mubr.f32.mxu0 %v2598
        %3550 = vmatmul.mubr.f32.gmra.mrb[0].mxu0 %v2597
        %v3551 = vpop.f32.mrb[0].mxu0
        %v3552 = vadd.f32 %v3391, %v3551
        %v3553 = vpop.f32.mrb[0].mxu0
        %v3554 = vadd.f32 %v3393, %v3553
        %3555 = vmatprep.mubr.f32.mxu0 %v2607
        %3556 = vmatmul.mubr.f32.gmra.mrb[0].mxu0 %v2606
        %v3557 = vpop.f32.mrb[0].mxu0
        %v3558 = vadd.f32 %v3397, %v3557
        %v3559 = vpop.f32.mrb[0].mxu0
        %v3560 = vadd.f32 %v3399, %v3559
        %3561 = vmatprep.mubr.f32.mxu0 %v2616
        %3562 = vmatmul.mubr.f32.gmra.mrb[0].mxu0 %v2615
        %v3563 = vpop.f32.mrb[0].mxu0
        %v3564 = vadd.f32 %v3403, %v3563
        %v3565 = vpop.f32.mrb[0].mxu0
        %v3566 = vadd.f32 %v3405, %v3565
        %3567 = vmatprep.mubr.f32.mxu0 %v2625
        %3568 = vmatmul.mubr.f32.gmra.mrb[0].mxu0 %v2624
        %v3569 = vpop.f32.mrb[0].mxu0
        %v3570 = vadd.f32 %v3409, %v3569
        %v3571 = vpop.f32.mrb[0].mxu0
        %v3572 = vadd.f32 %v3411, %v3571
        %3573 = vmatprep.mubr.f32.mxu0 %v2634
        %3574 = vmatmul.mubr.f32.gmra.mrb[0].mxu0 %v2633
        %v3575 = vpop.f32.mrb[0].mxu0
        %v3576 = vadd.f32 %v3415, %v3575
        %v3577 = vpop.f32.mrb[0].mxu0
        %v3578 = vadd.f32 %v3417, %v3577
        %3579 = vmatprep.mubr.f32.mxu0 %v2643
        %3580 = vmatmul.mubr.f32.gmra.mrb[0].mxu0 %v2642
        %v3581 = vpop.f32.mrb[0].mxu0
        %v3582 = vadd.f32 %v3421, %v3581
        %v3583 = vpop.f32.mrb[0].mxu0
        %v3584 = vadd.f32 %v3423, %v3583
        %3585 = vmatprep.mubr.f32.mxu0 %v2652
        %3586 = vmatmul.mubr.f32.gmra.mrb[0].mxu0 %v2651
        %v3587 = vpop.f32.mrb[0].mxu0
        %v3588 = vadd.f32 %v3427, %v3587
        %v3589 = vpop.f32.mrb[0].mxu0
        %v3590 = vadd.f32 %v3429, %v3589
        %3591 = vmatprep.mubr.f32.mxu0 %v2661
        %3592 = vmatmul.mubr.f32.gmra.mrb[0].mxu0 %v2660
        %v3593 = vpop.f32.mrb[0].mxu0
        %v3594 = vadd.f32 %v3433, %v3593
        %v3595 = vpop.f32.mrb[0].mxu0
        %v3596 = vadd.f32 %v3435, %v3595
        %3597 = vmatprep.mubr.f32.mxu0 %v2670
        %3598 = vmatmul.mubr.f32.gmra.mrb[0].mxu0 %v2669
        %v3599 = vpop.f32.mrb[0].mxu0
        %v3600 = vadd.f32 %v3439, %v3599
        %v3601 = vpop.f32.mrb[0].mxu0
        %v3602 = vadd.f32 %v3441, %v3601
        %3603 = vdwg.mxu0
        %3604 = vmatprep.subr.mxu0 %v2929
        %3605 = vmatpush1.msra.mxu0 %v2928
        %3606 = vmatprep.subr.mxu0 %v2931
        %3607 = vmatpush1.msra.mxu0 %v2930
        %3608 = vmatprep.subr.mxu0 %v2933
        %3609 = vmatpush1.msra.mxu0 %v2932
        %3610 = vmatprep.subr.mxu0 %v2935
        %3611 = vmatpush1.msra.mxu0 %v2934
        %3612 = vmatprep.subr.mxu0 %v2937
        %3613 = vmatpush1.msra.mxu0 %v2936
        %3614 = vmatprep.subr.mxu0 %v2939
        %3615 = vmatpush1.msra.mxu0 %v2938
        %3616 = vmatprep.subr.mxu0 %v2941
        %3617 = vmatpush1.msra.mxu0 %v2940
        %3618 = vmatprep.subr.mxu0 %v2943
        %3619 = vmatpush1.msra.mxu0 %v2942
        %3620 = vmatprep.subr.mxu0 %v2945
        %3621 = vmatpush1.msra.mxu0 %v2944
        %3622 = vmatprep.subr.mxu0 %v2947
        %3623 = vmatpush1.msra.mxu0 %v2946
        %3624 = vmatprep.subr.mxu0 %v2949
        %3625 = vmatpush1.msra.mxu0 %v2948
        %3626 = vmatprep.subr.mxu0 %v2951
        %3627 = vmatpush1.msra.mxu0 %v2950
        %3628 = vmatprep.subr.mxu0 %v2953
        %3629 = vmatpush1.msra.mxu0 %v2952
        %3630 = vmatprep.subr.mxu0 %v2955
        %3631 = vmatpush1.msra.mxu0 %v2954
        %3632 = vmatprep.subr.mxu0 %v2957
        %3633 = vmatpush1.msra.mxu0 %v2956
        %3634 = vmatprep.subr.mxu0 %v2959
        %3635 = vmatpush1.msra.mxu0 %v2958
        %3636 = vmatprep.subr.mxu0 0.0
        %3637 = vmatpush1.msra.mxu0 0.0
        %3638 = vmatprep.subr.mxu0 0.0
        %3639 = vmatpush1.msra.mxu0 0.0
        %3640 = vmatprep.subr.mxu0 0.0
        %3641 = vmatpush1.msra.mxu0 0.0
        %3642 = vmatprep.subr.mxu0 0.0
        %3643 = vmatpush1.msra.mxu0 0.0
        %3644 = vmatprep.subr.mxu0 0.0
        %3645 = vmatpush1.msra.mxu0 0.0
        %3646 = vmatprep.subr.mxu0 0.0
        %3647 = vmatpush1.msra.mxu0 0.0
        %3648 = vmatprep.subr.mxu0 0.0
        %3649 = vmatpush1.msra.mxu0 0.0
        %3650 = vmatprep.subr.mxu0 0.0
        %3651 = vmatpush1.msra.mxu0 0.0
        %3652 = vmatprep.subr.mxu0 0.0
        %3653 = vmatpush1.msra.mxu0 0.0
        %3654 = vmatprep.subr.mxu0 0.0
        %3655 = vmatpush1.msra.mxu0 0.0
        %3656 = vmatprep.subr.mxu0 0.0
        %3657 = vmatpush1.msra.mxu0 0.0
        %3658 = vmatprep.subr.mxu0 0.0
        %3659 = vmatpush1.msra.mxu0 0.0
        %3660 = vmatprep.subr.mxu0 0.0
        %3661 = vmatpush1.msra.mxu0 0.0
        %3662 = vmatprep.subr.mxu0 0.0
        %3663 = vmatpush1.msra.mxu0 0.0
        %3664 = vmatprep.subr.mxu0 0.0
        %3665 = vmatpush1.msra.mxu0 0.0
        %3666 = vmatprep.subr.mxu0 0.0
        %3667 = vmatpush1.msra.mxu0 0.0
        %3668 = vmatprep.mubr.f32.mxu0 0.0
        %3669 = vmatmul.mubr.f32.gmra.mrb[0].mxu0 %v2536
        %v3670 = vpop.f32.mrb[0].mxu0
        %v3671 = vadd.f32 %v3510, %v3670
        %v3672 = vpop.f32.mrb[0].mxu0
        %v3673 = vadd.f32 %v3512, %v3672
        %3674 = vmatprep.mubr.f32.mxu0 0.0
        %3675 = vmatmul.mubr.f32.gmra.mrb[0].mxu0 %v2545
        %v3676 = vpop.f32.mrb[0].mxu0
        %v3677 = vadd.f32 %v3516, %v3676
        %v3678 = vpop.f32.mrb[0].mxu0
        %v3679 = vadd.f32 %v3518, %v3678
        %3680 = vmatprep.mubr.f32.mxu0 0.0
        %3681 = vmatmul.mubr.f32.gmra.mrb[0].mxu0 %v2554
        %v3682 = vpop.f32.mrb[0].mxu0
        %v3683 = vadd.f32 %v3522, %v3682
        %v3684 = vpop.f32.mrb[0].mxu0
        %v3685 = vadd.f32 %v3524, %v3684
        %3686 = vmatprep.mubr.f32.mxu0 0.0
        %3687 = vmatmul.mubr.f32.gmra.mrb[0].mxu0 %v2563
        %v3688 = vpop.f32.mrb[0].mxu0
        %v3689 = vadd.f32 %v3528, %v3688
        %v3690 = vpop.f32.mrb[0].mxu0
        %v3691 = vadd.f32 %v3530, %v3690
        %3692 = vmatprep.mubr.f32.mxu0 0.0
        %3693 = vmatmul.mubr.f32.gmra.mrb[0].mxu0 %v2572
        %v3694 = vpop.f32.mrb[0].mxu0
        %v3695 = vadd.f32 %v3534, %v3694
        %v3696 = vpop.f32.mrb[0].mxu0
        %v3697 = vadd.f32 %v3536, %v3696
        %3698 = vmatprep.mubr.f32.mxu0 0.0
        %3699 = vmatmul.mubr.f32.gmra.mrb[0].mxu0 %v2581
        %v3700 = vpop.f32.mrb[0].mxu0
        %v3701 = vadd.f32 %v3540, %v3700
        %v3702 = vpop.f32.mrb[0].mxu0
        %v3703 = vadd.f32 %v3542, %v3702
        %3704 = vmatprep.mubr.f32.mxu0 0.0
        %3705 = vmatmul.mubr.f32.gmra.mrb[0].mxu0 %v2590
        %v3706 = vpop.f32.mrb[0].mxu0
        %v3707 = vadd.f32 %v3546, %v3706
        %v3708 = vpop.f32.mrb[0].mxu0
        %v3709 = vadd.f32 %v3548, %v3708
        %3710 = vmatprep.mubr.f32.mxu0 0.0
        %3711 = vmatmul.mubr.f32.gmra.mrb[0].mxu0 %v2599
        %v3712 = vpop.f32.mrb[0].mxu0
        %v3713 = vadd.f32 %v3552, %v3712
        %v3714 = vpop.f32.mrb[0].mxu0
        %v3715 = vadd.f32 %v3554, %v3714
        %3716 = vmatprep.mubr.f32.mxu0 0.0
        %3717 = vmatmul.mubr.f32.gmra.mrb[0].mxu0 %v2608
        %v3718 = vpop.f32.mrb[0].mxu0
        %v3719 = vadd.f32 %v3558, %v3718
        %v3720 = vpop.f32.mrb[0].mxu0
        %v3721 = vadd.f32 %v3560, %v3720
        %3722 = vmatprep.mubr.f32.mxu0 0.0
        %3723 = vmatmul.mubr.f32.gmra.mrb[0].mxu0 %v2617
        %v3724 = vpop.f32.mrb[0].mxu0
        %v3725 = vadd.f32 %v3564, %v3724
        %v3726 = vpop.f32.mrb[0].mxu0
        %v3727 = vadd.f32 %v3566, %v3726
        %3728 = vmatprep.mubr.f32.mxu0 0.0
        %3729 = vmatmul.mubr.f32.gmra.mrb[0].mxu0 %v2626
        %v3730 = vpop.f32.mrb[0].mxu0
        %v3731 = vadd.f32 %v3570, %v3730
        %v3732 = vpop.f32.mrb[0].mxu0
        %v3733 = vadd.f32 %v3572, %v3732
        %3734 = vmatprep.mubr.f32.mxu0 0.0
        %3735 = vmatmul.mubr.f32.gmra.mrb[0].mxu0 %v2635
        %v3736 = vpop.f32.mrb[0].mxu0
        %v3737 = vadd.f32 %v3576, %v3736
        %v3738 = vpop.f32.mrb[0].mxu0
        %v3739 = vadd.f32 %v3578, %v3738
        %3740 = vmatprep.mubr.f32.mxu0 0.0
        %3741 = vmatmul.mubr.f32.gmra.mrb[0].mxu0 %v2644
        %v3742 = vpop.f32.mrb[0].mxu0
        %v3743 = vadd.f32 %v3582, %v3742
        %v3744 = vpop.f32.mrb[0].mxu0
        %v3745 = vadd.f32 %v3584, %v3744
        %3746 = vmatprep.mubr.f32.mxu0 0.0
        %3747 = vmatmul.mubr.f32.gmra.mrb[0].mxu0 %v2653
        %v3748 = vpop.f32.mrb[0].mxu0
        %v3749 = vadd.f32 %v3588, %v3748
        %v3750 = vpop.f32.mrb[0].mxu0
        %v3751 = vadd.f32 %v3590, %v3750
        %3752 = vmatprep.mubr.f32.mxu0 0.0
        %3753 = vmatmul.mubr.f32.gmra.mrb[0].mxu0 %v2662
        %v3754 = vpop.f32.mrb[0].mxu0
        %v3755 = vadd.f32 %v3594, %v3754
        %v3756 = vpop.f32.mrb[0].mxu0
        %v3757 = vadd.f32 %v3596, %v3756
        %3758 = vmatprep.mubr.f32.mxu0 0.0
        %3759 = vmatmul.mubr.f32.gmra.mrb[0].mxu0 %v2671
        %v3760 = vpop.f32.mrb[0].mxu0
        %v3761 = vadd.f32 %v3600, %v3760
        %v3762 = vpop.f32.mrb[0].mxu0
        %v3763 = vadd.f32 %v3602, %v3762
        %3764 = vdwg.mxu0
        %v3765 = vmul.f32 %v3671, %v1945
        %v3766 = vmul.f32 %v3673, %v1949
        %v3767 = vmul.f32 %v3677, %v1945
        %v3768 = vmul.f32 %v3679, %v1949
        %v3769 = vmul.f32 %v3683, %v1945
        %v3770 = vmul.f32 %v3685, %v1949
        %v3771 = vmul.f32 %v3689, %v1945
        %v3772 = vmul.f32 %v3691, %v1949
        %v3773 = vmul.f32 %v3695, %v1945
        %v3774 = vmul.f32 %v3697, %v1949
        %v3775 = vmul.f32 %v3701, %v1945
        %v3776 = vmul.f32 %v3703, %v1949
        %v3777 = vmul.f32 %v3707, %v1945
        %v3778 = vmul.f32 %v3709, %v1949
        %v3779 = vmul.f32 %v3713, %v1945
        %v3780 = vmul.f32 %v3715, %v1949
        %v3781 = vmul.f32 %v3719, %v1945
        %v3782 = vmul.f32 %v3721, %v1949
        %v3783 = vmul.f32 %v3725, %v1945
        %v3784 = vmul.f32 %v3727, %v1949
        %v3785 = vmul.f32 %v3731, %v1945
        %v3786 = vmul.f32 %v3733, %v1949
        %v3787 = vmul.f32 %v3737, %v1945
        %v3788 = vmul.f32 %v3739, %v1949
        %v3789 = vmul.f32 %v3743, %v1945
        %v3790 = vmul.f32 %v3745, %v1949
        %v3791 = vmul.f32 %v3749, %v1945
        %v3792 = vmul.f32 %v3751, %v1949
        %v3793 = vmul.f32 %v3755, %v1945
        %v3794 = vmul.f32 %v3757, %v1949
        %v3795 = vmul.f32 %v3761, %v1945
        %v3796 = vmul.f32 %v3763, %v1949
        %v3797 = vadd.f32 %v3765, %v1988
        %v3798 = vadd.f32 %v3766, %v1992
        %v3799 = vadd.f32 %v3767, %v1988
        %v3800 = vadd.f32 %v3768, %v1992
        %v3801 = vadd.f32 %v3769, %v1988
        %v3802 = vadd.f32 %v3770, %v1992
        %v3803 = vadd.f32 %v3771, %v1988
        %v3804 = vadd.f32 %v3772, %v1992
        %v3805 = vadd.f32 %v3773, %v1988
        %v3806 = vadd.f32 %v3774, %v1992
        %v3807 = vadd.f32 %v3775, %v1988
        %v3808 = vadd.f32 %v3776, %v1992
        %v3809 = vadd.f32 %v3777, %v1988
        %v3810 = vadd.f32 %v3778, %v1992
        %v3811 = vadd.f32 %v3779, %v1988
        %v3812 = vadd.f32 %v3780, %v1992
        %v3813 = vadd.f32 %v3781, %v1988
        %v3814 = vadd.f32 %v3782, %v1992
        %v3815 = vadd.f32 %v3783, %v1988
        %v3816 = vadd.f32 %v3784, %v1992
        %v3817 = vadd.f32 %v3785, %v1988
        %v3818 = vadd.f32 %v3786, %v1992
        %v3819 = vadd.f32 %v3787, %v1988
        %v3820 = vadd.f32 %v3788, %v1992
        %v3821 = vadd.f32 %v3789, %v1988
        %v3822 = vadd.f32 %v3790, %v1992
        %v3823 = vadd.f32 %v3791, %v1988
        %v3824 = vadd.f32 %v3792, %v1992
        %v3825 = vadd.f32 %v3793, %v1988
        %v3826 = vadd.f32 %v3794, %v1992
        %v3827 = vadd.f32 %v3795, %v1988
        %v3828 = vadd.f32 %v3796, %v1992
        %v3829 = vmax.f32 %v3797, 0.0
        %v3830 = vmax.f32 %v3798, 0.0
        %v3831 = vmax.f32 %v3799, 0.0
        %v3832 = vmax.f32 %v3800, 0.0
        %v3833 = vmax.f32 %v3801, 0.0
        %v3834 = vmax.f32 %v3802, 0.0
        %v3835 = vmax.f32 %v3803, 0.0
        %v3836 = vmax.f32 %v3804, 0.0
        %v3837 = vmax.f32 %v3805, 0.0
        %v3838 = vmax.f32 %v3806, 0.0
        %v3839 = vmax.f32 %v3807, 0.0
        %v3840 = vmax.f32 %v3808, 0.0
        %v3841 = vmax.f32 %v3809, 0.0
        %v3842 = vmax.f32 %v3810, 0.0
        %v3843 = vmax.f32 %v3811, 0.0
        %v3844 = vmax.f32 %v3812, 0.0
        %v3845 = vmax.f32 %v3813, 0.0
        %v3846 = vmax.f32 %v3814, 0.0
        %v3847 = vmax.f32 %v3815, 0.0
        %v3848 = vmax.f32 %v3816, 0.0
        %v3849 = vmax.f32 %v3817, 0.0
        %v3850 = vmax.f32 %v3818, 0.0
        %v3851 = vmax.f32 %v3819, 0.0
        %v3852 = vmax.f32 %v3820, 0.0
        %v3853 = vmax.f32 %v3821, 0.0
        %v3854 = vmax.f32 %v3822, 0.0
        %v3855 = vmax.f32 %v3823, 0.0
        %v3856 = vmax.f32 %v3824, 0.0
        %v3857 = vmax.f32 %v3825, 0.0
        %v3858 = vmax.f32 %v3826, 0.0
        %v3859 = vmax.f32 %v3827, 0.0
        %v3860 = vmax.f32 %v3828, 0.0
        %v3893 = vrot.slane %v3829, 7
        %v3894 = vrot.slane %v3830, 7
        %v3895 = vrot.slane %v3831, 7
        %v3896 = vsel %vm2091, %v3893, %v3895
        %v3897 = vrot.slane %v3832, 7
        %v3898 = vsel %vm2091, %v3894, %v3897
        %v3899 = vrot.slane %v3833, 7
        %v3900 = vrot.slane %v3834, 7
        %v3901 = vrot.slane %v3835, 7
        %v3902 = vsel %vm2091, %v3899, %v3901
        %v3903 = vrot.slane %v3836, 7
        %v3904 = vsel %vm2091, %v3900, %v3903
        %v3905 = vrot.slane %v3837, 7
        %v3906 = vrot.slane %v3838, 7
        %v3907 = vrot.slane %v3839, 7
        %v3908 = vsel %vm2091, %v3905, %v3907
        %v3909 = vrot.slane %v3840, 7
        %v3910 = vsel %vm2091, %v3906, %v3909
        %v3911 = vrot.slane %v3841, 7
        %v3912 = vrot.slane %v3842, 7
        %v3913 = vrot.slane %v3843, 7
        %v3914 = vsel %vm2091, %v3911, %v3913
        %v3915 = vrot.slane %v3844, 7
        %v3916 = vsel %vm2091, %v3912, %v3915
        %v3917 = vrot.slane %v3845, 7
        %v3918 = vrot.slane %v3846, 7
        %v3919 = vrot.slane %v3847, 7
        %v3920 = vsel %vm2091, %v3917, %v3919
        %v3921 = vrot.slane %v3848, 7
        %v3922 = vsel %vm2091, %v3918, %v3921
        %v3923 = vrot.slane %v3849, 7
        %v3924 = vrot.slane %v3850, 7
        %v3925 = vrot.slane %v3851, 7
        %v3926 = vsel %vm2091, %v3923, %v3925
        %v3927 = vrot.slane %v3852, 7
        %v3928 = vsel %vm2091, %v3924, %v3927
        %v3929 = vrot.slane %v3853, 7
        %v3930 = vrot.slane %v3854, 7
        %v3931 = vrot.slane %v3855, 7
        %v3932 = vsel %vm2091, %v3929, %v3931
        %v3933 = vrot.slane %v3856, 7
        %v3934 = vsel %vm2091, %v3930, %v3933
        %v3935 = vrot.slane %v3857, 7
        %v3936 = vrot.slane %v3858, 7
        %v3937 = vrot.slane %v3859, 7
        %v3938 = vsel %vm2091, %v3935, %v3937
        %v3939 = vrot.slane %v3860, 7
        %v3940 = vsel %vm2091, %v3936, %v3939
        %s3989 = scalar_lea.vmem %s286, 432
        %3990 = vst [vmem:[%s3989] sm:$0xfe] %v3893
        %3991 = vst [vmem:[%s3989 + $0x8] sm:$0xfe] %v3894
        %3992 = vst [vmem:[%s3989 + $0x10] sm:$0xff] %v3896
        %3993 = vst [vmem:[%s3989 + $0x18] sm:$0xff] %v3898
        %3994 = vst [vmem:[%s3989 + $0x20] sm:$0x1] %v3895
        %3995 = vst [vmem:[%s3989 + $0x28] sm:$0x1] %v3897
        %3996 = vst [vmem:[%s3989 + $0x30] sm:$0xfe] %v3899
        %3997 = vst [vmem:[%s3989 + $0x38] sm:$0xfe] %v3900
        %3998 = vst [vmem:[%s3989 + $0x40] sm:$0xff] %v3902
        %3999 = vst [vmem:[%s3989 + $0x48] sm:$0xff] %v3904
        %4000 = vst [vmem:[%s3989 + $0x50] sm:$0x1] %v3901
        %4001 = vst [vmem:[%s3989 + $0x58] sm:$0x1] %v3903
        %4002 = vst [vmem:[%s3989 + $0x60] sm:$0xfe] %v3905
        %4003 = vst [vmem:[%s3989 + $0x68] sm:$0xfe] %v3906
        %4004 = vst [vmem:[%s3989 + $0x70] sm:$0xff] %v3908
        %4005 = vst [vmem:[%s3989 + $0x78] sm:$0xff] %v3910
        %4006 = vst [vmem:[%s3989 + $0x80] sm:$0x1] %v3907
        %4007 = vst [vmem:[%s3989 + $0x88] sm:$0x1] %v3909
        %4008 = vst [vmem:[%s3989 + $0x90] sm:$0xfe] %v3911
        %4009 = vst [vmem:[%s3989 + $0x98] sm:$0xfe] %v3912
        %4010 = vst [vmem:[%s3989 + $0xa0] sm:$0xff] %v3914
        %4011 = vst [vmem:[%s3989 + $0xa8] sm:$0xff] %v3916
        %4012 = vst [vmem:[%s3989 + $0xb0] sm:$0x1] %v3913
        %4013 = vst [vmem:[%s3989 + $0xb8] sm:$0x1] %v3915
        %4014 = vst [vmem:[%s3989 + $0xc0] sm:$0xfe] %v3917
        %4015 = vst [vmem:[%s3989 + $0xc8] sm:$0xfe] %v3918
        %4016 = vst [vmem:[%s3989 + $0xd0] sm:$0xff] %v3920
        %4017 = vst [vmem:[%s3989 + $0xd8] sm:$0xff] %v3922
        %4018 = vst [vmem:[%s3989 + $0xe0] sm:$0x1] %v3919
        %4019 = vst [vmem:[%s3989 + $0xe8] sm:$0x1] %v3921
        %4020 = vst [vmem:[%s3989 + $0xf0] sm:$0xfe] %v3923
        %4021 = vst [vmem:[%s3989 + $0xf8] sm:$0xfe] %v3924
        %4022 = vst [vmem:[%s3989 + $0x100] sm:$0xff] %v3926
        %4023 = vst [vmem:[%s3989 + $0x108] sm:$0xff] %v3928
        %4024 = vst [vmem:[%s3989 + $0x110] sm:$0x1] %v3925
        %4025 = vst [vmem:[%s3989 + $0x118] sm:$0x1] %v3927
        %4026 = vst [vmem:[%s3989 + $0x120] sm:$0xfe] %v3929
        %4027 = vst [vmem:[%s3989 + $0x128] sm:$0xfe] %v3930
        %4028 = vst [vmem:[%s3989 + $0x130] sm:$0xff] %v3932
        %4029 = vst [vmem:[%s3989 + $0x138] sm:$0xff] %v3934
        %4030 = vst [vmem:[%s3989 + $0x140] sm:$0x1] %v3931
        %4031 = vst [vmem:[%s3989 + $0x148] sm:$0x1] %v3933
        %4032 = vst [vmem:[%s3989 + $0x150] sm:$0xfe] %v3935
        %4033 = vst [vmem:[%s3989 + $0x158] sm:$0xfe] %v3936
        %4034 = vst [vmem:[%s3989 + $0x160] sm:$0xff] %v3938
        %4035 = vst [vmem:[%s3989 + $0x168] sm:$0xff] %v3940
        %4036 = vst [vmem:[%s3989 + $0x170] sm:$0x1] %v3937
        %4037 = vst [vmem:[%s3989 + $0x178] sm:$0x1] %v3939
        %s4038 = smul.u32 2, %s21
        %p4039 = scmp.lt.s32.totalorder %s22, 1
        %s4040 = scalar_select %p4039, %s22, 1
        %p4041 = scmp.lt.s32.totalorder %s4038, 1
        %s4042 = scalar_select %p4041, %s4038, 1
        %s4043 = smul.addr %s4040, 108
        %s4044 = sadd.s32 %s4042, %s4043
        %s4045 = smul.addr %s4044, 8
        %s4046 = scalar_lea.vmem %s4, %s4045
        // Predicated region
        $region49: #{tpu_custom_call.1} parent=35 // pred_check
          %p4047 = pneg %p153
        $region50: #{tpu_custom_call.1} parent=35 // pred_check_branch
          %4049 = sbr.rel (%p4047) target = $region52
        $region51: #{tpu_custom_call.1} parent=35 // pred_region
          %s4050 = smul.u32 2, %s21
        $region52: #{tpu_custom_call.1} parent=35 // pred_fallthru
          _
      $region36: #{tpu_custom_call.1} parent=5 // pred_fallthru
        _
      %p4051 = scmp.le.s32.totalorder 2, %s12
      // Predicated region
      $region53: #{tpu_custom_call.1} parent=5 // pred_check
        %p4052 = pneg %p4051
      $region54: #{tpu_custom_call.1} parent=5 // pred_check_branch
        %4054 = sbr.rel (%p4052) target = $region56
      $region55: #{tpu_custom_call.1} parent=5 // pred_region
        %s4055 = ssub.s32 %s12, 2
        // Predicated region
        $region57: #{tpu_custom_call.1} parent=55 // pred_check
          %p4056 = pneg %p159
        $region58: #{tpu_custom_call.1} parent=55 // pred_check_branch
          %4058 = sbr.rel (%p4056) target = $region60
        $region59: #{tpu_custom_call.1} parent=55 // pred_region
          %s4059 = smul.u32 2, %s23
          %p4060 = scmp.lt.s32.totalorder %s24, 1
          %s4061 = scalar_select %p4060, %s24, 1
          %p4062 = scmp.lt.s32.totalorder %s4059, 1
          %s4063 = scalar_select %p4062, %s4059, 1
          %s4064 = smul.addr %s4061, 108
          %s4065 = sadd.s32 %s4063, %s4064
          %s4066 = smul.addr %s4065, 8
          %s4067 = scalar_lea.vmem %s4, %s4066
        $region60: #{tpu_custom_call.1} parent=55 // pred_fallthru
          _
      $region56: #{tpu_custom_call.1} parent=5 // pred_fallthru
        _
    $region6: #{tpu_custom_call.1} parent=1 // loop_footer
      %s16 = sadd.s32 1, %s12
    $region7: #{tpu_custom_call.1} parent=1 // loop_footer_branch
      %11 = sbr.rel target = $region3
    $region8: #{tpu_custom_call.1} parent=1 // loop_exit
      _
    %4068 = vsyncpa [#allocation5], 1
    %s4069 = scalar_lea.sflag [#allocation5], 1
    %4070 = vsyncpa %s4069, 1
    %4071 = vsyncpa [#allocation7], 1

</llo_original>
